<compile_context>
chip_gen: v7x
topology: tpu7x:2x2x1
jax: 0.10.0
libtpu: 0.0.40
codegen_flags: <defaults>
</compile_context>

<pallas_src>
import jax
import jax.numpy as jnp
from jax.experimental import pallas as pl
from jax.experimental.pallas import tpu as pltpu

# ----------------------------- hyper-params ---------------------------------
VOCAB = 50
VOCAB_PAD = 64            # pad embedding rows to a multiple of 8 sublanes
D_MODEL = 32
NUM_HEADS = 4
HEAD_DIM = D_MODEL // NUM_HEADS
D_FF = 64
NUM_LAYERS = 2
LN_EPS = 1e-5

VEC_ROWS = 8              # packed bias / layernorm block: (8, 128) per layer
LANES = 128

# -------- single packed weight slab: (TOTAL_ROWS, 128) f32 ~ 200 KB ---------
EMB_ROWS = VOCAB_PAD                  # rows 0:64           lanes 0:D    emb
R_WQKV = 0                            # +0   : +32          lanes 0:3D   Wq|Wk|Wv
R_WO = 32                             # +32  : +64          lanes 0:D    Wo
R_W1 = 64                             # +64  : +96          lanes 0:DF   W1
R_W2 = 96                             # +96  : +160         lanes 0:D    W2
R_VEC = 160                           # +160 : +168         lanes 0:128  biases+LN
LAYER_ROWS = 168
TOTAL_ROWS = EMB_ROWS + NUM_LAYERS * LAYER_ROWS   # 400


# ------------------------------- kernel -------------------------------------
def _layernorm(x, gamma, beta):
    mean = jnp.mean(x, axis=-1, keepdims=True)
    var = jnp.mean((x - mean) ** 2, axis=-1, keepdims=True)
    return (x - mean) * jax.lax.rsqrt(var + LN_EPS) * gamma + beta


def encoder_kernel(tok_ref, w_ref, o_ref):
    # tok_ref : (S, B) int32 token ids (raw module input, no wrapper reshape)
    # w_ref   : (TOTAL_ROWS, 128) f32 packed weights
    # o_ref   : (S, B*D) f32; row-major identical to (S, B, D)
    S, B = tok_ref.shape
    D = D_MODEL
    BS = B * S

    # ---- fused embedding lookup: one-hot(token) @ table on the MXU ---------
    emb = w_ref[0:VOCAB_PAD, 0:D]                               # (Vp, D)
    vocab_iota = jax.lax.broadcasted_iota(jnp.int32, (S, VOCAB_PAD), 1)
    # batch-major rows (b*S + s) built with per-batch lane slices + sublane cat
    onehot = jnp.concatenate(
        [(tok_ref[:, b:b + 1] == vocab_iota).astype(jnp.float32)
         for b in range(B)],
        axis=0)                                                  # (BS, Vp)
    x = jnp.dot(onehot, emb, preferred_element_type=jnp.float32)  # (BS, D)

    for l in range(NUM_LAYERS):                # static unroll over layers
        base = EMB_ROWS + l * LAYER_ROWS
        wqkv = w_ref[base + R_WQKV:base + R_WQKV + D, 0:3 * D]   # (D, 3D)
        w1 = w_ref[base + R_W1:base + R_W1 + D, 0:D_FF]          # (D, DF)
        w2 = w_ref[base + R_W2:base + R_W2 + D_FF, 0:D]          # (DF, D)
        vec = w_ref[base + R_VEC:base + R_VEC + VEC_ROWS, :]     # (8, 128)

        b_qkv = vec[0:1, 0:3 * D]
        b_o = vec[1:2, 0:D]
        b_1 = vec[2:3, 0:D_FF]
        b_2 = vec[3:4, 0:D]
        ln1_g, ln1_b = vec[4:5, 0:D], vec[5:6, 0:D]
        ln2_g, ln2_b = vec[6:7, 0:D], vec[7:8, 0:D]

        # --- fused QKV projection (softmax scale pre-folded into Wq/bq) ------
        qkv = jnp.dot(x, wqkv, preferred_element_type=jnp.float32) + b_qkv
        q = qkv[:, 0 * D:1 * D].reshape(B, S, D)
        k = qkv[:, 1 * D:2 * D].reshape(B, S, D)
        v = qkv[:, 2 * D:3 * D].reshape(B, S, D)

        # --- multi-head self-attention; fold each head through its Wo slice --
        attn = jnp.zeros((BS, D), jnp.float32)
        for h in range(NUM_HEADS):             # static unroll over heads
            lo = h * HEAD_DIM
            qh = q[:, :, lo:lo + HEAD_DIM]     # (B, S, hd)
            kh = k[:, :, lo:lo + HEAD_DIM]
            vh = v[:, :, lo:lo + HEAD_DIM]
            s = jnp.einsum('bsd,btd->bst', qh, kh,
                           preferred_element_type=jnp.float32)
            s = s - jnp.max(s, axis=-1, keepdims=True)
            p = jnp.exp(s)
            p = p / jnp.sum(p, axis=-1, keepdims=True)           # exact div
            ctx = jnp.einsum('bst,btd->bsd', p, vh,
                             preferred_element_type=jnp.float32)  # (B, S, hd)
            wo_h = w_ref[base + R_WO + lo:base + R_WO + lo + HEAD_DIM, 0:D]
            attn = attn + jnp.dot(ctx.reshape(BS, HEAD_DIM), wo_h,
                                  preferred_element_type=jnp.float32)

        x = _layernorm(x + attn + b_o, ln1_g, ln1_b)

        # --- feed-forward (ReLU) ---------------------------------------------
        h1 = jnp.maximum(
            jnp.dot(x, w1, preferred_element_type=jnp.float32) + b_1, 0.0)
        ffn = jnp.dot(h1, w2, preferred_element_type=jnp.float32) + b_2
        x = _layernorm(x + ffn, ln2_g, ln2_b)

    # ---- store seq-major: (S, B*D) rows are exactly (S, B, D) row-major -----
    o_ref[...] = jnp.concatenate([x[b * S:(b + 1) * S, :] for b in range(B)],
                                 axis=1)


# ------------------------------ wrapper --------------------------------------
def encoder_forward(data, weights):
    """data: (S, B) int32 tokens, weights: packed slab -> (S, B, D) float32."""
    S, B = data.shape
    vmem = pl.BlockSpec(memory_space=pltpu.MemorySpace.VMEM)
    out2d = pl.pallas_call(
        encoder_kernel,
        out_shape=jax.ShapeDtypeStruct((S, B * D_MODEL), jnp.float32),
        in_specs=[vmem, vmem],
        out_specs=vmem,
    )(data, weights)
    # contiguous reshape -> metadata only (no extra kernel launch)
    return out2d.reshape(S, B, D_MODEL)


# --------------------------- deterministic init ------------------------------
def init_params(key):
    keys = jax.random.split(key, 1 + NUM_LAYERS)
    emb_table = jax.random.normal(keys[0], (VOCAB, D_MODEL), jnp.float32) * 0.02

    def lin(kk, din, dout):
        return jax.random.normal(kk, (din, dout), jnp.float32) * (1.0 / din ** 0.5)

    layers = []
    for l in range(NUM_LAYERS):
        k = jax.random.split(keys[1 + l], 6)
        layers.append(dict(
            wq=lin(k[0], D_MODEL, D_MODEL), bq=jnp.zeros((D_MODEL,), jnp.float32),
            wk=lin(k[1], D_MODEL, D_MODEL), bk=jnp.zeros((D_MODEL,), jnp.float32),
            wv=lin(k[2], D_MODEL, D_MODEL), bv=jnp.zeros((D_MODEL,), jnp.float32),
            wo=lin(k[3], D_MODEL, D_MODEL), bo=jnp.zeros((D_MODEL,), jnp.float32),
            ln1_g=jnp.ones((D_MODEL,), jnp.float32),
            ln1_b=jnp.zeros((D_MODEL,), jnp.float32),
            w1=lin(k[4], D_MODEL, D_FF), b1=jnp.zeros((D_FF,), jnp.float32),
            w2=lin(k[5], D_FF, D_MODEL), b2=jnp.zeros((D_MODEL,), jnp.float32),
            ln2_g=jnp.ones((D_MODEL,), jnp.float32),
            ln2_b=jnp.zeros((D_MODEL,), jnp.float32),
        ))
    return emb_table, layers


def pack_params(emb_table, layers):
    """Pack everything into ONE (TOTAL_ROWS, 128) f32 slab (done once)."""
    scale = 1.0 / (HEAD_DIM ** 0.5)          # fold softmax scale into Wq / bq
    slab = jnp.zeros((TOTAL_ROWS, LANES), jnp.float32)
    slab = slab.at[0:VOCAB, 0:D_MODEL].set(emb_table)
    for l, p in enumerate(layers):
        base = EMB_ROWS + l * LAYER_ROWS
        wqkv = jnp.concatenate([p["wq"] * scale, p["wk"], p["wv"]], axis=1)
        slab = slab.at[base + R_WQKV:base + R_WQKV + D_MODEL,
                       0:3 * D_MODEL].set(wqkv)
        slab = slab.at[base + R_WO:base + R_WO + D_MODEL,
                       0:D_MODEL].set(p["wo"])
        slab = slab.at[base + R_W1:base + R_W1 + D_MODEL, 0:D_FF].set(p["w1"])
        slab = slab.at[base + R_W2:base + R_W2 + D_FF, 0:D_MODEL].set(p["w2"])
        v = base + R_VEC
        slab = slab.at[v + 0, 0:3 * D_MODEL].set(
            jnp.concatenate([p["bq"] * scale, p["bk"], p["bv"]]))
        slab = slab.at[v + 1, 0:D_MODEL].set(p["bo"])
        slab = slab.at[v + 2, 0:D_FF].set(p["b1"])
        slab = slab.at[v + 3, 0:D_MODEL].set(p["b2"])
        slab = slab.at[v + 4, 0:D_MODEL].set(p["ln1_g"])
        slab = slab.at[v + 5, 0:D_MODEL].set(p["ln1_b"])
        slab = slab.at[v + 6, 0:D_MODEL].set(p["ln2_g"])
        slab = slab.at[v + 7, 0:D_MODEL].set(p["ln2_b"])
    return slab


# --------------------------------- main --------------------------------------
if __name__ == "__main__":
    key = jax.random.PRNGKey(0)
    pkey, dkey = jax.random.split(key)
    emb_table, layer_params = init_params(pkey)
    weights = pack_params(emb_table, layer_params)

    SEQ_LEN, BATCH = 8, 2
    data = jax.random.randint(dkey, (SEQ_LEN, BATCH), 0, VOCAB, dtype=jnp.int32)

    # TODO(synk): dropout inside TransformerEncoderLayer is omitted (eval mode).
    fwd = jax.jit(encoder_forward)
    out = jax.block_until_ready(fwd(data, weights))
    assert out.shape == (SEQ_LEN, BATCH, D_MODEL)
    assert out.dtype == jnp.float32
    print("KERNEL_OK")
</pallas_src>

<mosaic_0001>
module attributes {stable_mosaic.version = 11 : i64} {
  func.func @encoder_kernel(%arg0: memref<8x2xi32, #tpu.memory_space<vmem>>, %arg1: memref<400x128xf32, #tpu.memory_space<vmem>>, %arg2: memref<8x64xf32, #tpu.memory_space<vmem>>) attributes {dimension_semantics = [], scalar_prefetch = 0 : i64, scratch_operands = 0 : i64, tpu.core_type = #tpu.core_type<tc>} {
    %c0 = arith.constant 0 : index
    %c0_0 = arith.constant 0 : index
    %0 = vector.load %arg1[%c0, %c0_0] : memref<400x128xf32, #tpu.memory_space<vmem>>, vector<64x32xf32>
    %1 = tpu.iota {dimensions = array<i32: 1>} : vector<8x64xi32>
    %c0_1 = arith.constant 0 : index
    %c0_2 = arith.constant 0 : index
    %2 = vector.load %arg0[%c0_1, %c0_2] : memref<8x2xi32, #tpu.memory_space<vmem>>, vector<8x1xi32>
    %3 = vector.broadcast %2 : vector<8x1xi32> to vector<8x64xi32>
    %4 = arith.cmpi eq, %3, %1 : vector<8x64xi32>
    %5 = arith.extui %4 : vector<8x64xi1> to vector<8x64xi32>
    %6 = arith.sitofp %5 : vector<8x64xi32> to vector<8x64xf32>
    %c0_3 = arith.constant 0 : index
    %c1 = arith.constant 1 : index
    %7 = vector.load %arg0[%c0_3, %c1] : memref<8x2xi32, #tpu.memory_space<vmem>>, vector<8x1xi32>
    %8 = vector.broadcast %7 : vector<8x1xi32> to vector<8x64xi32>
    %9 = arith.cmpi eq, %8, %1 : vector<8x64xi32>
    %10 = arith.extui %9 : vector<8x64xi1> to vector<8x64xi32>
    %11 = arith.sitofp %10 : vector<8x64xi32> to vector<8x64xf32>
    %12 = tpu.concatenate %6, %11 in 0 : vector<8x64xf32>, vector<8x64xf32> -> vector<16x64xf32>
    %cst = arith.constant dense<0.000000e+00> : vector<16x32xf32>
    %13 = tpu.matmul %12, %0, %cst {dimension_numbers = #tpu.dot_dimension_numbers<[1], [0], [0], [1], [0, 0, 1, 1], [], []>} : vector<16x64xf32>, vector<64x32xf32>, vector<16x32xf32> -> vector<16x32xf32>
    %c64 = arith.constant 64 : index
    %c0_4 = arith.constant 0 : index
    %14 = vector.load %arg1[%c64, %c0_4] : memref<400x128xf32, #tpu.memory_space<vmem>>, vector<32x96xf32>
    %c128 = arith.constant 128 : index
    %c0_5 = arith.constant 0 : index
    %15 = vector.load %arg1[%c128, %c0_5] : memref<400x128xf32, #tpu.memory_space<vmem>>, vector<32x64xf32>
    %c160 = arith.constant 160 : index
    %c0_6 = arith.constant 0 : index
    %16 = vector.load %arg1[%c160, %c0_6] : memref<400x128xf32, #tpu.memory_space<vmem>>, vector<64x32xf32>
    %c224 = arith.constant 224 : index
    %c0_7 = arith.constant 0 : index
    %17 = vector.load %arg1[%c224, %c0_7] : memref<400x128xf32, #tpu.memory_space<vmem>>, vector<8x128xf32>
    %18 = vector.extract_strided_slice %17 {offsets = [0, 0], sizes = [1, 96], strides = [1, 1]} : vector<8x128xf32> to vector<1x96xf32>
    %19 = vector.extract_strided_slice %17 {offsets = [1, 0], sizes = [1, 32], strides = [1, 1]} : vector<8x128xf32> to vector<1x32xf32>
    %20 = vector.extract_strided_slice %17 {offsets = [2, 0], sizes = [1, 64], strides = [1, 1]} : vector<8x128xf32> to vector<1x64xf32>
    %21 = vector.extract_strided_slice %17 {offsets = [3, 0], sizes = [1, 32], strides = [1, 1]} : vector<8x128xf32> to vector<1x32xf32>
    %22 = vector.extract_strided_slice %17 {offsets = [4, 0], sizes = [1, 32], strides = [1, 1]} : vector<8x128xf32> to vector<1x32xf32>
    %23 = vector.extract_strided_slice %17 {offsets = [5, 0], sizes = [1, 32], strides = [1, 1]} : vector<8x128xf32> to vector<1x32xf32>
    %24 = vector.extract_strided_slice %17 {offsets = [6, 0], sizes = [1, 32], strides = [1, 1]} : vector<8x128xf32> to vector<1x32xf32>
    %25 = vector.extract_strided_slice %17 {offsets = [7, 0], sizes = [1, 32], strides = [1, 1]} : vector<8x128xf32> to vector<1x32xf32>
    %cst_8 = arith.constant dense<0.000000e+00> : vector<16x96xf32>
    %26 = tpu.matmul %13, %14, %cst_8 {dimension_numbers = #tpu.dot_dimension_numbers<[1], [0], [0], [1], [0, 0, 1, 1], [], []>} : vector<16x32xf32>, vector<32x96xf32>, vector<16x96xf32> -> vector<16x96xf32>
    %27 = vector.broadcast %18 : vector<1x96xf32> to vector<16x96xf32>
    %28 = arith.addf %26, %27 : vector<16x96xf32>
    %29 = vector.extract_strided_slice %28 {offsets = [0, 0], sizes = [16, 32], strides = [1, 1]} : vector<16x96xf32> to vector<16x32xf32>
    %30 = vector.shape_cast %29 : vector<16x32xf32> to vector<2x8x32xf32>
    %31 = vector.extract_strided_slice %28 {offsets = [0, 32], sizes = [16, 32], strides = [1, 1]} : vector<16x96xf32> to vector<16x32xf32>
    %32 = vector.shape_cast %31 : vector<16x32xf32> to vector<2x8x32xf32>
    %33 = vector.extract_strided_slice %28 {offsets = [0, 64], sizes = [16, 32], strides = [1, 1]} : vector<16x96xf32> to vector<16x32xf32>
    %34 = vector.shape_cast %33 : vector<16x32xf32> to vector<2x8x32xf32>
    %cst_9 = arith.constant 0.000000e+00 : f32
    %35 = vector.broadcast %cst_9 : f32 to vector<16x32xf32>
    %36 = vector.extract_strided_slice %30 {offsets = [0, 0, 0], sizes = [2, 8, 8], strides = [1, 1, 1]} : vector<2x8x32xf32> to vector<2x8x8xf32>
    %37 = vector.extract_strided_slice %32 {offsets = [0, 0, 0], sizes = [2, 8, 8], strides = [1, 1, 1]} : vector<2x8x32xf32> to vector<2x8x8xf32>
    %38 = vector.extract_strided_slice %34 {offsets = [0, 0, 0], sizes = [2, 8, 8], strides = [1, 1, 1]} : vector<2x8x32xf32> to vector<2x8x8xf32>
    "tpu.trace_start"() <{level = 10 : i32, message = "bsd,btd->bst"}> : () -> ()
    %cst_10 = arith.constant dense<0.000000e+00> : vector<2x8x8xf32>
    %39 = tpu.matmul %36, %37, %cst_10 {dimension_numbers = #tpu.dot_dimension_numbers<[2], [2], [1], [1], [0, 0, 0, 1, 1, 1], [0], [0]>} : vector<2x8x8xf32>, vector<2x8x8xf32>, vector<2x8x8xf32> -> vector<2x8x8xf32>
    "tpu.trace_stop"() : () -> ()
    %cst_11 = arith.constant dense<0xFF800000> : vector<2x8xf32>
    %40 = vector.multi_reduction <maximumf>, %39, %cst_11 [2] : vector<2x8x8xf32> to vector<2x8xf32>
    %41 = vector.shape_cast %40 : vector<2x8xf32> to vector<2x8x1xf32>
    %42 = vector.broadcast %41 : vector<2x8x1xf32> to vector<2x8x8xf32>
    %43 = arith.subf %39, %42 : vector<2x8x8xf32>
    %44 = math.exp %43 : vector<2x8x8xf32>
    %cst_12 = arith.constant dense<0.000000e+00> : vector<2x8xf32>
    %45 = vector.multi_reduction <add>, %44, %cst_12 [2] : vector<2x8x8xf32> to vector<2x8xf32>
    %46 = vector.shape_cast %45 : vector<2x8xf32> to vector<2x8x1xf32>
    %47 = vector.broadcast %46 : vector<2x8x1xf32> to vector<2x8x8xf32>
    %48 = arith.divf %44, %47 : vector<2x8x8xf32>
    "tpu.trace_start"() <{level = 10 : i32, message = "bst,btd->bsd"}> : () -> ()
    %cst_13 = arith.constant dense<0.000000e+00> : vector<2x8x8xf32>
    %49 = tpu.matmul %48, %38, %cst_13 {dimension_numbers = #tpu.dot_dimension_numbers<[2], [1], [1], [2], [0, 0, 0, 1, 1, 2], [0], [0]>} : vector<2x8x8xf32>, vector<2x8x8xf32>, vector<2x8x8xf32> -> vector<2x8x8xf32>
    "tpu.trace_stop"() : () -> ()
    %c96 = arith.constant 96 : index
    %c0_14 = arith.constant 0 : index
    %50 = vector.load %arg1[%c96, %c0_14] : memref<400x128xf32, #tpu.memory_space<vmem>>, vector<8x32xf32>
    %51 = vector.shape_cast %49 : vector<2x8x8xf32> to vector<16x8xf32>
    %cst_15 = arith.constant dense<0.000000e+00> : vector<16x32xf32>
    %52 = tpu.matmul %51, %50, %cst_15 {dimension_numbers = #tpu.dot_dimension_numbers<[1], [0], [0], [1], [0, 0, 1, 1], [], []>} : vector<16x8xf32>, vector<8x32xf32>, vector<16x32xf32> -> vector<16x32xf32>
    %53 = arith.addf %35, %52 : vector<16x32xf32>
    %54 = vector.extract_strided_slice %30 {offsets = [0, 0, 8], sizes = [2, 8, 8], strides = [1, 1, 1]} : vector<2x8x32xf32> to vector<2x8x8xf32>
    %55 = vector.extract_strided_slice %32 {offsets = [0, 0, 8], sizes = [2, 8, 8], strides = [1, 1, 1]} : vector<2x8x32xf32> to vector<2x8x8xf32>
    %56 = vector.extract_strided_slice %34 {offsets = [0, 0, 8], sizes = [2, 8, 8], strides = [1, 1, 1]} : vector<2x8x32xf32> to vector<2x8x8xf32>
    "tpu.trace_start"() <{level = 10 : i32, message = "bsd,btd->bst"}> : () -> ()
    %cst_16 = arith.constant dense<0.000000e+00> : vector<2x8x8xf32>
    %57 = tpu.matmul %54, %55, %cst_16 {dimension_numbers = #tpu.dot_dimension_numbers<[2], [2], [1], [1], [0, 0, 0, 1, 1, 1], [0], [0]>} : vector<2x8x8xf32>, vector<2x8x8xf32>, vector<2x8x8xf32> -> vector<2x8x8xf32>
    "tpu.trace_stop"() : () -> ()
    %cst_17 = arith.constant dense<0xFF800000> : vector<2x8xf32>
    %58 = vector.multi_reduction <maximumf>, %57, %cst_17 [2] : vector<2x8x8xf32> to vector<2x8xf32>
    %59 = vector.shape_cast %58 : vector<2x8xf32> to vector<2x8x1xf32>
    %60 = vector.broadcast %59 : vector<2x8x1xf32> to vector<2x8x8xf32>
    %61 = arith.subf %57, %60 : vector<2x8x8xf32>
    %62 = math.exp %61 : vector<2x8x8xf32>
    %cst_18 = arith.constant dense<0.000000e+00> : vector<2x8xf32>
    %63 = vector.multi_reduction <add>, %62, %cst_18 [2] : vector<2x8x8xf32> to vector<2x8xf32>
    %64 = vector.shape_cast %63 : vector<2x8xf32> to vector<2x8x1xf32>
    %65 = vector.broadcast %64 : vector<2x8x1xf32> to vector<2x8x8xf32>
    %66 = arith.divf %62, %65 : vector<2x8x8xf32>
    "tpu.trace_start"() <{level = 10 : i32, message = "bst,btd->bsd"}> : () -> ()
    %cst_19 = arith.constant dense<0.000000e+00> : vector<2x8x8xf32>
    %67 = tpu.matmul %66, %56, %cst_19 {dimension_numbers = #tpu.dot_dimension_numbers<[2], [1], [1], [2], [0, 0, 0, 1, 1, 2], [0], [0]>} : vector<2x8x8xf32>, vector<2x8x8xf32>, vector<2x8x8xf32> -> vector<2x8x8xf32>
    "tpu.trace_stop"() : () -> ()
    %c104 = arith.constant 104 : index
    %c0_20 = arith.constant 0 : index
    %68 = vector.load %arg1[%c104, %c0_20] : memref<400x128xf32, #tpu.memory_space<vmem>>, vector<8x32xf32>
    %69 = vector.shape_cast %67 : vector<2x8x8xf32> to vector<16x8xf32>
    %cst_21 = arith.constant dense<0.000000e+00> : vector<16x32xf32>
    %70 = tpu.matmul %69, %68, %cst_21 {dimension_numbers = #tpu.dot_dimension_numbers<[1], [0], [0], [1], [0, 0, 1, 1], [], []>} : vector<16x8xf32>, vector<8x32xf32>, vector<16x32xf32> -> vector<16x32xf32>
    %71 = arith.addf %53, %70 : vector<16x32xf32>
    %72 = vector.extract_strided_slice %30 {offsets = [0, 0, 16], sizes = [2, 8, 8], strides = [1, 1, 1]} : vector<2x8x32xf32> to vector<2x8x8xf32>
    %73 = vector.extract_strided_slice %32 {offsets = [0, 0, 16], sizes = [2, 8, 8], strides = [1, 1, 1]} : vector<2x8x32xf32> to vector<2x8x8xf32>
    %74 = vector.extract_strided_slice %34 {offsets = [0, 0, 16], sizes = [2, 8, 8], strides = [1, 1, 1]} : vector<2x8x32xf32> to vector<2x8x8xf32>
    "tpu.trace_start"() <{level = 10 : i32, message = "bsd,btd->bst"}> : () -> ()
    %cst_22 = arith.constant dense<0.000000e+00> : vector<2x8x8xf32>
    %75 = tpu.matmul %72, %73, %cst_22 {dimension_numbers = #tpu.dot_dimension_numbers<[2], [2], [1], [1], [0, 0, 0, 1, 1, 1], [0], [0]>} : vector<2x8x8xf32>, vector<2x8x8xf32>, vector<2x8x8xf32> -> vector<2x8x8xf32>
    "tpu.trace_stop"() : () -> ()
    %cst_23 = arith.constant dense<0xFF800000> : vector<2x8xf32>
    %76 = vector.multi_reduction <maximumf>, %75, %cst_23 [2] : vector<2x8x8xf32> to vector<2x8xf32>
    %77 = vector.shape_cast %76 : vector<2x8xf32> to vector<2x8x1xf32>
    %78 = vector.broadcast %77 : vector<2x8x1xf32> to vector<2x8x8xf32>
    %79 = arith.subf %75, %78 : vector<2x8x8xf32>
    %80 = math.exp %79 : vector<2x8x8xf32>
    %cst_24 = arith.constant dense<0.000000e+00> : vector<2x8xf32>
    %81 = vector.multi_reduction <add>, %80, %cst_24 [2] : vector<2x8x8xf32> to vector<2x8xf32>
    %82 = vector.shape_cast %81 : vector<2x8xf32> to vector<2x8x1xf32>
    %83 = vector.broadcast %82 : vector<2x8x1xf32> to vector<2x8x8xf32>
    %84 = arith.divf %80, %83 : vector<2x8x8xf32>
    "tpu.trace_start"() <{level = 10 : i32, message = "bst,btd->bsd"}> : () -> ()
    %cst_25 = arith.constant dense<0.000000e+00> : vector<2x8x8xf32>
    %85 = tpu.matmul %84, %74, %cst_25 {dimension_numbers = #tpu.dot_dimension_numbers<[2], [1], [1], [2], [0, 0, 0, 1, 1, 2], [0], [0]>} : vector<2x8x8xf32>, vector<2x8x8xf32>, vector<2x8x8xf32> -> vector<2x8x8xf32>
    "tpu.trace_stop"() : () -> ()
    %c112 = arith.constant 112 : index
    %c0_26 = arith.constant 0 : index
    %86 = vector.load %arg1[%c112, %c0_26] : memref<400x128xf32, #tpu.memory_space<vmem>>, vector<8x32xf32>
    %87 = vector.shape_cast %85 : vector<2x8x8xf32> to vector<16x8xf32>
    %cst_27 = arith.constant dense<0.000000e+00> : vector<16x32xf32>
    %88 = tpu.matmul %87, %86, %cst_27 {dimension_numbers = #tpu.dot_dimension_numbers<[1], [0], [0], [1], [0, 0, 1, 1], [], []>} : vector<16x8xf32>, vector<8x32xf32>, vector<16x32xf32> -> vector<16x32xf32>
    %89 = arith.addf %71, %88 : vector<16x32xf32>
    %90 = vector.extract_strided_slice %30 {offsets = [0, 0, 24], sizes = [2, 8, 8], strides = [1, 1, 1]} : vector<2x8x32xf32> to vector<2x8x8xf32>
    %91 = vector.extract_strided_slice %32 {offsets = [0, 0, 24], sizes = [2, 8, 8], strides = [1, 1, 1]} : vector<2x8x32xf32> to vector<2x8x8xf32>
    %92 = vector.extract_strided_slice %34 {offsets = [0, 0, 24], sizes = [2, 8, 8], strides = [1, 1, 1]} : vector<2x8x32xf32> to vector<2x8x8xf32>
    "tpu.trace_start"() <{level = 10 : i32, message = "bsd,btd->bst"}> : () -> ()
    %cst_28 = arith.constant dense<0.000000e+00> : vector<2x8x8xf32>
    %93 = tpu.matmul %90, %91, %cst_28 {dimension_numbers = #tpu.dot_dimension_numbers<[2], [2], [1], [1], [0, 0, 0, 1, 1, 1], [0], [0]>} : vector<2x8x8xf32>, vector<2x8x8xf32>, vector<2x8x8xf32> -> vector<2x8x8xf32>
    "tpu.trace_stop"() : () -> ()
    %cst_29 = arith.constant dense<0xFF800000> : vector<2x8xf32>
    %94 = vector.multi_reduction <maximumf>, %93, %cst_29 [2] : vector<2x8x8xf32> to vector<2x8xf32>
    %95 = vector.shape_cast %94 : vector<2x8xf32> to vector<2x8x1xf32>
    %96 = vector.broadcast %95 : vector<2x8x1xf32> to vector<2x8x8xf32>
    %97 = arith.subf %93, %96 : vector<2x8x8xf32>
    %98 = math.exp %97 : vector<2x8x8xf32>
    %cst_30 = arith.constant dense<0.000000e+00> : vector<2x8xf32>
    %99 = vector.multi_reduction <add>, %98, %cst_30 [2] : vector<2x8x8xf32> to vector<2x8xf32>
    %100 = vector.shape_cast %99 : vector<2x8xf32> to vector<2x8x1xf32>
    %101 = vector.broadcast %100 : vector<2x8x1xf32> to vector<2x8x8xf32>
    %102 = arith.divf %98, %101 : vector<2x8x8xf32>
    "tpu.trace_start"() <{level = 10 : i32, message = "bst,btd->bsd"}> : () -> ()
    %cst_31 = arith.constant dense<0.000000e+00> : vector<2x8x8xf32>
    %103 = tpu.matmul %102, %92, %cst_31 {dimension_numbers = #tpu.dot_dimension_numbers<[2], [1], [1], [2], [0, 0, 0, 1, 1, 2], [0], [0]>} : vector<2x8x8xf32>, vector<2x8x8xf32>, vector<2x8x8xf32> -> vector<2x8x8xf32>
    "tpu.trace_stop"() : () -> ()
    %c120 = arith.constant 120 : index
    %c0_32 = arith.constant 0 : index
    %104 = vector.load %arg1[%c120, %c0_32] : memref<400x128xf32, #tpu.memory_space<vmem>>, vector<8x32xf32>
    %105 = vector.shape_cast %103 : vector<2x8x8xf32> to vector<16x8xf32>
    %cst_33 = arith.constant dense<0.000000e+00> : vector<16x32xf32>
    %106 = tpu.matmul %105, %104, %cst_33 {dimension_numbers = #tpu.dot_dimension_numbers<[1], [0], [0], [1], [0, 0, 1, 1], [], []>} : vector<16x8xf32>, vector<8x32xf32>, vector<16x32xf32> -> vector<16x32xf32>
    %107 = arith.addf %89, %106 : vector<16x32xf32>
    %108 = arith.addf %13, %107 : vector<16x32xf32>
    %109 = vector.broadcast %19 : vector<1x32xf32> to vector<16x32xf32>
    %110 = arith.addf %108, %109 : vector<16x32xf32>
    %cst_34 = arith.constant dense<0.000000e+00> : vector<16xf32>
    %111 = vector.multi_reduction <add>, %110, %cst_34 [1] : vector<16x32xf32> to vector<16xf32>
    %112 = vector.shape_cast %111 : vector<16xf32> to vector<16x1xf32>
    %cst_35 = arith.constant 3.200000e+01 : f32
    %113 = vector.broadcast %cst_35 : f32 to vector<16x1xf32>
    %114 = arith.divf %112, %113 : vector<16x1xf32>
    %115 = vector.broadcast %114 : vector<16x1xf32> to vector<16x32xf32>
    %116 = arith.subf %110, %115 : vector<16x32xf32>
    %117 = arith.mulf %116, %116 : vector<16x32xf32>
    %cst_36 = arith.constant dense<0.000000e+00> : vector<16xf32>
    %118 = vector.multi_reduction <add>, %117, %cst_36 [1] : vector<16x32xf32> to vector<16xf32>
    %119 = vector.shape_cast %118 : vector<16xf32> to vector<16x1xf32>
    %cst_37 = arith.constant 3.200000e+01 : f32
    %120 = vector.broadcast %cst_37 : f32 to vector<16x1xf32>
    %121 = arith.divf %119, %120 : vector<16x1xf32>
    %122 = vector.broadcast %114 : vector<16x1xf32> to vector<16x32xf32>
    %123 = arith.subf %110, %122 : vector<16x32xf32>
    %cst_38 = arith.constant 9.99999974E-6 : f32
    %124 = vector.broadcast %cst_38 : f32 to vector<16x1xf32>
    %125 = arith.addf %121, %124 : vector<16x1xf32>
    %126 = math.rsqrt %125 : vector<16x1xf32>
    %127 = vector.broadcast %126 : vector<16x1xf32> to vector<16x32xf32>
    %128 = arith.mulf %123, %127 : vector<16x32xf32>
    %129 = vector.broadcast %22 : vector<1x32xf32> to vector<16x32xf32>
    %130 = arith.mulf %128, %129 : vector<16x32xf32>
    %131 = vector.broadcast %23 : vector<1x32xf32> to vector<16x32xf32>
    %132 = arith.addf %130, %131 : vector<16x32xf32>
    %cst_39 = arith.constant dense<0.000000e+00> : vector<16x64xf32>
    %133 = tpu.matmul %132, %15, %cst_39 {dimension_numbers = #tpu.dot_dimension_numbers<[1], [0], [0], [1], [0, 0, 1, 1], [], []>} : vector<16x32xf32>, vector<32x64xf32>, vector<16x64xf32> -> vector<16x64xf32>
    %134 = vector.broadcast %20 : vector<1x64xf32> to vector<16x64xf32>
    %135 = arith.addf %133, %134 : vector<16x64xf32>
    %cst_40 = arith.constant 0.000000e+00 : f32
    %136 = vector.broadcast %cst_40 : f32 to vector<16x64xf32>
    %137 = arith.maximumf %135, %136 : vector<16x64xf32>
    %cst_41 = arith.constant dense<0.000000e+00> : vector<16x32xf32>
    %138 = tpu.matmul %137, %16, %cst_41 {dimension_numbers = #tpu.dot_dimension_numbers<[1], [0], [0], [1], [0, 0, 1, 1], [], []>} : vector<16x64xf32>, vector<64x32xf32>, vector<16x32xf32> -> vector<16x32xf32>
    %139 = vector.broadcast %21 : vector<1x32xf32> to vector<16x32xf32>
    %140 = arith.addf %138, %139 : vector<16x32xf32>
    %141 = arith.addf %132, %140 : vector<16x32xf32>
    %cst_42 = arith.constant dense<0.000000e+00> : vector<16xf32>
    %142 = vector.multi_reduction <add>, %141, %cst_42 [1] : vector<16x32xf32> to vector<16xf32>
    %143 = vector.shape_cast %142 : vector<16xf32> to vector<16x1xf32>
    %cst_43 = arith.constant 3.200000e+01 : f32
    %144 = vector.broadcast %cst_43 : f32 to vector<16x1xf32>
    %145 = arith.divf %143, %144 : vector<16x1xf32>
    %146 = vector.broadcast %145 : vector<16x1xf32> to vector<16x32xf32>
    %147 = arith.subf %141, %146 : vector<16x32xf32>
    %148 = arith.mulf %147, %147 : vector<16x32xf32>
    %cst_44 = arith.constant dense<0.000000e+00> : vector<16xf32>
    %149 = vector.multi_reduction <add>, %148, %cst_44 [1] : vector<16x32xf32> to vector<16xf32>
    %150 = vector.shape_cast %149 : vector<16xf32> to vector<16x1xf32>
    %cst_45 = arith.constant 3.200000e+01 : f32
    %151 = vector.broadcast %cst_45 : f32 to vector<16x1xf32>
    %152 = arith.divf %150, %151 : vector<16x1xf32>
    %153 = vector.broadcast %145 : vector<16x1xf32> to vector<16x32xf32>
    %154 = arith.subf %141, %153 : vector<16x32xf32>
    %cst_46 = arith.constant 9.99999974E-6 : f32
    %155 = vector.broadcast %cst_46 : f32 to vector<16x1xf32>
    %156 = arith.addf %152, %155 : vector<16x1xf32>
    %157 = math.rsqrt %156 : vector<16x1xf32>
    %158 = vector.broadcast %157 : vector<16x1xf32> to vector<16x32xf32>
    %159 = arith.mulf %154, %158 : vector<16x32xf32>
    %160 = vector.broadcast %24 : vector<1x32xf32> to vector<16x32xf32>
    %161 = arith.mulf %159, %160 : vector<16x32xf32>
    %162 = vector.broadcast %25 : vector<1x32xf32> to vector<16x32xf32>
    %163 = arith.addf %161, %162 : vector<16x32xf32>
    %c232 = arith.constant 232 : index
    %c0_47 = arith.constant 0 : index
    %164 = vector.load %arg1[%c232, %c0_47] : memref<400x128xf32, #tpu.memory_space<vmem>>, vector<32x96xf32>
    %c296 = arith.constant 296 : index
    %c0_48 = arith.constant 0 : index
    %165 = vector.load %arg1[%c296, %c0_48] : memref<400x128xf32, #tpu.memory_space<vmem>>, vector<32x64xf32>
    %c328 = arith.constant 328 : index
    %c0_49 = arith.constant 0 : index
    %166 = vector.load %arg1[%c328, %c0_49] : memref<400x128xf32, #tpu.memory_space<vmem>>, vector<64x32xf32>
    %c392 = arith.constant 392 : index
    %c0_50 = arith.constant 0 : index
    %167 = vector.load %arg1[%c392, %c0_50] : memref<400x128xf32, #tpu.memory_space<vmem>>, vector<8x128xf32>
    %168 = vector.extract_strided_slice %167 {offsets = [0, 0], sizes = [1, 96], strides = [1, 1]} : vector<8x128xf32> to vector<1x96xf32>
    %169 = vector.extract_strided_slice %167 {offsets = [1, 0], sizes = [1, 32], strides = [1, 1]} : vector<8x128xf32> to vector<1x32xf32>
    %170 = vector.extract_strided_slice %167 {offsets = [2, 0], sizes = [1, 64], strides = [1, 1]} : vector<8x128xf32> to vector<1x64xf32>
    %171 = vector.extract_strided_slice %167 {offsets = [3, 0], sizes = [1, 32], strides = [1, 1]} : vector<8x128xf32> to vector<1x32xf32>
    %172 = vector.extract_strided_slice %167 {offsets = [4, 0], sizes = [1, 32], strides = [1, 1]} : vector<8x128xf32> to vector<1x32xf32>
    %173 = vector.extract_strided_slice %167 {offsets = [5, 0], sizes = [1, 32], strides = [1, 1]} : vector<8x128xf32> to vector<1x32xf32>
    %174 = vector.extract_strided_slice %167 {offsets = [6, 0], sizes = [1, 32], strides = [1, 1]} : vector<8x128xf32> to vector<1x32xf32>
    %175 = vector.extract_strided_slice %167 {offsets = [7, 0], sizes = [1, 32], strides = [1, 1]} : vector<8x128xf32> to vector<1x32xf32>
    %cst_51 = arith.constant dense<0.000000e+00> : vector<16x96xf32>
    %176 = tpu.matmul %163, %164, %cst_51 {dimension_numbers = #tpu.dot_dimension_numbers<[1], [0], [0], [1], [0, 0, 1, 1], [], []>} : vector<16x32xf32>, vector<32x96xf32>, vector<16x96xf32> -> vector<16x96xf32>
    %177 = vector.broadcast %168 : vector<1x96xf32> to vector<16x96xf32>
    %178 = arith.addf %176, %177 : vector<16x96xf32>
    %179 = vector.extract_strided_slice %178 {offsets = [0, 0], sizes = [16, 32], strides = [1, 1]} : vector<16x96xf32> to vector<16x32xf32>
    %180 = vector.shape_cast %179 : vector<16x32xf32> to vector<2x8x32xf32>
    %181 = vector.extract_strided_slice %178 {offsets = [0, 32], sizes = [16, 32], strides = [1, 1]} : vector<16x96xf32> to vector<16x32xf32>
    %182 = vector.shape_cast %181 : vector<16x32xf32> to vector<2x8x32xf32>
    %183 = vector.extract_strided_slice %178 {offsets = [0, 64], sizes = [16, 32], strides = [1, 1]} : vector<16x96xf32> to vector<16x32xf32>
    %184 = vector.shape_cast %183 : vector<16x32xf32> to vector<2x8x32xf32>
    %cst_52 = arith.constant 0.000000e+00 : f32
    %185 = vector.broadcast %cst_52 : f32 to vector<16x32xf32>
    %186 = vector.extract_strided_slice %180 {offsets = [0, 0, 0], sizes = [2, 8, 8], strides = [1, 1, 1]} : vector<2x8x32xf32> to vector<2x8x8xf32>
    %187 = vector.extract_strided_slice %182 {offsets = [0, 0, 0], sizes = [2, 8, 8], strides = [1, 1, 1]} : vector<2x8x32xf32> to vector<2x8x8xf32>
    %188 = vector.extract_strided_slice %184 {offsets = [0, 0, 0], sizes = [2, 8, 8], strides = [1, 1, 1]} : vector<2x8x32xf32> to vector<2x8x8xf32>
    "tpu.trace_start"() <{level = 10 : i32, message = "bsd,btd->bst"}> : () -> ()
    %cst_53 = arith.constant dense<0.000000e+00> : vector<2x8x8xf32>
    %189 = tpu.matmul %186, %187, %cst_53 {dimension_numbers = #tpu.dot_dimension_numbers<[2], [2], [1], [1], [0, 0, 0, 1, 1, 1], [0], [0]>} : vector<2x8x8xf32>, vector<2x8x8xf32>, vector<2x8x8xf32> -> vector<2x8x8xf32>
    "tpu.trace_stop"() : () -> ()
    %cst_54 = arith.constant dense<0xFF800000> : vector<2x8xf32>
    %190 = vector.multi_reduction <maximumf>, %189, %cst_54 [2] : vector<2x8x8xf32> to vector<2x8xf32>
    %191 = vector.shape_cast %190 : vector<2x8xf32> to vector<2x8x1xf32>
    %192 = vector.broadcast %191 : vector<2x8x1xf32> to vector<2x8x8xf32>
    %193 = arith.subf %189, %192 : vector<2x8x8xf32>
    %194 = math.exp %193 : vector<2x8x8xf32>
    %cst_55 = arith.constant dense<0.000000e+00> : vector<2x8xf32>
    %195 = vector.multi_reduction <add>, %194, %cst_55 [2] : vector<2x8x8xf32> to vector<2x8xf32>
    %196 = vector.shape_cast %195 : vector<2x8xf32> to vector<2x8x1xf32>
    %197 = vector.broadcast %196 : vector<2x8x1xf32> to vector<2x8x8xf32>
    %198 = arith.divf %194, %197 : vector<2x8x8xf32>
    "tpu.trace_start"() <{level = 10 : i32, message = "bst,btd->bsd"}> : () -> ()
    %cst_56 = arith.constant dense<0.000000e+00> : vector<2x8x8xf32>
    %199 = tpu.matmul %198, %188, %cst_56 {dimension_numbers = #tpu.dot_dimension_numbers<[2], [1], [1], [2], [0, 0, 0, 1, 1, 2], [0], [0]>} : vector<2x8x8xf32>, vector<2x8x8xf32>, vector<2x8x8xf32> -> vector<2x8x8xf32>
    "tpu.trace_stop"() : () -> ()
    %c264 = arith.constant 264 : index
    %c0_57 = arith.constant 0 : index
    %200 = vector.load %arg1[%c264, %c0_57] : memref<400x128xf32, #tpu.memory_space<vmem>>, vector<8x32xf32>
    %201 = vector.shape_cast %199 : vector<2x8x8xf32> to vector<16x8xf32>
    %cst_58 = arith.constant dense<0.000000e+00> : vector<16x32xf32>
    %202 = tpu.matmul %201, %200, %cst_58 {dimension_numbers = #tpu.dot_dimension_numbers<[1], [0], [0], [1], [0, 0, 1, 1], [], []>} : vector<16x8xf32>, vector<8x32xf32>, vector<16x32xf32> -> vector<16x32xf32>
    %203 = arith.addf %185, %202 : vector<16x32xf32>
    %204 = vector.extract_strided_slice %180 {offsets = [0, 0, 8], sizes = [2, 8, 8], strides = [1, 1, 1]} : vector<2x8x32xf32> to vector<2x8x8xf32>
    %205 = vector.extract_strided_slice %182 {offsets = [0, 0, 8], sizes = [2, 8, 8], strides = [1, 1, 1]} : vector<2x8x32xf32> to vector<2x8x8xf32>
    %206 = vector.extract_strided_slice %184 {offsets = [0, 0, 8], sizes = [2, 8, 8], strides = [1, 1, 1]} : vector<2x8x32xf32> to vector<2x8x8xf32>
    "tpu.trace_start"() <{level = 10 : i32, message = "bsd,btd->bst"}> : () -> ()
    %cst_59 = arith.constant dense<0.000000e+00> : vector<2x8x8xf32>
    %207 = tpu.matmul %204, %205, %cst_59 {dimension_numbers = #tpu.dot_dimension_numbers<[2], [2], [1], [1], [0, 0, 0, 1, 1, 1], [0], [0]>} : vector<2x8x8xf32>, vector<2x8x8xf32>, vector<2x8x8xf32> -> vector<2x8x8xf32>
    "tpu.trace_stop"() : () -> ()
    %cst_60 = arith.constant dense<0xFF800000> : vector<2x8xf32>
    %208 = vector.multi_reduction <maximumf>, %207, %cst_60 [2] : vector<2x8x8xf32> to vector<2x8xf32>
    %209 = vector.shape_cast %208 : vector<2x8xf32> to vector<2x8x1xf32>
    %210 = vector.broadcast %209 : vector<2x8x1xf32> to vector<2x8x8xf32>
    %211 = arith.subf %207, %210 : vector<2x8x8xf32>
    %212 = math.exp %211 : vector<2x8x8xf32>
    %cst_61 = arith.constant dense<0.000000e+00> : vector<2x8xf32>
    %213 = vector.multi_reduction <add>, %212, %cst_61 [2] : vector<2x8x8xf32> to vector<2x8xf32>
    %214 = vector.shape_cast %213 : vector<2x8xf32> to vector<2x8x1xf32>
    %215 = vector.broadcast %214 : vector<2x8x1xf32> to vector<2x8x8xf32>
    %216 = arith.divf %212, %215 : vector<2x8x8xf32>
    "tpu.trace_start"() <{level = 10 : i32, message = "bst,btd->bsd"}> : () -> ()
    %cst_62 = arith.constant dense<0.000000e+00> : vector<2x8x8xf32>
    %217 = tpu.matmul %216, %206, %cst_62 {dimension_numbers = #tpu.dot_dimension_numbers<[2], [1], [1], [2], [0, 0, 0, 1, 1, 2], [0], [0]>} : vector<2x8x8xf32>, vector<2x8x8xf32>, vector<2x8x8xf32> -> vector<2x8x8xf32>
    "tpu.trace_stop"() : () -> ()
    %c272 = arith.constant 272 : index
    %c0_63 = arith.constant 0 : index
    %218 = vector.load %arg1[%c272, %c0_63] : memref<400x128xf32, #tpu.memory_space<vmem>>, vector<8x32xf32>
    %219 = vector.shape_cast %217 : vector<2x8x8xf32> to vector<16x8xf32>
    %cst_64 = arith.constant dense<0.000000e+00> : vector<16x32xf32>
    %220 = tpu.matmul %219, %218, %cst_64 {dimension_numbers = #tpu.dot_dimension_numbers<[1], [0], [0], [1], [0, 0, 1, 1], [], []>} : vector<16x8xf32>, vector<8x32xf32>, vector<16x32xf32> -> vector<16x32xf32>
    %221 = arith.addf %203, %220 : vector<16x32xf32>
    %222 = vector.extract_strided_slice %180 {offsets = [0, 0, 16], sizes = [2, 8, 8], strides = [1, 1, 1]} : vector<2x8x32xf32> to vector<2x8x8xf32>
    %223 = vector.extract_strided_slice %182 {offsets = [0, 0, 16], sizes = [2, 8, 8], strides = [1, 1, 1]} : vector<2x8x32xf32> to vector<2x8x8xf32>
    %224 = vector.extract_strided_slice %184 {offsets = [0, 0, 16], sizes = [2, 8, 8], strides = [1, 1, 1]} : vector<2x8x32xf32> to vector<2x8x8xf32>
    "tpu.trace_start"() <{level = 10 : i32, message = "bsd,btd->bst"}> : () -> ()
    %cst_65 = arith.constant dense<0.000000e+00> : vector<2x8x8xf32>
    %225 = tpu.matmul %222, %223, %cst_65 {dimension_numbers = #tpu.dot_dimension_numbers<[2], [2], [1], [1], [0, 0, 0, 1, 1, 1], [0], [0]>} : vector<2x8x8xf32>, vector<2x8x8xf32>, vector<2x8x8xf32> -> vector<2x8x8xf32>
    "tpu.trace_stop"() : () -> ()
    %cst_66 = arith.constant dense<0xFF800000> : vector<2x8xf32>
    %226 = vector.multi_reduction <maximumf>, %225, %cst_66 [2] : vector<2x8x8xf32> to vector<2x8xf32>
    %227 = vector.shape_cast %226 : vector<2x8xf32> to vector<2x8x1xf32>
    %228 = vector.broadcast %227 : vector<2x8x1xf32> to vector<2x8x8xf32>
    %229 = arith.subf %225, %228 : vector<2x8x8xf32>
    %230 = math.exp %229 : vector<2x8x8xf32>
    %cst_67 = arith.constant dense<0.000000e+00> : vector<2x8xf32>
    %231 = vector.multi_reduction <add>, %230, %cst_67 [2] : vector<2x8x8xf32> to vector<2x8xf32>
    %232 = vector.shape_cast %231 : vector<2x8xf32> to vector<2x8x1xf32>
    %233 = vector.broadcast %232 : vector<2x8x1xf32> to vector<2x8x8xf32>
    %234 = arith.divf %230, %233 : vector<2x8x8xf32>
    "tpu.trace_start"() <{level = 10 : i32, message = "bst,btd->bsd"}> : () -> ()
    %cst_68 = arith.constant dense<0.000000e+00> : vector<2x8x8xf32>
    %235 = tpu.matmul %234, %224, %cst_68 {dimension_numbers = #tpu.dot_dimension_numbers<[2], [1], [1], [2], [0, 0, 0, 1, 1, 2], [0], [0]>} : vector<2x8x8xf32>, vector<2x8x8xf32>, vector<2x8x8xf32> -> vector<2x8x8xf32>
    "tpu.trace_stop"() : () -> ()
    %c280 = arith.constant 280 : index
    %c0_69 = arith.constant 0 : index
    %236 = vector.load %arg1[%c280, %c0_69] : memref<400x128xf32, #tpu.memory_space<vmem>>, vector<8x32xf32>
    %237 = vector.shape_cast %235 : vector<2x8x8xf32> to vector<16x8xf32>
    %cst_70 = arith.constant dense<0.000000e+00> : vector<16x32xf32>
    %238 = tpu.matmul %237, %236, %cst_70 {dimension_numbers = #tpu.dot_dimension_numbers<[1], [0], [0], [1], [0, 0, 1, 1], [], []>} : vector<16x8xf32>, vector<8x32xf32>, vector<16x32xf32> -> vector<16x32xf32>
    %239 = arith.addf %221, %238 : vector<16x32xf32>
    %240 = vector.extract_strided_slice %180 {offsets = [0, 0, 24], sizes = [2, 8, 8], strides = [1, 1, 1]} : vector<2x8x32xf32> to vector<2x8x8xf32>
    %241 = vector.extract_strided_slice %182 {offsets = [0, 0, 24], sizes = [2, 8, 8], strides = [1, 1, 1]} : vector<2x8x32xf32> to vector<2x8x8xf32>
    %242 = vector.extract_strided_slice %184 {offsets = [0, 0, 24], sizes = [2, 8, 8], strides = [1, 1, 1]} : vector<2x8x32xf32> to vector<2x8x8xf32>
    "tpu.trace_start"() <{level = 10 : i32, message = "bsd,btd->bst"}> : () -> ()
    %cst_71 = arith.constant dense<0.000000e+00> : vector<2x8x8xf32>
    %243 = tpu.matmul %240, %241, %cst_71 {dimension_numbers = #tpu.dot_dimension_numbers<[2], [2], [1], [1], [0, 0, 0, 1, 1, 1], [0], [0]>} : vector<2x8x8xf32>, vector<2x8x8xf32>, vector<2x8x8xf32> -> vector<2x8x8xf32>
    "tpu.trace_stop"() : () -> ()
    %cst_72 = arith.constant dense<0xFF800000> : vector<2x8xf32>
    %244 = vector.multi_reduction <maximumf>, %243, %cst_72 [2] : vector<2x8x8xf32> to vector<2x8xf32>
    %245 = vector.shape_cast %244 : vector<2x8xf32> to vector<2x8x1xf32>
    %246 = vector.broadcast %245 : vector<2x8x1xf32> to vector<2x8x8xf32>
    %247 = arith.subf %243, %246 : vector<2x8x8xf32>
    %248 = math.exp %247 : vector<2x8x8xf32>
    %cst_73 = arith.constant dense<0.000000e+00> : vector<2x8xf32>
    %249 = vector.multi_reduction <add>, %248, %cst_73 [2] : vector<2x8x8xf32> to vector<2x8xf32>
    %250 = vector.shape_cast %249 : vector<2x8xf32> to vector<2x8x1xf32>
    %251 = vector.broadcast %250 : vector<2x8x1xf32> to vector<2x8x8xf32>
    %252 = arith.divf %248, %251 : vector<2x8x8xf32>
    "tpu.trace_start"() <{level = 10 : i32, message = "bst,btd->bsd"}> : () -> ()
    %cst_74 = arith.constant dense<0.000000e+00> : vector<2x8x8xf32>
    %253 = tpu.matmul %252, %242, %cst_74 {dimension_numbers = #tpu.dot_dimension_numbers<[2], [1], [1], [2], [0, 0, 0, 1, 1, 2], [0], [0]>} : vector<2x8x8xf32>, vector<2x8x8xf32>, vector<2x8x8xf32> -> vector<2x8x8xf32>
    "tpu.trace_stop"() : () -> ()
    %c288 = arith.constant 288 : index
    %c0_75 = arith.constant 0 : index
    %254 = vector.load %arg1[%c288, %c0_75] : memref<400x128xf32, #tpu.memory_space<vmem>>, vector<8x32xf32>
    %255 = vector.shape_cast %253 : vector<2x8x8xf32> to vector<16x8xf32>
    %cst_76 = arith.constant dense<0.000000e+00> : vector<16x32xf32>
    %256 = tpu.matmul %255, %254, %cst_76 {dimension_numbers = #tpu.dot_dimension_numbers<[1], [0], [0], [1], [0, 0, 1, 1], [], []>} : vector<16x8xf32>, vector<8x32xf32>, vector<16x32xf32> -> vector<16x32xf32>
    %257 = arith.addf %239, %256 : vector<16x32xf32>
    %258 = arith.addf %163, %257 : vector<16x32xf32>
    %259 = vector.broadcast %169 : vector<1x32xf32> to vector<16x32xf32>
    %260 = arith.addf %258, %259 : vector<16x32xf32>
    %cst_77 = arith.constant dense<0.000000e+00> : vector<16xf32>
    %261 = vector.multi_reduction <add>, %260, %cst_77 [1] : vector<16x32xf32> to vector<16xf32>
    %262 = vector.shape_cast %261 : vector<16xf32> to vector<16x1xf32>
    %cst_78 = arith.constant 3.200000e+01 : f32
    %263 = vector.broadcast %cst_78 : f32 to vector<16x1xf32>
    %264 = arith.divf %262, %263 : vector<16x1xf32>
    %265 = vector.broadcast %264 : vector<16x1xf32> to vector<16x32xf32>
    %266 = arith.subf %260, %265 : vector<16x32xf32>
    %267 = arith.mulf %266, %266 : vector<16x32xf32>
    %cst_79 = arith.constant dense<0.000000e+00> : vector<16xf32>
    %268 = vector.multi_reduction <add>, %267, %cst_79 [1] : vector<16x32xf32> to vector<16xf32>
    %269 = vector.shape_cast %268 : vector<16xf32> to vector<16x1xf32>
    %cst_80 = arith.constant 3.200000e+01 : f32
    %270 = vector.broadcast %cst_80 : f32 to vector<16x1xf32>
    %271 = arith.divf %269, %270 : vector<16x1xf32>
    %272 = vector.broadcast %264 : vector<16x1xf32> to vector<16x32xf32>
    %273 = arith.subf %260, %272 : vector<16x32xf32>
    %cst_81 = arith.constant 9.99999974E-6 : f32
    %274 = vector.broadcast %cst_81 : f32 to vector<16x1xf32>
    %275 = arith.addf %271, %274 : vector<16x1xf32>
    %276 = math.rsqrt %275 : vector<16x1xf32>
    %277 = vector.broadcast %276 : vector<16x1xf32> to vector<16x32xf32>
    %278 = arith.mulf %273, %277 : vector<16x32xf32>
    %279 = vector.broadcast %172 : vector<1x32xf32> to vector<16x32xf32>
    %280 = arith.mulf %278, %279 : vector<16x32xf32>
    %281 = vector.broadcast %173 : vector<1x32xf32> to vector<16x32xf32>
    %282 = arith.addf %280, %281 : vector<16x32xf32>
    %cst_82 = arith.constant dense<0.000000e+00> : vector<16x64xf32>
    %283 = tpu.matmul %282, %165, %cst_82 {dimension_numbers = #tpu.dot_dimension_numbers<[1], [0], [0], [1], [0, 0, 1, 1], [], []>} : vector<16x32xf32>, vector<32x64xf32>, vector<16x64xf32> -> vector<16x64xf32>
    %284 = vector.broadcast %170 : vector<1x64xf32> to vector<16x64xf32>
    %285 = arith.addf %283, %284 : vector<16x64xf32>
    %cst_83 = arith.constant 0.000000e+00 : f32
    %286 = vector.broadcast %cst_83 : f32 to vector<16x64xf32>
    %287 = arith.maximumf %285, %286 : vector<16x64xf32>
    %cst_84 = arith.constant dense<0.000000e+00> : vector<16x32xf32>
    %288 = tpu.matmul %287, %166, %cst_84 {dimension_numbers = #tpu.dot_dimension_numbers<[1], [0], [0], [1], [0, 0, 1, 1], [], []>} : vector<16x64xf32>, vector<64x32xf32>, vector<16x32xf32> -> vector<16x32xf32>
    %289 = vector.broadcast %171 : vector<1x32xf32> to vector<16x32xf32>
    %290 = arith.addf %288, %289 : vector<16x32xf32>
    %291 = arith.addf %282, %290 : vector<16x32xf32>
    %cst_85 = arith.constant dense<0.000000e+00> : vector<16xf32>
    %292 = vector.multi_reduction <add>, %291, %cst_85 [1] : vector<16x32xf32> to vector<16xf32>
    %293 = vector.shape_cast %292 : vector<16xf32> to vector<16x1xf32>
    %cst_86 = arith.constant 3.200000e+01 : f32
    %294 = vector.broadcast %cst_86 : f32 to vector<16x1xf32>
    %295 = arith.divf %293, %294 : vector<16x1xf32>
    %296 = vector.broadcast %295 : vector<16x1xf32> to vector<16x32xf32>
    %297 = arith.subf %291, %296 : vector<16x32xf32>
    %298 = arith.mulf %297, %297 : vector<16x32xf32>
    %cst_87 = arith.constant dense<0.000000e+00> : vector<16xf32>
    %299 = vector.multi_reduction <add>, %298, %cst_87 [1] : vector<16x32xf32> to vector<16xf32>
    %300 = vector.shape_cast %299 : vector<16xf32> to vector<16x1xf32>
    %cst_88 = arith.constant 3.200000e+01 : f32
    %301 = vector.broadcast %cst_88 : f32 to vector<16x1xf32>
    %302 = arith.divf %300, %301 : vector<16x1xf32>
    %303 = vector.broadcast %295 : vector<16x1xf32> to vector<16x32xf32>
    %304 = arith.subf %291, %303 : vector<16x32xf32>
    %cst_89 = arith.constant 9.99999974E-6 : f32
    %305 = vector.broadcast %cst_89 : f32 to vector<16x1xf32>
    %306 = arith.addf %302, %305 : vector<16x1xf32>
    %307 = math.rsqrt %306 : vector<16x1xf32>
    %308 = vector.broadcast %307 : vector<16x1xf32> to vector<16x32xf32>
    %309 = arith.mulf %304, %308 : vector<16x32xf32>
    %310 = vector.broadcast %174 : vector<1x32xf32> to vector<16x32xf32>
    %311 = arith.mulf %309, %310 : vector<16x32xf32>
    %312 = vector.broadcast %175 : vector<1x32xf32> to vector<16x32xf32>
    %313 = arith.addf %311, %312 : vector<16x32xf32>
    %314 = vector.extract_strided_slice %313 {offsets = [0, 0], sizes = [8, 32], strides = [1, 1]} : vector<16x32xf32> to vector<8x32xf32>
    %315 = vector.extract_strided_slice %313 {offsets = [8, 0], sizes = [8, 32], strides = [1, 1]} : vector<16x32xf32> to vector<8x32xf32>
    %316 = tpu.concatenate %314, %315 in 1 : vector<8x32xf32>, vector<8x32xf32> -> vector<8x64xf32>
    %c0_90 = arith.constant 0 : index
    %c0_91 = arith.constant 0 : index
    %317 = vector.load %arg2[%c0_90, %c0_91] : memref<8x64xf32, #tpu.memory_space<vmem>>, vector<8x64xf32>
    tpu.vector_store %arg2[%c0_90, %c0_91], %316 {strides = array<i32>} : memref<8x64xf32, #tpu.memory_space<vmem>>, vector<8x64xf32>,
    return
  }
}

</mosaic_0001>

<llo_original>
// kernel: encoder_forward.1
$region0: #{encoder_forward.1}
  #allocation0 [shape = 'u32[]', space=smem, size = 0x4, offset = 0x4, fixed_abs, tag = 'smem constant byte address 0x4 - core index']
  #allocation1 [shape = 'u32[144,128]{1,0:T(1,128)}', space=vmem, size = 0x12000, scoped, tag = 'internal scratch']
  %s0 = inlined_call_operand.vmem [shape: s32[8,2], index: 0, kind: input, shape index: {}]
  %s1 = inlined_call_operand.hbm [shape: f32[400,128], index: 1, kind: input, shape index: {}]
  %s2 = inlined_call_operand.vmem [shape: f32[8,64], index: 2, kind: output, shape index: {}]
  %s3 = sld [smem:[#allocation0]]
  $region22: #{encoder_forward.1} parent=0
    _
  %s5 = ssub.s32 1, %s3
  %s6 = scalar_select 0, %s5, %s3
  $region1: #{encoder_forward.1} parent=0
    #allocation2 [shape = 'u8[204800]{0}', space=vmem, size = 0x32000, scoped, tag = 'input window, operand 1, single buffered']
    #allocation3 [shape = 's32[1]{0}', space=sflag, size = 0x4, scoped, tag = 'scoped memory for encoder_forward.1']
    %7 = vsyncpa [#allocation3], 0
    // Predicated region
    $region2: #{encoder_forward.1} parent=1 // pred_check
      _
    $region3: #{encoder_forward.1} parent=1 // pred_check_branch
      %9 = sbr.rel (0) target = $region5
    $region4: #{encoder_forward.1} parent=1 // pred_region
      _
    $region5: #{encoder_forward.1} parent=1 // pred_fallthru
      _
    // Predicated region
    $region6: #{encoder_forward.1} parent=1 // pred_check
      _
    $region7: #{encoder_forward.1} parent=1 // pred_check_branch
      %11 = sbr.rel (0) target = $region9
    $region8: #{encoder_forward.1} parent=1 // pred_region
      %s13 = ssub.s32 6400, 6400
      %14 = vsyncadd [#allocation3], %s13
      %s15 = sshll.u32 [#allocation2], 4
      %s16 = int_to_ptr.vmem [resolvable:$true] %s15
      %21 = dma.hbm_to_vmem [thread:$0]  %s1, 6400, %s16, [#allocation3], 128, 128, 8
    $region9: #{encoder_forward.1} parent=1 // pred_fallthru
      _
    // Predicated region
    $region10: #{encoder_forward.1} parent=1 // pred_check
      _
    $region11: #{encoder_forward.1} parent=1 // pred_check_branch
      %23 = sbr.rel (0) target = $region13
    $region12: #{encoder_forward.1} parent=1 // pred_region
      %24 = dma.done [#allocation3], 6400
    $region13: #{encoder_forward.1} parent=1 // pred_fallthru
      _
    %v25 = vld [vmem:[#allocation2] sm:$0xff]
    %v26 = vld [vmem:[#allocation2 + $0x8] sm:$0xff]
    %v27 = vld [vmem:[#allocation2 + $0x10] sm:$0xff]
    %v28 = vld [vmem:[#allocation2 + $0x18] sm:$0xff]
    %v29 = vld [vmem:[#allocation2 + $0x20] sm:$0xff]
    %v30 = vld [vmem:[#allocation2 + $0x28] sm:$0xff]
    %v31 = vld [vmem:[#allocation2 + $0x30] sm:$0xff]
    %v32 = vld [vmem:[#allocation2 + $0x38] sm:$0xff]
    %v33 = vlaneseq
    %v34 = vand.u32 %v33, 127
    %v35 = vld [vmem:[%s0] sm:$0xff]
    %36 = vset.pattern.permute.xlu0 0
    %37 = vperm.xlu0 %36, %v35
    %v38 = vpop.permute.xlu0 %37
    %vm39 = vcmp.eq.s32.totalorder %v38, %v34
    %v40 = vsel %vm39, 1, 0
    %v41 = vcvt.s32.f32 %v40
    %42 = vset.pattern.permute.xlu0 1
    %43 = vperm.xlu0 %42, %v35
    %v44 = vpop.permute.xlu0 %43
    %vm45 = vcmp.eq.s32.totalorder %v44, %v34
    %v46 = vsel %vm45, 1, 0
    %v47 = vcvt.s32.f32 %v46
    %vm48 = vcmask 523264
    %v50 = vsel %vm48, %v41, 0
    %v53 = vsel %vm48, %v47, 0
    %55 = vmatprep.subr.mxu0 0.0
    %56 = vmatpush1.msra.mxu0 %v25
    %57 = vmatprep.subr.mxu0 0.0
    %58 = vmatpush1.msra.mxu0 %v26
    %59 = vmatprep.subr.mxu0 0.0
    %60 = vmatpush1.msra.mxu0 %v27
    %61 = vmatprep.subr.mxu0 0.0
    %62 = vmatpush1.msra.mxu0 %v28
    %63 = vmatprep.subr.mxu0 0.0
    %64 = vmatpush1.msra.mxu0 %v29
    %65 = vmatprep.subr.mxu0 0.0
    %66 = vmatpush1.msra.mxu0 %v30
    %67 = vmatprep.subr.mxu0 0.0
    %68 = vmatpush1.msra.mxu0 %v31
    %69 = vmatprep.subr.mxu0 0.0
    %70 = vmatpush1.msra.mxu0 %v32
    %71 = vmatprep.subr.mxu0 0.0
    %72 = vmatpush1.msra.mxu0 0.0
    %73 = vmatprep.subr.mxu0 0.0
    %74 = vmatpush1.msra.mxu0 0.0
    %75 = vmatprep.subr.mxu0 0.0
    %76 = vmatpush1.msra.mxu0 0.0
    %77 = vmatprep.subr.mxu0 0.0
    %78 = vmatpush1.msra.mxu0 0.0
    %79 = vmatprep.subr.mxu0 0.0
    %80 = vmatpush1.msra.mxu0 0.0
    %81 = vmatprep.subr.mxu0 0.0
    %82 = vmatpush1.msra.mxu0 0.0
    %83 = vmatprep.subr.mxu0 0.0
    %84 = vmatpush1.msra.mxu0 0.0
    %85 = vmatprep.subr.mxu0 0.0
    %86 = vmatpush1.msra.mxu0 0.0
    %87 = vmatprep.subr.mxu0 0.0
    %88 = vmatpush1.msra.mxu0 0.0
    %89 = vmatprep.subr.mxu0 0.0
    %90 = vmatpush1.msra.mxu0 0.0
    %91 = vmatprep.subr.mxu0 0.0
    %92 = vmatpush1.msra.mxu0 0.0
    %93 = vmatprep.subr.mxu0 0.0
    %94 = vmatpush1.msra.mxu0 0.0
    %95 = vmatprep.subr.mxu0 0.0
    %96 = vmatpush1.msra.mxu0 0.0
    %97 = vmatprep.subr.mxu0 0.0
    %98 = vmatpush1.msra.mxu0 0.0
    %99 = vmatprep.subr.mxu0 0.0
    %100 = vmatpush1.msra.mxu0 0.0
    %101 = vmatprep.subr.mxu0 0.0
    %102 = vmatpush1.msra.mxu0 0.0
    %103 = vmatprep.subr.mxu0 0.0
    %104 = vmatpush1.msra.mxu0 0.0
    %105 = vmatprep.subr.mxu0 0.0
    %106 = vmatpush1.msra.mxu0 0.0
    %107 = vmatprep.subr.mxu0 0.0
    %108 = vmatpush1.msra.mxu0 0.0
    %109 = vmatprep.subr.mxu0 0.0
    %110 = vmatpush1.msra.mxu0 0.0
    %111 = vmatprep.subr.mxu0 0.0
    %112 = vmatpush1.msra.mxu0 0.0
    %113 = vmatprep.subr.mxu0 0.0
    %114 = vmatpush1.msra.mxu0 0.0
    %115 = vmatprep.subr.mxu0 0.0
    %116 = vmatpush1.msra.mxu0 0.0
    %117 = vmatprep.subr.mxu0 0.0
    %118 = vmatpush1.msra.mxu0 0.0
    %119 = vmatprep.mubr.f32.mxu0 0.0
    %120 = vmatmul.mubr.f32.gmra.mrb[0].mxu0 %v50
    %v121 = vpop.f32.mrb[0].mxu0
    %v122 = vadd.f32 0.0, %v121
    %v123 = vpop.f32.mrb[0].mxu0
    %124 = vmatprep.mubr.f32.mxu0 0.0
    %125 = vmatmul.mubr.f32.gmra.mrb[0].mxu0 %v53
    %v126 = vpop.f32.mrb[0].mxu0
    %v127 = vadd.f32 0.0, %v126
    %v128 = vpop.f32.mrb[0].mxu0
    %129 = vdwg.mxu0
    %v130 = vld [vmem:[#allocation2 + $0x40] sm:$0xff]
    %v131 = vld [vmem:[#allocation2 + $0x48] sm:$0xff]
    %v132 = vld [vmem:[#allocation2 + $0x50] sm:$0xff]
    %v133 = vld [vmem:[#allocation2 + $0x58] sm:$0xff]
    %v134 = vld [vmem:[#allocation2 + $0x80] sm:$0xff]
    %v135 = vld [vmem:[#allocation2 + $0x88] sm:$0xff]
    %v136 = vld [vmem:[#allocation2 + $0x90] sm:$0xff]
    %v137 = vld [vmem:[#allocation2 + $0x98] sm:$0xff]
    %v138 = vld [vmem:[#allocation2 + $0xa0] sm:$0xff]
    %v139 = vld [vmem:[#allocation2 + $0xa8] sm:$0xff]
    %v140 = vld [vmem:[#allocation2 + $0xb0] sm:$0xff]
    %v141 = vld [vmem:[#allocation2 + $0xb8] sm:$0xff]
    %v142 = vld [vmem:[#allocation2 + $0xc0] sm:$0xff]
    %v143 = vld [vmem:[#allocation2 + $0xc8] sm:$0xff]
    %v144 = vld [vmem:[#allocation2 + $0xd0] sm:$0xff]
    %v145 = vld [vmem:[#allocation2 + $0xd8] sm:$0xff]
    %v146 = vld [vmem:[#allocation2 + $0xe0] sm:$0xff]
    %v147 = vlaneseq
    %v148 = vshrl.u32 %v147, 7
    %v149 = vsub.s32 0, %v148
    %v150 = vrot.slane %v146, %v149
    %vm151 = vcmask 261120
    %v153 = vsel %vm151, %v122, 0
    %v156 = vsel %vm151, %v127, 0
    %158 = vmatprep.subr.mxu0 0.0
    %159 = vmatpush1.msra.mxu0 %v130
    %160 = vmatprep.subr.mxu0 0.0
    %161 = vmatpush1.msra.mxu0 %v131
    %162 = vmatprep.subr.mxu0 0.0
    %163 = vmatpush1.msra.mxu0 %v132
    %164 = vmatprep.subr.mxu0 0.0
    %165 = vmatpush1.msra.mxu0 %v133
    %166 = vmatprep.subr.mxu0 0.0
    %167 = vmatpush1.msra.mxu0 0.0
    %168 = vmatprep.subr.mxu0 0.0
    %169 = vmatpush1.msra.mxu0 0.0
    %170 = vmatprep.subr.mxu0 0.0
    %171 = vmatpush1.msra.mxu0 0.0
    %172 = vmatprep.subr.mxu0 0.0
    %173 = vmatpush1.msra.mxu0 0.0
    %174 = vmatprep.subr.mxu0 0.0
    %175 = vmatpush1.msra.mxu0 0.0
    %176 = vmatprep.subr.mxu0 0.0
    %177 = vmatpush1.msra.mxu0 0.0
    %178 = vmatprep.subr.mxu0 0.0
    %179 = vmatpush1.msra.mxu0 0.0
    %180 = vmatprep.subr.mxu0 0.0
    %181 = vmatpush1.msra.mxu0 0.0
    %182 = vmatprep.subr.mxu0 0.0
    %183 = vmatpush1.msra.mxu0 0.0
    %184 = vmatprep.subr.mxu0 0.0
    %185 = vmatpush1.msra.mxu0 0.0
    %186 = vmatprep.subr.mxu0 0.0
    %187 = vmatpush1.msra.mxu0 0.0
    %188 = vmatprep.subr.mxu0 0.0
    %189 = vmatpush1.msra.mxu0 0.0
    %190 = vmatprep.subr.mxu0 0.0
    %191 = vmatpush1.msra.mxu0 0.0
    %192 = vmatprep.subr.mxu0 0.0
    %193 = vmatpush1.msra.mxu0 0.0
    %194 = vmatprep.subr.mxu0 0.0
    %195 = vmatpush1.msra.mxu0 0.0
    %196 = vmatprep.subr.mxu0 0.0
    %197 = vmatpush1.msra.mxu0 0.0
    %198 = vmatprep.subr.mxu0 0.0
    %199 = vmatpush1.msra.mxu0 0.0
    %200 = vmatprep.subr.mxu0 0.0
    %201 = vmatpush1.msra.mxu0 0.0
    %202 = vmatprep.subr.mxu0 0.0
    %203 = vmatpush1.msra.mxu0 0.0
    %204 = vmatprep.subr.mxu0 0.0
    %205 = vmatpush1.msra.mxu0 0.0
    %206 = vmatprep.subr.mxu0 0.0
    %207 = vmatpush1.msra.mxu0 0.0
    %208 = vmatprep.subr.mxu0 0.0
    %209 = vmatpush1.msra.mxu0 0.0
    %210 = vmatprep.subr.mxu0 0.0
    %211 = vmatpush1.msra.mxu0 0.0
    %212 = vmatprep.subr.mxu0 0.0
    %213 = vmatpush1.msra.mxu0 0.0
    %214 = vmatprep.subr.mxu0 0.0
    %215 = vmatpush1.msra.mxu0 0.0
    %216 = vmatprep.subr.mxu0 0.0
    %217 = vmatpush1.msra.mxu0 0.0
    %218 = vmatprep.subr.mxu0 0.0
    %219 = vmatpush1.msra.mxu0 0.0
    %220 = vmatprep.subr.mxu0 0.0
    %221 = vmatpush1.msra.mxu0 0.0
    %222 = vmatprep.mubr.f32.mxu0 0.0
    %223 = vmatmul.mubr.f32.gmra.mrb[0].mxu0 %v153
    %v224 = vpop.f32.mrb[0].mxu0
    %v225 = vadd.f32 %v150, %v224
    %v226 = vpop.f32.mrb[0].mxu0
    %227 = vmatprep.mubr.f32.mxu0 0.0
    %228 = vmatmul.mubr.f32.gmra.mrb[0].mxu0 %v156
    %v229 = vpop.f32.mrb[0].mxu0
    %v230 = vadd.f32 %v150, %v229
    %v231 = vpop.f32.mrb[0].mxu0
    %232 = vdwg.mxu0
    %234 = vrot.lane.b32.xlu0 %v225, 96
    %v235 = vpop.permute.xlu0 %234
    %vm236 = vcmask 64512
    %v237 = vsel %vm236, %v225, 0
    %v239 = vsel %vm236, %v235, 0
    %241 = vmatprep.subr.mxu0 0.0
    %242 = vmatpush1.xpose.msra.mxu0 %v239
    %243 = vmatprep.subr.mxu0 0.0
    %244 = vmatpush1.xpose.msra.mxu0 0.0
    %245 = vmatprep.subr.mxu0 0.0
    %246 = vmatpush1.xpose.msra.mxu0 0.0
    %247 = vmatprep.subr.mxu0 0.0
    %248 = vmatpush1.xpose.msra.mxu0 0.0
    %249 = vmatprep.subr.mxu0 0.0
    %250 = vmatpush1.xpose.msra.mxu0 0.0
    %251 = vmatprep.subr.mxu0 0.0
    %252 = vmatpush1.xpose.msra.mxu0 0.0
    %253 = vmatprep.subr.mxu0 0.0
    %254 = vmatpush1.xpose.msra.mxu0 0.0
    %255 = vmatprep.subr.mxu0 0.0
    %256 = vmatpush1.xpose.msra.mxu0 0.0
    %257 = vmatprep.subr.mxu0 0.0
    %258 = vmatpush1.xpose.msra.mxu0 0.0
    %259 = vmatprep.subr.mxu0 0.0
    %260 = vmatpush1.xpose.msra.mxu0 0.0
    %261 = vmatprep.subr.mxu0 0.0
    %262 = vmatpush1.xpose.msra.mxu0 0.0
    %263 = vmatprep.subr.mxu0 0.0
    %264 = vmatpush1.xpose.msra.mxu0 0.0
    %265 = vmatprep.subr.mxu0 0.0
    %266 = vmatpush1.xpose.msra.mxu0 0.0
    %267 = vmatprep.subr.mxu0 0.0
    %268 = vmatpush1.xpose.msra.mxu0 0.0
    %269 = vmatprep.subr.mxu0 0.0
    %270 = vmatpush1.xpose.msra.mxu0 0.0
    %271 = vmatprep.subr.mxu0 0.0
    %272 = vmatpush1.xpose.msra.mxu0 0.0
    %273 = vmatprep.subr.mxu0 0.0
    %274 = vmatpush1.xpose.msra.mxu0 0.0
    %275 = vmatprep.subr.mxu0 0.0
    %276 = vmatpush1.xpose.msra.mxu0 0.0
    %277 = vmatprep.subr.mxu0 0.0
    %278 = vmatpush1.xpose.msra.mxu0 0.0
    %279 = vmatprep.subr.mxu0 0.0
    %280 = vmatpush1.xpose.msra.mxu0 0.0
    %281 = vmatprep.subr.mxu0 0.0
    %282 = vmatpush1.xpose.msra.mxu0 0.0
    %283 = vmatprep.subr.mxu0 0.0
    %284 = vmatpush1.xpose.msra.mxu0 0.0
    %285 = vmatprep.subr.mxu0 0.0
    %286 = vmatpush1.xpose.msra.mxu0 0.0
    %287 = vmatprep.subr.mxu0 0.0
    %288 = vmatpush1.xpose.msra.mxu0 0.0
    %289 = vmatprep.subr.mxu0 0.0
    %290 = vmatpush1.xpose.msra.mxu0 0.0
    %291 = vmatprep.subr.mxu0 0.0
    %292 = vmatpush1.xpose.msra.mxu0 0.0
    %293 = vmatprep.subr.mxu0 0.0
    %294 = vmatpush1.xpose.msra.mxu0 0.0
    %295 = vmatprep.subr.mxu0 0.0
    %296 = vmatpush1.xpose.msra.mxu0 0.0
    %297 = vmatprep.subr.mxu0 0.0
    %298 = vmatpush1.xpose.msra.mxu0 0.0
    %299 = vmatprep.subr.mxu0 0.0
    %300 = vmatpush1.xpose.msra.mxu0 0.0
    %301 = vmatprep.subr.mxu0 0.0
    %302 = vmatpush1.xpose.msra.mxu0 0.0
    %303 = vmatprep.subr.mxu0 0.0
    %304 = vmatpush1.xpose.msra.mxu0 0.0
    %305 = vmatprep.mubr.f32.mxu0 0.0
    %306 = vmatmul.mubr.f32.gmra.mrb[0].mxu0 %v237
    %v307 = vpop.f32.mrb[0].mxu0
    %v308 = vadd.f32 0.0, %v307
    %v309 = vpop.f32.mrb[0].mxu0
    %310 = vdwg.mxu0
    %312 = vrot.lane.b32.xlu0 %v230, 96
    %v313 = vpop.permute.xlu0 %312
    %v314 = vsel %vm236, %v230, 0
    %v316 = vsel %vm236, %v313, 0
    %318 = vmatprep.subr.mxu0 0.0
    %319 = vmatpush1.xpose.msra.mxu0 %v316
    %320 = vmatprep.subr.mxu0 0.0
    %321 = vmatpush1.xpose.msra.mxu0 0.0
    %322 = vmatprep.subr.mxu0 0.0
    %323 = vmatpush1.xpose.msra.mxu0 0.0
    %324 = vmatprep.subr.mxu0 0.0
    %325 = vmatpush1.xpose.msra.mxu0 0.0
    %326 = vmatprep.subr.mxu0 0.0
    %327 = vmatpush1.xpose.msra.mxu0 0.0
    %328 = vmatprep.subr.mxu0 0.0
    %329 = vmatpush1.xpose.msra.mxu0 0.0
    %330 = vmatprep.subr.mxu0 0.0
    %331 = vmatpush1.xpose.msra.mxu0 0.0
    %332 = vmatprep.subr.mxu0 0.0
    %333 = vmatpush1.xpose.msra.mxu0 0.0
    %334 = vmatprep.subr.mxu0 0.0
    %335 = vmatpush1.xpose.msra.mxu0 0.0
    %336 = vmatprep.subr.mxu0 0.0
    %337 = vmatpush1.xpose.msra.mxu0 0.0
    %338 = vmatprep.subr.mxu0 0.0
    %339 = vmatpush1.xpose.msra.mxu0 0.0
    %340 = vmatprep.subr.mxu0 0.0
    %341 = vmatpush1.xpose.msra.mxu0 0.0
    %342 = vmatprep.subr.mxu0 0.0
    %343 = vmatpush1.xpose.msra.mxu0 0.0
    %344 = vmatprep.subr.mxu0 0.0
    %345 = vmatpush1.xpose.msra.mxu0 0.0
    %346 = vmatprep.subr.mxu0 0.0
    %347 = vmatpush1.xpose.msra.mxu0 0.0
    %348 = vmatprep.subr.mxu0 0.0
    %349 = vmatpush1.xpose.msra.mxu0 0.0
    %350 = vmatprep.subr.mxu0 0.0
    %351 = vmatpush1.xpose.msra.mxu0 0.0
    %352 = vmatprep.subr.mxu0 0.0
    %353 = vmatpush1.xpose.msra.mxu0 0.0
    %354 = vmatprep.subr.mxu0 0.0
    %355 = vmatpush1.xpose.msra.mxu0 0.0
    %356 = vmatprep.subr.mxu0 0.0
    %357 = vmatpush1.xpose.msra.mxu0 0.0
    %358 = vmatprep.subr.mxu0 0.0
    %359 = vmatpush1.xpose.msra.mxu0 0.0
    %360 = vmatprep.subr.mxu0 0.0
    %361 = vmatpush1.xpose.msra.mxu0 0.0
    %362 = vmatprep.subr.mxu0 0.0
    %363 = vmatpush1.xpose.msra.mxu0 0.0
    %364 = vmatprep.subr.mxu0 0.0
    %365 = vmatpush1.xpose.msra.mxu0 0.0
    %366 = vmatprep.subr.mxu0 0.0
    %367 = vmatpush1.xpose.msra.mxu0 0.0
    %368 = vmatprep.subr.mxu0 0.0
    %369 = vmatpush1.xpose.msra.mxu0 0.0
    %370 = vmatprep.subr.mxu0 0.0
    %371 = vmatpush1.xpose.msra.mxu0 0.0
    %372 = vmatprep.subr.mxu0 0.0
    %373 = vmatpush1.xpose.msra.mxu0 0.0
    %374 = vmatprep.subr.mxu0 0.0
    %375 = vmatpush1.xpose.msra.mxu0 0.0
    %376 = vmatprep.subr.mxu0 0.0
    %377 = vmatpush1.xpose.msra.mxu0 0.0
    %378 = vmatprep.subr.mxu0 0.0
    %379 = vmatpush1.xpose.msra.mxu0 0.0
    %380 = vmatprep.subr.mxu0 0.0
    %381 = vmatpush1.xpose.msra.mxu0 0.0
    %382 = vmatprep.mubr.f32.mxu0 0.0
    %383 = vmatmul.mubr.f32.gmra.mrb[0].mxu0 %v314
    %v384 = vpop.f32.mrb[0].mxu0
    %v385 = vadd.f32 0.0, %v384
    %v386 = vpop.f32.mrb[0].mxu0
    %387 = vdwg.mxu0
    %v388 = vsel %vm236, %v308, -inf
    %389 = vmax.xlane.f32.xlu0 %v388
    %v390 = vpop.xlane.xlu0 %389
    %v391 = vsel %vm236, %v385, -inf
    %392 = vmax.xlane.f32.xlu0 %v391
    %v393 = vpop.xlane.xlu0 %392
    %v394 = vsub.f32 %v308, %v390
    %v395 = vsub.f32 %v385, %v393
    %v396 = vmul.f32 %v394, 1.442695
    %v397 = vpow.pop %v396
    %v398 = vmul.f32 %v395, 1.442695
    %v399 = vpow.pop %v398
    %v400 = vsel %vm236, %v397, 0.0
    %401 = vadd.xlane.f32.xlu0 %v400
    %v402 = vpop.xlane.xlu0 %401
    %v403 = vsel %vm236, %v399, 0.0
    %404 = vadd.xlane.f32.xlu0 %v403
    %v405 = vpop.xlane.xlu0 %404
    %v406 = vrcp.pop %v402
    %v407 = vmul.f32 %v397, %v406
    %v408 = vrcp.pop %v405
    %v409 = vmul.f32 %v399, %v408
    %410 = vrot.lane.b32.xlu0 %v225, 64
    %v411 = vpop.permute.xlu0 %410
    %v414 = vsel %vm236, %v407, 0
    %416 = vmatprep.subr.mxu0 0.0
    %417 = vmatpush1.msra.mxu0 %v411
    %418 = vmatprep.subr.mxu0 0.0
    %419 = vmatpush1.msra.mxu0 0.0
    %420 = vmatprep.subr.mxu0 0.0
    %421 = vmatpush1.msra.mxu0 0.0
    %422 = vmatprep.subr.mxu0 0.0
    %423 = vmatpush1.msra.mxu0 0.0
    %424 = vmatprep.subr.mxu0 0.0
    %425 = vmatpush1.msra.mxu0 0.0
    %426 = vmatprep.subr.mxu0 0.0
    %427 = vmatpush1.msra.mxu0 0.0
    %428 = vmatprep.subr.mxu0 0.0
    %429 = vmatpush1.msra.mxu0 0.0
    %430 = vmatprep.subr.mxu0 0.0
    %431 = vmatpush1.msra.mxu0 0.0
    %432 = vmatprep.subr.mxu0 0.0
    %433 = vmatpush1.msra.mxu0 0.0
    %434 = vmatprep.subr.mxu0 0.0
    %435 = vmatpush1.msra.mxu0 0.0
    %436 = vmatprep.subr.mxu0 0.0
    %437 = vmatpush1.msra.mxu0 0.0
    %438 = vmatprep.subr.mxu0 0.0
    %439 = vmatpush1.msra.mxu0 0.0
    %440 = vmatprep.subr.mxu0 0.0
    %441 = vmatpush1.msra.mxu0 0.0
    %442 = vmatprep.subr.mxu0 0.0
    %443 = vmatpush1.msra.mxu0 0.0
    %444 = vmatprep.subr.mxu0 0.0
    %445 = vmatpush1.msra.mxu0 0.0
    %446 = vmatprep.subr.mxu0 0.0
    %447 = vmatpush1.msra.mxu0 0.0
    %448 = vmatprep.subr.mxu0 0.0
    %449 = vmatpush1.msra.mxu0 0.0
    %450 = vmatprep.subr.mxu0 0.0
    %451 = vmatpush1.msra.mxu0 0.0
    %452 = vmatprep.subr.mxu0 0.0
    %453 = vmatpush1.msra.mxu0 0.0
    %454 = vmatprep.subr.mxu0 0.0
    %455 = vmatpush1.msra.mxu0 0.0
    %456 = vmatprep.subr.mxu0 0.0
    %457 = vmatpush1.msra.mxu0 0.0
    %458 = vmatprep.subr.mxu0 0.0
    %459 = vmatpush1.msra.mxu0 0.0
    %460 = vmatprep.subr.mxu0 0.0
    %461 = vmatpush1.msra.mxu0 0.0
    %462 = vmatprep.subr.mxu0 0.0
    %463 = vmatpush1.msra.mxu0 0.0
    %464 = vmatprep.subr.mxu0 0.0
    %465 = vmatpush1.msra.mxu0 0.0
    %466 = vmatprep.subr.mxu0 0.0
    %467 = vmatpush1.msra.mxu0 0.0
    %468 = vmatprep.subr.mxu0 0.0
    %469 = vmatpush1.msra.mxu0 0.0
    %470 = vmatprep.subr.mxu0 0.0
    %471 = vmatpush1.msra.mxu0 0.0
    %472 = vmatprep.subr.mxu0 0.0
    %473 = vmatpush1.msra.mxu0 0.0
    %474 = vmatprep.subr.mxu0 0.0
    %475 = vmatpush1.msra.mxu0 0.0
    %476 = vmatprep.subr.mxu0 0.0
    %477 = vmatpush1.msra.mxu0 0.0
    %478 = vmatprep.subr.mxu0 0.0
    %479 = vmatpush1.msra.mxu0 0.0
    %480 = vmatprep.mubr.f32.mxu0 0.0
    %481 = vmatmul.mubr.f32.gmra.mrb[0].mxu0 %v414
    %v482 = vpop.f32.mrb[0].mxu0
    %v483 = vadd.f32 0.0, %v482
    %v484 = vpop.f32.mrb[0].mxu0
    %485 = vdwg.mxu0
    %486 = vrot.lane.b32.xlu0 %v230, 64
    %v487 = vpop.permute.xlu0 %486
    %v490 = vsel %vm236, %v409, 0
    %492 = vmatprep.subr.mxu0 0.0
    %493 = vmatpush1.msra.mxu0 %v487
    %494 = vmatprep.subr.mxu0 0.0
    %495 = vmatpush1.msra.mxu0 0.0
    %496 = vmatprep.subr.mxu0 0.0
    %497 = vmatpush1.msra.mxu0 0.0
    %498 = vmatprep.subr.mxu0 0.0
    %499 = vmatpush1.msra.mxu0 0.0
    %500 = vmatprep.subr.mxu0 0.0
    %501 = vmatpush1.msra.mxu0 0.0
    %502 = vmatprep.subr.mxu0 0.0
    %503 = vmatpush1.msra.mxu0 0.0
    %504 = vmatprep.subr.mxu0 0.0
    %505 = vmatpush1.msra.mxu0 0.0
    %506 = vmatprep.subr.mxu0 0.0
    %507 = vmatpush1.msra.mxu0 0.0
    %508 = vmatprep.subr.mxu0 0.0
    %509 = vmatpush1.msra.mxu0 0.0
    %510 = vmatprep.subr.mxu0 0.0
    %511 = vmatpush1.msra.mxu0 0.0
    %512 = vmatprep.subr.mxu0 0.0
    %513 = vmatpush1.msra.mxu0 0.0
    %514 = vmatprep.subr.mxu0 0.0
    %515 = vmatpush1.msra.mxu0 0.0
    %516 = vmatprep.subr.mxu0 0.0
    %517 = vmatpush1.msra.mxu0 0.0
    %518 = vmatprep.subr.mxu0 0.0
    %519 = vmatpush1.msra.mxu0 0.0
    %520 = vmatprep.subr.mxu0 0.0
    %521 = vmatpush1.msra.mxu0 0.0
    %522 = vmatprep.subr.mxu0 0.0
    %523 = vmatpush1.msra.mxu0 0.0
    %524 = vmatprep.subr.mxu0 0.0
    %525 = vmatpush1.msra.mxu0 0.0
    %526 = vmatprep.subr.mxu0 0.0
    %527 = vmatpush1.msra.mxu0 0.0
    %528 = vmatprep.subr.mxu0 0.0
    %529 = vmatpush1.msra.mxu0 0.0
    %530 = vmatprep.subr.mxu0 0.0
    %531 = vmatpush1.msra.mxu0 0.0
    %532 = vmatprep.subr.mxu0 0.0
    %533 = vmatpush1.msra.mxu0 0.0
    %534 = vmatprep.subr.mxu0 0.0
    %535 = vmatpush1.msra.mxu0 0.0
    %536 = vmatprep.subr.mxu0 0.0
    %537 = vmatpush1.msra.mxu0 0.0
    %538 = vmatprep.subr.mxu0 0.0
    %539 = vmatpush1.msra.mxu0 0.0
    %540 = vmatprep.subr.mxu0 0.0
    %541 = vmatpush1.msra.mxu0 0.0
    %542 = vmatprep.subr.mxu0 0.0
    %543 = vmatpush1.msra.mxu0 0.0
    %544 = vmatprep.subr.mxu0 0.0
    %545 = vmatpush1.msra.mxu0 0.0
    %546 = vmatprep.subr.mxu0 0.0
    %547 = vmatpush1.msra.mxu0 0.0
    %548 = vmatprep.subr.mxu0 0.0
    %549 = vmatpush1.msra.mxu0 0.0
    %550 = vmatprep.subr.mxu0 0.0
    %551 = vmatpush1.msra.mxu0 0.0
    %552 = vmatprep.subr.mxu0 0.0
    %553 = vmatpush1.msra.mxu0 0.0
    %554 = vmatprep.subr.mxu0 0.0
    %555 = vmatpush1.msra.mxu0 0.0
    %556 = vmatprep.mubr.f32.mxu0 0.0
    %557 = vmatmul.mubr.f32.gmra.mrb[0].mxu0 %v490
    %v558 = vpop.f32.mrb[0].mxu0
    %v559 = vadd.f32 0.0, %v558
    %v560 = vpop.f32.mrb[0].mxu0
    %561 = vdwg.mxu0
    %v562 = vld [vmem:[#allocation2 + $0x60] sm:$0xff]
    %563 = vrot.lane.b32.xlu0 %v225, 120
    %v564 = vpop.permute.xlu0 %563
    %565 = vrot.lane.b32.xlu0 %v225, 88
    %v566 = vpop.permute.xlu0 %565
    %v567 = vsel %vm236, %v564, 0
    %v569 = vsel %vm236, %v566, 0
    %571 = vmatprep.subr.mxu0 0.0
    %572 = vmatpush1.xpose.msra.mxu0 %v569
    %573 = vmatprep.subr.mxu0 0.0
    %574 = vmatpush1.xpose.msra.mxu0 0.0
    %575 = vmatprep.subr.mxu0 0.0
    %576 = vmatpush1.xpose.msra.mxu0 0.0
    %577 = vmatprep.subr.mxu0 0.0
    %578 = vmatpush1.xpose.msra.mxu0 0.0
    %579 = vmatprep.subr.mxu0 0.0
    %580 = vmatpush1.xpose.msra.mxu0 0.0
    %581 = vmatprep.subr.mxu0 0.0
    %582 = vmatpush1.xpose.msra.mxu0 0.0
    %583 = vmatprep.subr.mxu0 0.0
    %584 = vmatpush1.xpose.msra.mxu0 0.0
    %585 = vmatprep.subr.mxu0 0.0
    %586 = vmatpush1.xpose.msra.mxu0 0.0
    %587 = vmatprep.subr.mxu0 0.0
    %588 = vmatpush1.xpose.msra.mxu0 0.0
    %589 = vmatprep.subr.mxu0 0.0
    %590 = vmatpush1.xpose.msra.mxu0 0.0
    %591 = vmatprep.subr.mxu0 0.0
    %592 = vmatpush1.xpose.msra.mxu0 0.0
    %593 = vmatprep.subr.mxu0 0.0
    %594 = vmatpush1.xpose.msra.mxu0 0.0
    %595 = vmatprep.subr.mxu0 0.0
    %596 = vmatpush1.xpose.msra.mxu0 0.0
    %597 = vmatprep.subr.mxu0 0.0
    %598 = vmatpush1.xpose.msra.mxu0 0.0
    %599 = vmatprep.subr.mxu0 0.0
    %600 = vmatpush1.xpose.msra.mxu0 0.0
    %601 = vmatprep.subr.mxu0 0.0
    %602 = vmatpush1.xpose.msra.mxu0 0.0
    %603 = vmatprep.subr.mxu0 0.0
    %604 = vmatpush1.xpose.msra.mxu0 0.0
    %605 = vmatprep.subr.mxu0 0.0
    %606 = vmatpush1.xpose.msra.mxu0 0.0
    %607 = vmatprep.subr.mxu0 0.0
    %608 = vmatpush1.xpose.msra.mxu0 0.0
    %609 = vmatprep.subr.mxu0 0.0
    %610 = vmatpush1.xpose.msra.mxu0 0.0
    %611 = vmatprep.subr.mxu0 0.0
    %612 = vmatpush1.xpose.msra.mxu0 0.0
    %613 = vmatprep.subr.mxu0 0.0
    %614 = vmatpush1.xpose.msra.mxu0 0.0
    %615 = vmatprep.subr.mxu0 0.0
    %616 = vmatpush1.xpose.msra.mxu0 0.0
    %617 = vmatprep.subr.mxu0 0.0
    %618 = vmatpush1.xpose.msra.mxu0 0.0
    %619 = vmatprep.subr.mxu0 0.0
    %620 = vmatpush1.xpose.msra.mxu0 0.0
    %621 = vmatprep.subr.mxu0 0.0
    %622 = vmatpush1.xpose.msra.mxu0 0.0
    %623 = vmatprep.subr.mxu0 0.0
    %624 = vmatpush1.xpose.msra.mxu0 0.0
    %625 = vmatprep.subr.mxu0 0.0
    %626 = vmatpush1.xpose.msra.mxu0 0.0
    %627 = vmatprep.subr.mxu0 0.0
    %628 = vmatpush1.xpose.msra.mxu0 0.0
    %629 = vmatprep.subr.mxu0 0.0
    %630 = vmatpush1.xpose.msra.mxu0 0.0
    %631 = vmatprep.subr.mxu0 0.0
    %632 = vmatpush1.xpose.msra.mxu0 0.0
    %633 = vmatprep.subr.mxu0 0.0
    %634 = vmatpush1.xpose.msra.mxu0 0.0
    %635 = vmatprep.mubr.f32.mxu0 0.0
    %636 = vmatmul.mubr.f32.gmra.mrb[0].mxu0 %v567
    %v637 = vpop.f32.mrb[0].mxu0
    %v638 = vadd.f32 0.0, %v637
    %v639 = vpop.f32.mrb[0].mxu0
    %640 = vdwg.mxu0
    %641 = vrot.lane.b32.xlu0 %v230, 120
    %v642 = vpop.permute.xlu0 %641
    %643 = vrot.lane.b32.xlu0 %v230, 88
    %v644 = vpop.permute.xlu0 %643
    %v645 = vsel %vm236, %v642, 0
    %v647 = vsel %vm236, %v644, 0
    %649 = vmatprep.subr.mxu0 0.0
    %650 = vmatpush1.xpose.msra.mxu0 %v647
    %651 = vmatprep.subr.mxu0 0.0
    %652 = vmatpush1.xpose.msra.mxu0 0.0
    %653 = vmatprep.subr.mxu0 0.0
    %654 = vmatpush1.xpose.msra.mxu0 0.0
    %655 = vmatprep.subr.mxu0 0.0
    %656 = vmatpush1.xpose.msra.mxu0 0.0
    %657 = vmatprep.subr.mxu0 0.0
    %658 = vmatpush1.xpose.msra.mxu0 0.0
    %659 = vmatprep.subr.mxu0 0.0
    %660 = vmatpush1.xpose.msra.mxu0 0.0
    %661 = vmatprep.subr.mxu0 0.0
    %662 = vmatpush1.xpose.msra.mxu0 0.0
    %663 = vmatprep.subr.mxu0 0.0
    %664 = vmatpush1.xpose.msra.mxu0 0.0
    %665 = vmatprep.subr.mxu0 0.0
    %666 = vmatpush1.xpose.msra.mxu0 0.0
    %667 = vmatprep.subr.mxu0 0.0
    %668 = vmatpush1.xpose.msra.mxu0 0.0
    %669 = vmatprep.subr.mxu0 0.0
    %670 = vmatpush1.xpose.msra.mxu0 0.0
    %671 = vmatprep.subr.mxu0 0.0
    %672 = vmatpush1.xpose.msra.mxu0 0.0
    %673 = vmatprep.subr.mxu0 0.0
    %674 = vmatpush1.xpose.msra.mxu0 0.0
    %675 = vmatprep.subr.mxu0 0.0
    %676 = vmatpush1.xpose.msra.mxu0 0.0
    %677 = vmatprep.subr.mxu0 0.0
    %678 = vmatpush1.xpose.msra.mxu0 0.0
    %679 = vmatprep.subr.mxu0 0.0
    %680 = vmatpush1.xpose.msra.mxu0 0.0
    %681 = vmatprep.subr.mxu0 0.0
    %682 = vmatpush1.xpose.msra.mxu0 0.0
    %683 = vmatprep.subr.mxu0 0.0
    %684 = vmatpush1.xpose.msra.mxu0 0.0
    %685 = vmatprep.subr.mxu0 0.0
    %686 = vmatpush1.xpose.msra.mxu0 0.0
    %687 = vmatprep.subr.mxu0 0.0
    %688 = vmatpush1.xpose.msra.mxu0 0.0
    %689 = vmatprep.subr.mxu0 0.0
    %690 = vmatpush1.xpose.msra.mxu0 0.0
    %691 = vmatprep.subr.mxu0 0.0
    %692 = vmatpush1.xpose.msra.mxu0 0.0
    %693 = vmatprep.subr.mxu0 0.0
    %694 = vmatpush1.xpose.msra.mxu0 0.0
    %695 = vmatprep.subr.mxu0 0.0
    %696 = vmatpush1.xpose.msra.mxu0 0.0
    %697 = vmatprep.subr.mxu0 0.0
    %698 = vmatpush1.xpose.msra.mxu0 0.0
    %699 = vmatprep.subr.mxu0 0.0
    %700 = vmatpush1.xpose.msra.mxu0 0.0
    %701 = vmatprep.subr.mxu0 0.0
    %702 = vmatpush1.xpose.msra.mxu0 0.0
    %703 = vmatprep.subr.mxu0 0.0
    %704 = vmatpush1.xpose.msra.mxu0 0.0
    %705 = vmatprep.subr.mxu0 0.0
    %706 = vmatpush1.xpose.msra.mxu0 0.0
    %707 = vmatprep.subr.mxu0 0.0
    %708 = vmatpush1.xpose.msra.mxu0 0.0
    %709 = vmatprep.subr.mxu0 0.0
    %710 = vmatpush1.xpose.msra.mxu0 0.0
    %711 = vmatprep.subr.mxu0 0.0
    %712 = vmatpush1.xpose.msra.mxu0 0.0
    %713 = vmatprep.mubr.f32.mxu0 0.0
    %714 = vmatmul.mubr.f32.gmra.mrb[0].mxu0 %v645
    %v715 = vpop.f32.mrb[0].mxu0
    %v716 = vadd.f32 0.0, %v715
    %v717 = vpop.f32.mrb[0].mxu0
    %718 = vdwg.mxu0
    %v719 = vsel %vm236, %v638, -inf
    %720 = vmax.xlane.f32.xlu0 %v719
    %v721 = vpop.xlane.xlu0 %720
    %v722 = vsel %vm236, %v716, -inf
    %723 = vmax.xlane.f32.xlu0 %v722
    %v724 = vpop.xlane.xlu0 %723
    %v725 = vsub.f32 %v638, %v721
    %v726 = vsub.f32 %v716, %v724
    %v727 = vmul.f32 %v725, 1.442695
    %v728 = vpow.pop %v727
    %v729 = vmul.f32 %v726, 1.442695
    %v730 = vpow.pop %v729
    %v731 = vsel %vm236, %v728, 0.0
    %732 = vadd.xlane.f32.xlu0 %v731
    %v733 = vpop.xlane.xlu0 %732
    %v734 = vsel %vm236, %v730, 0.0
    %735 = vadd.xlane.f32.xlu0 %v734
    %v736 = vpop.xlane.xlu0 %735
    %v737 = vrcp.pop %v733
    %v738 = vmul.f32 %v728, %v737
    %v739 = vrcp.pop %v736
    %v740 = vmul.f32 %v730, %v739
    %741 = vrot.lane.b32.xlu0 %v225, 56
    %v742 = vpop.permute.xlu0 %741
    %v745 = vsel %vm236, %v738, 0
    %747 = vmatprep.subr.mxu0 0.0
    %748 = vmatpush1.msra.mxu0 %v742
    %749 = vmatprep.subr.mxu0 0.0
    %750 = vmatpush1.msra.mxu0 0.0
    %751 = vmatprep.subr.mxu0 0.0
    %752 = vmatpush1.msra.mxu0 0.0
    %753 = vmatprep.subr.mxu0 0.0
    %754 = vmatpush1.msra.mxu0 0.0
    %755 = vmatprep.subr.mxu0 0.0
    %756 = vmatpush1.msra.mxu0 0.0
    %757 = vmatprep.subr.mxu0 0.0
    %758 = vmatpush1.msra.mxu0 0.0
    %759 = vmatprep.subr.mxu0 0.0
    %760 = vmatpush1.msra.mxu0 0.0
    %761 = vmatprep.subr.mxu0 0.0
    %762 = vmatpush1.msra.mxu0 0.0
    %763 = vmatprep.subr.mxu0 0.0
    %764 = vmatpush1.msra.mxu0 0.0
    %765 = vmatprep.subr.mxu0 0.0
    %766 = vmatpush1.msra.mxu0 0.0
    %767 = vmatprep.subr.mxu0 0.0
    %768 = vmatpush1.msra.mxu0 0.0
    %769 = vmatprep.subr.mxu0 0.0
    %770 = vmatpush1.msra.mxu0 0.0
    %771 = vmatprep.subr.mxu0 0.0
    %772 = vmatpush1.msra.mxu0 0.0
    %773 = vmatprep.subr.mxu0 0.0
    %774 = vmatpush1.msra.mxu0 0.0
    %775 = vmatprep.subr.mxu0 0.0
    %776 = vmatpush1.msra.mxu0 0.0
    %777 = vmatprep.subr.mxu0 0.0
    %778 = vmatpush1.msra.mxu0 0.0
    %779 = vmatprep.subr.mxu0 0.0
    %780 = vmatpush1.msra.mxu0 0.0
    %781 = vmatprep.subr.mxu0 0.0
    %782 = vmatpush1.msra.mxu0 0.0
    %783 = vmatprep.subr.mxu0 0.0
    %784 = vmatpush1.msra.mxu0 0.0
    %785 = vmatprep.subr.mxu0 0.0
    %786 = vmatpush1.msra.mxu0 0.0
    %787 = vmatprep.subr.mxu0 0.0
    %788 = vmatpush1.msra.mxu0 0.0
    %789 = vmatprep.subr.mxu0 0.0
    %790 = vmatpush1.msra.mxu0 0.0
    %791 = vmatprep.subr.mxu0 0.0
    %792 = vmatpush1.msra.mxu0 0.0
    %793 = vmatprep.subr.mxu0 0.0
    %794 = vmatpush1.msra.mxu0 0.0
    %795 = vmatprep.subr.mxu0 0.0
    %796 = vmatpush1.msra.mxu0 0.0
    %797 = vmatprep.subr.mxu0 0.0
    %798 = vmatpush1.msra.mxu0 0.0
    %799 = vmatprep.subr.mxu0 0.0
    %800 = vmatpush1.msra.mxu0 0.0
    %801 = vmatprep.subr.mxu0 0.0
    %802 = vmatpush1.msra.mxu0 0.0
    %803 = vmatprep.subr.mxu0 0.0
    %804 = vmatpush1.msra.mxu0 0.0
    %805 = vmatprep.subr.mxu0 0.0
    %806 = vmatpush1.msra.mxu0 0.0
    %807 = vmatprep.subr.mxu0 0.0
    %808 = vmatpush1.msra.mxu0 0.0
    %809 = vmatprep.subr.mxu0 0.0
    %810 = vmatpush1.msra.mxu0 0.0
    %811 = vmatprep.mubr.f32.mxu0 0.0
    %812 = vmatmul.mubr.f32.gmra.mrb[0].mxu0 %v745
    %v813 = vpop.f32.mrb[0].mxu0
    %v814 = vadd.f32 0.0, %v813
    %v815 = vpop.f32.mrb[0].mxu0
    %816 = vdwg.mxu0
    %817 = vrot.lane.b32.xlu0 %v230, 56
    %v818 = vpop.permute.xlu0 %817
    %v821 = vsel %vm236, %v740, 0
    %823 = vmatprep.subr.mxu0 0.0
    %824 = vmatpush1.msra.mxu0 %v818
    %825 = vmatprep.subr.mxu0 0.0
    %826 = vmatpush1.msra.mxu0 0.0
    %827 = vmatprep.subr.mxu0 0.0
    %828 = vmatpush1.msra.mxu0 0.0
    %829 = vmatprep.subr.mxu0 0.0
    %830 = vmatpush1.msra.mxu0 0.0
    %831 = vmatprep.subr.mxu0 0.0
    %832 = vmatpush1.msra.mxu0 0.0
    %833 = vmatprep.subr.mxu0 0.0
    %834 = vmatpush1.msra.mxu0 0.0
    %835 = vmatprep.subr.mxu0 0.0
    %836 = vmatpush1.msra.mxu0 0.0
    %837 = vmatprep.subr.mxu0 0.0
    %838 = vmatpush1.msra.mxu0 0.0
    %839 = vmatprep.subr.mxu0 0.0
    %840 = vmatpush1.msra.mxu0 0.0
    %841 = vmatprep.subr.mxu0 0.0
    %842 = vmatpush1.msra.mxu0 0.0
    %843 = vmatprep.subr.mxu0 0.0
    %844 = vmatpush1.msra.mxu0 0.0
    %845 = vmatprep.subr.mxu0 0.0
    %846 = vmatpush1.msra.mxu0 0.0
    %847 = vmatprep.subr.mxu0 0.0
    %848 = vmatpush1.msra.mxu0 0.0
    %849 = vmatprep.subr.mxu0 0.0
    %850 = vmatpush1.msra.mxu0 0.0
    %851 = vmatprep.subr.mxu0 0.0
    %852 = vmatpush1.msra.mxu0 0.0
    %853 = vmatprep.subr.mxu0 0.0
    %854 = vmatpush1.msra.mxu0 0.0
    %855 = vmatprep.subr.mxu0 0.0
    %856 = vmatpush1.msra.mxu0 0.0
    %857 = vmatprep.subr.mxu0 0.0
    %858 = vmatpush1.msra.mxu0 0.0
    %859 = vmatprep.subr.mxu0 0.0
    %860 = vmatpush1.msra.mxu0 0.0
    %861 = vmatprep.subr.mxu0 0.0
    %862 = vmatpush1.msra.mxu0 0.0
    %863 = vmatprep.subr.mxu0 0.0
    %864 = vmatpush1.msra.mxu0 0.0
    %865 = vmatprep.subr.mxu0 0.0
    %866 = vmatpush1.msra.mxu0 0.0
    %867 = vmatprep.subr.mxu0 0.0
    %868 = vmatpush1.msra.mxu0 0.0
    %869 = vmatprep.subr.mxu0 0.0
    %870 = vmatpush1.msra.mxu0 0.0
    %871 = vmatprep.subr.mxu0 0.0
    %872 = vmatpush1.msra.mxu0 0.0
    %873 = vmatprep.subr.mxu0 0.0
    %874 = vmatpush1.msra.mxu0 0.0
    %875 = vmatprep.subr.mxu0 0.0
    %876 = vmatpush1.msra.mxu0 0.0
    %877 = vmatprep.subr.mxu0 0.0
    %878 = vmatpush1.msra.mxu0 0.0
    %879 = vmatprep.subr.mxu0 0.0
    %880 = vmatpush1.msra.mxu0 0.0
    %881 = vmatprep.subr.mxu0 0.0
    %882 = vmatpush1.msra.mxu0 0.0
    %883 = vmatprep.subr.mxu0 0.0
    %884 = vmatpush1.msra.mxu0 0.0
    %885 = vmatprep.subr.mxu0 0.0
    %886 = vmatpush1.msra.mxu0 0.0
    %887 = vmatprep.mubr.f32.mxu0 0.0
    %888 = vmatmul.mubr.f32.gmra.mrb[0].mxu0 %v821
    %v889 = vpop.f32.mrb[0].mxu0
    %v890 = vadd.f32 0.0, %v889
    %v891 = vpop.f32.mrb[0].mxu0
    %892 = vdwg.mxu0
    %v893 = vld [vmem:[#allocation2 + $0x68] sm:$0xff]
    %v895 = vsel %vm236, %v814, 0
    %v898 = vsel %vm236, %v890, 0
    %900 = vmatprep.subr.mxu0 0.0
    %901 = vmatpush1.msra.mxu0 %v893
    %902 = vmatprep.subr.mxu0 0.0
    %903 = vmatpush1.msra.mxu0 0.0
    %904 = vmatprep.subr.mxu0 0.0
    %905 = vmatpush1.msra.mxu0 0.0
    %906 = vmatprep.subr.mxu0 0.0
    %907 = vmatpush1.msra.mxu0 0.0
    %908 = vmatprep.subr.mxu0 0.0
    %909 = vmatpush1.msra.mxu0 0.0
    %910 = vmatprep.subr.mxu0 0.0
    %911 = vmatpush1.msra.mxu0 0.0
    %912 = vmatprep.subr.mxu0 0.0
    %913 = vmatpush1.msra.mxu0 0.0
    %914 = vmatprep.subr.mxu0 0.0
    %915 = vmatpush1.msra.mxu0 0.0
    %916 = vmatprep.subr.mxu0 0.0
    %917 = vmatpush1.msra.mxu0 0.0
    %918 = vmatprep.subr.mxu0 0.0
    %919 = vmatpush1.msra.mxu0 0.0
    %920 = vmatprep.subr.mxu0 0.0
    %921 = vmatpush1.msra.mxu0 0.0
    %922 = vmatprep.subr.mxu0 0.0
    %923 = vmatpush1.msra.mxu0 0.0
    %924 = vmatprep.subr.mxu0 0.0
    %925 = vmatpush1.msra.mxu0 0.0
    %926 = vmatprep.subr.mxu0 0.0
    %927 = vmatpush1.msra.mxu0 0.0
    %928 = vmatprep.subr.mxu0 0.0
    %929 = vmatpush1.msra.mxu0 0.0
    %930 = vmatprep.subr.mxu0 0.0
    %931 = vmatpush1.msra.mxu0 0.0
    %932 = vmatprep.subr.mxu0 0.0
    %933 = vmatpush1.msra.mxu0 0.0
    %934 = vmatprep.subr.mxu0 0.0
    %935 = vmatpush1.msra.mxu0 0.0
    %936 = vmatprep.subr.mxu0 0.0
    %937 = vmatpush1.msra.mxu0 0.0
    %938 = vmatprep.subr.mxu0 0.0
    %939 = vmatpush1.msra.mxu0 0.0
    %940 = vmatprep.subr.mxu0 0.0
    %941 = vmatpush1.msra.mxu0 0.0
    %942 = vmatprep.subr.mxu0 0.0
    %943 = vmatpush1.msra.mxu0 0.0
    %944 = vmatprep.subr.mxu0 0.0
    %945 = vmatpush1.msra.mxu0 0.0
    %946 = vmatprep.subr.mxu0 0.0
    %947 = vmatpush1.msra.mxu0 0.0
    %948 = vmatprep.subr.mxu0 0.0
    %949 = vmatpush1.msra.mxu0 0.0
    %950 = vmatprep.subr.mxu0 0.0
    %951 = vmatpush1.msra.mxu0 0.0
    %952 = vmatprep.subr.mxu0 0.0
    %953 = vmatpush1.msra.mxu0 0.0
    %954 = vmatprep.subr.mxu0 0.0
    %955 = vmatpush1.msra.mxu0 0.0
    %956 = vmatprep.subr.mxu0 0.0
    %957 = vmatpush1.msra.mxu0 0.0
    %958 = vmatprep.subr.mxu0 0.0
    %959 = vmatpush1.msra.mxu0 0.0
    %960 = vmatprep.subr.mxu0 0.0
    %961 = vmatpush1.msra.mxu0 0.0
    %962 = vmatprep.subr.mxu0 0.0
    %963 = vmatpush1.msra.mxu0 0.0
    %964 = vmatprep.mubr.f32.mxu0 0.0
    %965 = vmatmul.mubr.f32.gmra.mrb[0].mxu0 %v895
    %v966 = vpop.f32.mrb[0].mxu0
    %v967 = vadd.f32 0.0, %v966
    %v968 = vpop.f32.mrb[0].mxu0
    %969 = vmatprep.mubr.f32.mxu0 0.0
    %970 = vmatmul.mubr.f32.gmra.mrb[0].mxu0 %v898
    %v971 = vpop.f32.mrb[0].mxu0
    %v972 = vadd.f32 0.0, %v971
    %v973 = vpop.f32.mrb[0].mxu0
    %974 = vdwg.mxu0
    %v976 = vsel %vm236, %v483, 0
    %v979 = vsel %vm236, %v559, 0
    %981 = vmatprep.subr.mxu0 0.0
    %982 = vmatpush1.msra.mxu0 %v562
    %983 = vmatprep.subr.mxu0 0.0
    %984 = vmatpush1.msra.mxu0 0.0
    %985 = vmatprep.subr.mxu0 0.0
    %986 = vmatpush1.msra.mxu0 0.0
    %987 = vmatprep.subr.mxu0 0.0
    %988 = vmatpush1.msra.mxu0 0.0
    %989 = vmatprep.subr.mxu0 0.0
    %990 = vmatpush1.msra.mxu0 0.0
    %991 = vmatprep.subr.mxu0 0.0
    %992 = vmatpush1.msra.mxu0 0.0
    %993 = vmatprep.subr.mxu0 0.0
    %994 = vmatpush1.msra.mxu0 0.0
    %995 = vmatprep.subr.mxu0 0.0
    %996 = vmatpush1.msra.mxu0 0.0
    %997 = vmatprep.subr.mxu0 0.0
    %998 = vmatpush1.msra.mxu0 0.0
    %999 = vmatprep.subr.mxu0 0.0
    %1000 = vmatpush1.msra.mxu0 0.0
    %1001 = vmatprep.subr.mxu0 0.0
    %1002 = vmatpush1.msra.mxu0 0.0
    %1003 = vmatprep.subr.mxu0 0.0
    %1004 = vmatpush1.msra.mxu0 0.0
    %1005 = vmatprep.subr.mxu0 0.0
    %1006 = vmatpush1.msra.mxu0 0.0
    %1007 = vmatprep.subr.mxu0 0.0
    %1008 = vmatpush1.msra.mxu0 0.0
    %1009 = vmatprep.subr.mxu0 0.0
    %1010 = vmatpush1.msra.mxu0 0.0
    %1011 = vmatprep.subr.mxu0 0.0
    %1012 = vmatpush1.msra.mxu0 0.0
    %1013 = vmatprep.subr.mxu0 0.0
    %1014 = vmatpush1.msra.mxu0 0.0
    %1015 = vmatprep.subr.mxu0 0.0
    %1016 = vmatpush1.msra.mxu0 0.0
    %1017 = vmatprep.subr.mxu0 0.0
    %1018 = vmatpush1.msra.mxu0 0.0
    %1019 = vmatprep.subr.mxu0 0.0
    %1020 = vmatpush1.msra.mxu0 0.0
    %1021 = vmatprep.subr.mxu0 0.0
    %1022 = vmatpush1.msra.mxu0 0.0
    %1023 = vmatprep.subr.mxu0 0.0
    %1024 = vmatpush1.msra.mxu0 0.0
    %1025 = vmatprep.subr.mxu0 0.0
    %1026 = vmatpush1.msra.mxu0 0.0
    %1027 = vmatprep.subr.mxu0 0.0
    %1028 = vmatpush1.msra.mxu0 0.0
    %1029 = vmatprep.subr.mxu0 0.0
    %1030 = vmatpush1.msra.mxu0 0.0
    %1031 = vmatprep.subr.mxu0 0.0
    %1032 = vmatpush1.msra.mxu0 0.0
    %1033 = vmatprep.subr.mxu0 0.0
    %1034 = vmatpush1.msra.mxu0 0.0
    %1035 = vmatprep.subr.mxu0 0.0
    %1036 = vmatpush1.msra.mxu0 0.0
    %1037 = vmatprep.subr.mxu0 0.0
    %1038 = vmatpush1.msra.mxu0 0.0
    %1039 = vmatprep.subr.mxu0 0.0
    %1040 = vmatpush1.msra.mxu0 0.0
    %1041 = vmatprep.subr.mxu0 0.0
    %1042 = vmatpush1.msra.mxu0 0.0
    %1043 = vmatprep.subr.mxu0 0.0
    %1044 = vmatpush1.msra.mxu0 0.0
    %1045 = vmatprep.mubr.f32.mxu0 0.0
    %1046 = vmatmul.mubr.f32.gmra.mrb[0].mxu0 %v976
    %v1047 = vpop.f32.mrb[0].mxu0
    %v1048 = vadd.f32 %v967, %v1047
    %v1049 = vpop.f32.mrb[0].mxu0
    %1050 = vmatprep.mubr.f32.mxu0 0.0
    %1051 = vmatmul.mubr.f32.gmra.mrb[0].mxu0 %v979
    %v1052 = vpop.f32.mrb[0].mxu0
    %v1053 = vadd.f32 %v972, %v1052
    %v1054 = vpop.f32.mrb[0].mxu0
    %1055 = vdwg.mxu0
    %1056 = vrot.lane.b32.xlu0 %v225, 112
    %v1057 = vpop.permute.xlu0 %1056
    %1058 = vrot.lane.b32.xlu0 %v225, 80
    %v1059 = vpop.permute.xlu0 %1058
    %v1060 = vsel %vm236, %v1057, 0
    %v1062 = vsel %vm236, %v1059, 0
    %1064 = vmatprep.subr.mxu0 0.0
    %1065 = vmatpush1.xpose.msra.mxu0 %v1062
    %1066 = vmatprep.subr.mxu0 0.0
    %1067 = vmatpush1.xpose.msra.mxu0 0.0
    %1068 = vmatprep.subr.mxu0 0.0
    %1069 = vmatpush1.xpose.msra.mxu0 0.0
    %1070 = vmatprep.subr.mxu0 0.0
    %1071 = vmatpush1.xpose.msra.mxu0 0.0
    %1072 = vmatprep.subr.mxu0 0.0
    %1073 = vmatpush1.xpose.msra.mxu0 0.0
    %1074 = vmatprep.subr.mxu0 0.0
    %1075 = vmatpush1.xpose.msra.mxu0 0.0
    %1076 = vmatprep.subr.mxu0 0.0
    %1077 = vmatpush1.xpose.msra.mxu0 0.0
    %1078 = vmatprep.subr.mxu0 0.0
    %1079 = vmatpush1.xpose.msra.mxu0 0.0
    %1080 = vmatprep.subr.mxu0 0.0
    %1081 = vmatpush1.xpose.msra.mxu0 0.0
    %1082 = vmatprep.subr.mxu0 0.0
    %1083 = vmatpush1.xpose.msra.mxu0 0.0
    %1084 = vmatprep.subr.mxu0 0.0
    %1085 = vmatpush1.xpose.msra.mxu0 0.0
    %1086 = vmatprep.subr.mxu0 0.0
    %1087 = vmatpush1.xpose.msra.mxu0 0.0
    %1088 = vmatprep.subr.mxu0 0.0
    %1089 = vmatpush1.xpose.msra.mxu0 0.0
    %1090 = vmatprep.subr.mxu0 0.0
    %1091 = vmatpush1.xpose.msra.mxu0 0.0
    %1092 = vmatprep.subr.mxu0 0.0
    %1093 = vmatpush1.xpose.msra.mxu0 0.0
    %1094 = vmatprep.subr.mxu0 0.0
    %1095 = vmatpush1.xpose.msra.mxu0 0.0
    %1096 = vmatprep.subr.mxu0 0.0
    %1097 = vmatpush1.xpose.msra.mxu0 0.0
    %1098 = vmatprep.subr.mxu0 0.0
    %1099 = vmatpush1.xpose.msra.mxu0 0.0
    %1100 = vmatprep.subr.mxu0 0.0
    %1101 = vmatpush1.xpose.msra.mxu0 0.0
    %1102 = vmatprep.subr.mxu0 0.0
    %1103 = vmatpush1.xpose.msra.mxu0 0.0
    %1104 = vmatprep.subr.mxu0 0.0
    %1105 = vmatpush1.xpose.msra.mxu0 0.0
    %1106 = vmatprep.subr.mxu0 0.0
    %1107 = vmatpush1.xpose.msra.mxu0 0.0
    %1108 = vmatprep.subr.mxu0 0.0
    %1109 = vmatpush1.xpose.msra.mxu0 0.0
    %1110 = vmatprep.subr.mxu0 0.0
    %1111 = vmatpush1.xpose.msra.mxu0 0.0
    %1112 = vmatprep.subr.mxu0 0.0
    %1113 = vmatpush1.xpose.msra.mxu0 0.0
    %1114 = vmatprep.subr.mxu0 0.0
    %1115 = vmatpush1.xpose.msra.mxu0 0.0
    %1116 = vmatprep.subr.mxu0 0.0
    %1117 = vmatpush1.xpose.msra.mxu0 0.0
    %1118 = vmatprep.subr.mxu0 0.0
    %1119 = vmatpush1.xpose.msra.mxu0 0.0
    %1120 = vmatprep.subr.mxu0 0.0
    %1121 = vmatpush1.xpose.msra.mxu0 0.0
    %1122 = vmatprep.subr.mxu0 0.0
    %1123 = vmatpush1.xpose.msra.mxu0 0.0
    %1124 = vmatprep.subr.mxu0 0.0
    %1125 = vmatpush1.xpose.msra.mxu0 0.0
    %1126 = vmatprep.subr.mxu0 0.0
    %1127 = vmatpush1.xpose.msra.mxu0 0.0
    %1128 = vmatprep.mubr.f32.mxu0 0.0
    %1129 = vmatmul.mubr.f32.gmra.mrb[0].mxu0 %v1060
    %v1130 = vpop.f32.mrb[0].mxu0
    %v1131 = vadd.f32 0.0, %v1130
    %v1132 = vpop.f32.mrb[0].mxu0
    %1133 = vdwg.mxu0
    %1134 = vrot.lane.b32.xlu0 %v230, 112
    %v1135 = vpop.permute.xlu0 %1134
    %1136 = vrot.lane.b32.xlu0 %v230, 80
    %v1137 = vpop.permute.xlu0 %1136
    %v1138 = vsel %vm236, %v1135, 0
    %v1140 = vsel %vm236, %v1137, 0
    %1142 = vmatprep.subr.mxu0 0.0
    %1143 = vmatpush1.xpose.msra.mxu0 %v1140
    %1144 = vmatprep.subr.mxu0 0.0
    %1145 = vmatpush1.xpose.msra.mxu0 0.0
    %1146 = vmatprep.subr.mxu0 0.0
    %1147 = vmatpush1.xpose.msra.mxu0 0.0
    %1148 = vmatprep.subr.mxu0 0.0
    %1149 = vmatpush1.xpose.msra.mxu0 0.0
    %1150 = vmatprep.subr.mxu0 0.0
    %1151 = vmatpush1.xpose.msra.mxu0 0.0
    %1152 = vmatprep.subr.mxu0 0.0
    %1153 = vmatpush1.xpose.msra.mxu0 0.0
    %1154 = vmatprep.subr.mxu0 0.0
    %1155 = vmatpush1.xpose.msra.mxu0 0.0
    %1156 = vmatprep.subr.mxu0 0.0
    %1157 = vmatpush1.xpose.msra.mxu0 0.0
    %1158 = vmatprep.subr.mxu0 0.0
    %1159 = vmatpush1.xpose.msra.mxu0 0.0
    %1160 = vmatprep.subr.mxu0 0.0
    %1161 = vmatpush1.xpose.msra.mxu0 0.0
    %1162 = vmatprep.subr.mxu0 0.0
    %1163 = vmatpush1.xpose.msra.mxu0 0.0
    %1164 = vmatprep.subr.mxu0 0.0
    %1165 = vmatpush1.xpose.msra.mxu0 0.0
    %1166 = vmatprep.subr.mxu0 0.0
    %1167 = vmatpush1.xpose.msra.mxu0 0.0
    %1168 = vmatprep.subr.mxu0 0.0
    %1169 = vmatpush1.xpose.msra.mxu0 0.0
    %1170 = vmatprep.subr.mxu0 0.0
    %1171 = vmatpush1.xpose.msra.mxu0 0.0
    %1172 = vmatprep.subr.mxu0 0.0
    %1173 = vmatpush1.xpose.msra.mxu0 0.0
    %1174 = vmatprep.subr.mxu0 0.0
    %1175 = vmatpush1.xpose.msra.mxu0 0.0
    %1176 = vmatprep.subr.mxu0 0.0
    %1177 = vmatpush1.xpose.msra.mxu0 0.0
    %1178 = vmatprep.subr.mxu0 0.0
    %1179 = vmatpush1.xpose.msra.mxu0 0.0
    %1180 = vmatprep.subr.mxu0 0.0
    %1181 = vmatpush1.xpose.msra.mxu0 0.0
    %1182 = vmatprep.subr.mxu0 0.0
    %1183 = vmatpush1.xpose.msra.mxu0 0.0
    %1184 = vmatprep.subr.mxu0 0.0
    %1185 = vmatpush1.xpose.msra.mxu0 0.0
    %1186 = vmatprep.subr.mxu0 0.0
    %1187 = vmatpush1.xpose.msra.mxu0 0.0
    %1188 = vmatprep.subr.mxu0 0.0
    %1189 = vmatpush1.xpose.msra.mxu0 0.0
    %1190 = vmatprep.subr.mxu0 0.0
    %1191 = vmatpush1.xpose.msra.mxu0 0.0
    %1192 = vmatprep.subr.mxu0 0.0
    %1193 = vmatpush1.xpose.msra.mxu0 0.0
    %1194 = vmatprep.subr.mxu0 0.0
    %1195 = vmatpush1.xpose.msra.mxu0 0.0
    %1196 = vmatprep.subr.mxu0 0.0
    %1197 = vmatpush1.xpose.msra.mxu0 0.0
    %1198 = vmatprep.subr.mxu0 0.0
    %1199 = vmatpush1.xpose.msra.mxu0 0.0
    %1200 = vmatprep.subr.mxu0 0.0
    %1201 = vmatpush1.xpose.msra.mxu0 0.0
    %1202 = vmatprep.subr.mxu0 0.0
    %1203 = vmatpush1.xpose.msra.mxu0 0.0
    %1204 = vmatprep.subr.mxu0 0.0
    %1205 = vmatpush1.xpose.msra.mxu0 0.0
    %1206 = vmatprep.mubr.f32.mxu0 0.0
    %1207 = vmatmul.mubr.f32.gmra.mrb[0].mxu0 %v1138
    %v1208 = vpop.f32.mrb[0].mxu0
    %v1209 = vadd.f32 0.0, %v1208
    %v1210 = vpop.f32.mrb[0].mxu0
    %1211 = vdwg.mxu0
    %v1212 = vsel %vm236, %v1131, -inf
    %1213 = vmax.xlane.f32.xlu0 %v1212
    %v1214 = vpop.xlane.xlu0 %1213
    %v1215 = vsel %vm236, %v1209, -inf
    %1216 = vmax.xlane.f32.xlu0 %v1215
    %v1217 = vpop.xlane.xlu0 %1216
    %v1218 = vsub.f32 %v1131, %v1214
    %v1219 = vsub.f32 %v1209, %v1217
    %v1220 = vmul.f32 %v1218, 1.442695
    %v1221 = vpow.pop %v1220
    %v1222 = vmul.f32 %v1219, 1.442695
    %v1223 = vpow.pop %v1222
    %v1224 = vsel %vm236, %v1221, 0.0
    %1225 = vadd.xlane.f32.xlu0 %v1224
    %v1226 = vpop.xlane.xlu0 %1225
    %v1227 = vsel %vm236, %v1223, 0.0
    %1228 = vadd.xlane.f32.xlu0 %v1227
    %v1229 = vpop.xlane.xlu0 %1228
    %v1230 = vrcp.pop %v1226
    %v1231 = vmul.f32 %v1221, %v1230
    %v1232 = vrcp.pop %v1229
    %v1233 = vmul.f32 %v1223, %v1232
    %1234 = vrot.lane.b32.xlu0 %v225, 48
    %v1235 = vpop.permute.xlu0 %1234
    %v1238 = vsel %vm236, %v1231, 0
    %1240 = vmatprep.subr.mxu0 0.0
    %1241 = vmatpush1.msra.mxu0 %v1235
    %1242 = vmatprep.subr.mxu0 0.0
    %1243 = vmatpush1.msra.mxu0 0.0
    %1244 = vmatprep.subr.mxu0 0.0
    %1245 = vmatpush1.msra.mxu0 0.0
    %1246 = vmatprep.subr.mxu0 0.0
    %1247 = vmatpush1.msra.mxu0 0.0
    %1248 = vmatprep.subr.mxu0 0.0
    %1249 = vmatpush1.msra.mxu0 0.0
    %1250 = vmatprep.subr.mxu0 0.0
    %1251 = vmatpush1.msra.mxu0 0.0
    %1252 = vmatprep.subr.mxu0 0.0
    %1253 = vmatpush1.msra.mxu0 0.0
    %1254 = vmatprep.subr.mxu0 0.0
    %1255 = vmatpush1.msra.mxu0 0.0
    %1256 = vmatprep.subr.mxu0 0.0
    %1257 = vmatpush1.msra.mxu0 0.0
    %1258 = vmatprep.subr.mxu0 0.0
    %1259 = vmatpush1.msra.mxu0 0.0
    %1260 = vmatprep.subr.mxu0 0.0
    %1261 = vmatpush1.msra.mxu0 0.0
    %1262 = vmatprep.subr.mxu0 0.0
    %1263 = vmatpush1.msra.mxu0 0.0
    %1264 = vmatprep.subr.mxu0 0.0
    %1265 = vmatpush1.msra.mxu0 0.0
    %1266 = vmatprep.subr.mxu0 0.0
    %1267 = vmatpush1.msra.mxu0 0.0
    %1268 = vmatprep.subr.mxu0 0.0
    %1269 = vmatpush1.msra.mxu0 0.0
    %1270 = vmatprep.subr.mxu0 0.0
    %1271 = vmatpush1.msra.mxu0 0.0
    %1272 = vmatprep.subr.mxu0 0.0
    %1273 = vmatpush1.msra.mxu0 0.0
    %1274 = vmatprep.subr.mxu0 0.0
    %1275 = vmatpush1.msra.mxu0 0.0
    %1276 = vmatprep.subr.mxu0 0.0
    %1277 = vmatpush1.msra.mxu0 0.0
    %1278 = vmatprep.subr.mxu0 0.0
    %1279 = vmatpush1.msra.mxu0 0.0
    %1280 = vmatprep.subr.mxu0 0.0
    %1281 = vmatpush1.msra.mxu0 0.0
    %1282 = vmatprep.subr.mxu0 0.0
    %1283 = vmatpush1.msra.mxu0 0.0
    %1284 = vmatprep.subr.mxu0 0.0
    %1285 = vmatpush1.msra.mxu0 0.0
    %1286 = vmatprep.subr.mxu0 0.0
    %1287 = vmatpush1.msra.mxu0 0.0
    %1288 = vmatprep.subr.mxu0 0.0
    %1289 = vmatpush1.msra.mxu0 0.0
    %1290 = vmatprep.subr.mxu0 0.0
    %1291 = vmatpush1.msra.mxu0 0.0
    %1292 = vmatprep.subr.mxu0 0.0
    %1293 = vmatpush1.msra.mxu0 0.0
    %1294 = vmatprep.subr.mxu0 0.0
    %1295 = vmatpush1.msra.mxu0 0.0
    %1296 = vmatprep.subr.mxu0 0.0
    %1297 = vmatpush1.msra.mxu0 0.0
    %1298 = vmatprep.subr.mxu0 0.0
    %1299 = vmatpush1.msra.mxu0 0.0
    %1300 = vmatprep.subr.mxu0 0.0
    %1301 = vmatpush1.msra.mxu0 0.0
    %1302 = vmatprep.subr.mxu0 0.0
    %1303 = vmatpush1.msra.mxu0 0.0
    %1304 = vmatprep.mubr.f32.mxu0 0.0
    %1305 = vmatmul.mubr.f32.gmra.mrb[0].mxu0 %v1238
    %v1306 = vpop.f32.mrb[0].mxu0
    %v1307 = vadd.f32 0.0, %v1306
    %v1308 = vpop.f32.mrb[0].mxu0
    %1309 = vdwg.mxu0
    %1310 = vrot.lane.b32.xlu0 %v230, 48
    %v1311 = vpop.permute.xlu0 %1310
    %v1314 = vsel %vm236, %v1233, 0
    %1316 = vmatprep.subr.mxu0 0.0
    %1317 = vmatpush1.msra.mxu0 %v1311
    %1318 = vmatprep.subr.mxu0 0.0
    %1319 = vmatpush1.msra.mxu0 0.0
    %1320 = vmatprep.subr.mxu0 0.0
    %1321 = vmatpush1.msra.mxu0 0.0
    %1322 = vmatprep.subr.mxu0 0.0
    %1323 = vmatpush1.msra.mxu0 0.0
    %1324 = vmatprep.subr.mxu0 0.0
    %1325 = vmatpush1.msra.mxu0 0.0
    %1326 = vmatprep.subr.mxu0 0.0
    %1327 = vmatpush1.msra.mxu0 0.0
    %1328 = vmatprep.subr.mxu0 0.0
    %1329 = vmatpush1.msra.mxu0 0.0
    %1330 = vmatprep.subr.mxu0 0.0
    %1331 = vmatpush1.msra.mxu0 0.0
    %1332 = vmatprep.subr.mxu0 0.0
    %1333 = vmatpush1.msra.mxu0 0.0
    %1334 = vmatprep.subr.mxu0 0.0
    %1335 = vmatpush1.msra.mxu0 0.0
    %1336 = vmatprep.subr.mxu0 0.0
    %1337 = vmatpush1.msra.mxu0 0.0
    %1338 = vmatprep.subr.mxu0 0.0
    %1339 = vmatpush1.msra.mxu0 0.0
    %1340 = vmatprep.subr.mxu0 0.0
    %1341 = vmatpush1.msra.mxu0 0.0
    %1342 = vmatprep.subr.mxu0 0.0
    %1343 = vmatpush1.msra.mxu0 0.0
    %1344 = vmatprep.subr.mxu0 0.0
    %1345 = vmatpush1.msra.mxu0 0.0
    %1346 = vmatprep.subr.mxu0 0.0
    %1347 = vmatpush1.msra.mxu0 0.0
    %1348 = vmatprep.subr.mxu0 0.0
    %1349 = vmatpush1.msra.mxu0 0.0
    %1350 = vmatprep.subr.mxu0 0.0
    %1351 = vmatpush1.msra.mxu0 0.0
    %1352 = vmatprep.subr.mxu0 0.0
    %1353 = vmatpush1.msra.mxu0 0.0
    %1354 = vmatprep.subr.mxu0 0.0
    %1355 = vmatpush1.msra.mxu0 0.0
    %1356 = vmatprep.subr.mxu0 0.0
    %1357 = vmatpush1.msra.mxu0 0.0
    %1358 = vmatprep.subr.mxu0 0.0
    %1359 = vmatpush1.msra.mxu0 0.0
    %1360 = vmatprep.subr.mxu0 0.0
    %1361 = vmatpush1.msra.mxu0 0.0
    %1362 = vmatprep.subr.mxu0 0.0
    %1363 = vmatpush1.msra.mxu0 0.0
    %1364 = vmatprep.subr.mxu0 0.0
    %1365 = vmatpush1.msra.mxu0 0.0
    %1366 = vmatprep.subr.mxu0 0.0
    %1367 = vmatpush1.msra.mxu0 0.0
    %1368 = vmatprep.subr.mxu0 0.0
    %1369 = vmatpush1.msra.mxu0 0.0
    %1370 = vmatprep.subr.mxu0 0.0
    %1371 = vmatpush1.msra.mxu0 0.0
    %1372 = vmatprep.subr.mxu0 0.0
    %1373 = vmatpush1.msra.mxu0 0.0
    %1374 = vmatprep.subr.mxu0 0.0
    %1375 = vmatpush1.msra.mxu0 0.0
    %1376 = vmatprep.subr.mxu0 0.0
    %1377 = vmatpush1.msra.mxu0 0.0
    %1378 = vmatprep.subr.mxu0 0.0
    %1379 = vmatpush1.msra.mxu0 0.0
    %1380 = vmatprep.mubr.f32.mxu0 0.0
    %1381 = vmatmul.mubr.f32.gmra.mrb[0].mxu0 %v1314
    %v1382 = vpop.f32.mrb[0].mxu0
    %v1383 = vadd.f32 0.0, %v1382
    %v1384 = vpop.f32.mrb[0].mxu0
    %1385 = vdwg.mxu0
    %v1386 = vld [vmem:[#allocation2 + $0x70] sm:$0xff]
    %v1388 = vsel %vm236, %v1307, 0
    %v1391 = vsel %vm236, %v1383, 0
    %1393 = vmatprep.subr.mxu0 0.0
    %1394 = vmatpush1.msra.mxu0 %v1386
    %1395 = vmatprep.subr.mxu0 0.0
    %1396 = vmatpush1.msra.mxu0 0.0
    %1397 = vmatprep.subr.mxu0 0.0
    %1398 = vmatpush1.msra.mxu0 0.0
    %1399 = vmatprep.subr.mxu0 0.0
    %1400 = vmatpush1.msra.mxu0 0.0
    %1401 = vmatprep.subr.mxu0 0.0
    %1402 = vmatpush1.msra.mxu0 0.0
    %1403 = vmatprep.subr.mxu0 0.0
    %1404 = vmatpush1.msra.mxu0 0.0
    %1405 = vmatprep.subr.mxu0 0.0
    %1406 = vmatpush1.msra.mxu0 0.0
    %1407 = vmatprep.subr.mxu0 0.0
    %1408 = vmatpush1.msra.mxu0 0.0
    %1409 = vmatprep.subr.mxu0 0.0
    %1410 = vmatpush1.msra.mxu0 0.0
    %1411 = vmatprep.subr.mxu0 0.0
    %1412 = vmatpush1.msra.mxu0 0.0
    %1413 = vmatprep.subr.mxu0 0.0
    %1414 = vmatpush1.msra.mxu0 0.0
    %1415 = vmatprep.subr.mxu0 0.0
    %1416 = vmatpush1.msra.mxu0 0.0
    %1417 = vmatprep.subr.mxu0 0.0
    %1418 = vmatpush1.msra.mxu0 0.0
    %1419 = vmatprep.subr.mxu0 0.0
    %1420 = vmatpush1.msra.mxu0 0.0
    %1421 = vmatprep.subr.mxu0 0.0
    %1422 = vmatpush1.msra.mxu0 0.0
    %1423 = vmatprep.subr.mxu0 0.0
    %1424 = vmatpush1.msra.mxu0 0.0
    %1425 = vmatprep.subr.mxu0 0.0
    %1426 = vmatpush1.msra.mxu0 0.0
    %1427 = vmatprep.subr.mxu0 0.0
    %1428 = vmatpush1.msra.mxu0 0.0
    %1429 = vmatprep.subr.mxu0 0.0
    %1430 = vmatpush1.msra.mxu0 0.0
    %1431 = vmatprep.subr.mxu0 0.0
    %1432 = vmatpush1.msra.mxu0 0.0
    %1433 = vmatprep.subr.mxu0 0.0
    %1434 = vmatpush1.msra.mxu0 0.0
    %1435 = vmatprep.subr.mxu0 0.0
    %1436 = vmatpush1.msra.mxu0 0.0
    %1437 = vmatprep.subr.mxu0 0.0
    %1438 = vmatpush1.msra.mxu0 0.0
    %1439 = vmatprep.subr.mxu0 0.0
    %1440 = vmatpush1.msra.mxu0 0.0
    %1441 = vmatprep.subr.mxu0 0.0
    %1442 = vmatpush1.msra.mxu0 0.0
    %1443 = vmatprep.subr.mxu0 0.0
    %1444 = vmatpush1.msra.mxu0 0.0
    %1445 = vmatprep.subr.mxu0 0.0
    %1446 = vmatpush1.msra.mxu0 0.0
    %1447 = vmatprep.subr.mxu0 0.0
    %1448 = vmatpush1.msra.mxu0 0.0
    %1449 = vmatprep.subr.mxu0 0.0
    %1450 = vmatpush1.msra.mxu0 0.0
    %1451 = vmatprep.subr.mxu0 0.0
    %1452 = vmatpush1.msra.mxu0 0.0
    %1453 = vmatprep.subr.mxu0 0.0
    %1454 = vmatpush1.msra.mxu0 0.0
    %1455 = vmatprep.subr.mxu0 0.0
    %1456 = vmatpush1.msra.mxu0 0.0
    %1457 = vmatprep.mubr.f32.mxu0 0.0
    %1458 = vmatmul.mubr.f32.gmra.mrb[0].mxu0 %v1388
    %v1459 = vpop.f32.mrb[0].mxu0
    %v1460 = vadd.f32 0.0, %v1459
    %v1461 = vpop.f32.mrb[0].mxu0
    %1462 = vmatprep.mubr.f32.mxu0 0.0
    %1463 = vmatmul.mubr.f32.gmra.mrb[0].mxu0 %v1391
    %v1464 = vpop.f32.mrb[0].mxu0
    %v1465 = vadd.f32 0.0, %v1464
    %v1466 = vpop.f32.mrb[0].mxu0
    %1467 = vdwg.mxu0
    %v1468 = vadd.f32 %v1048, %v1460
    %v1469 = vadd.f32 %v1053, %v1465
    %1470 = vrot.lane.b32.xlu0 %v225, 104
    %v1471 = vpop.permute.xlu0 %1470
    %1472 = vrot.lane.b32.xlu0 %v225, 72
    %v1473 = vpop.permute.xlu0 %1472
    %v1474 = vsel %vm236, %v1471, 0
    %v1476 = vsel %vm236, %v1473, 0
    %1478 = vmatprep.subr.mxu0 0.0
    %1479 = vmatpush1.xpose.msra.mxu0 %v1476
    %1480 = vmatprep.subr.mxu0 0.0
    %1481 = vmatpush1.xpose.msra.mxu0 0.0
    %1482 = vmatprep.subr.mxu0 0.0
    %1483 = vmatpush1.xpose.msra.mxu0 0.0
    %1484 = vmatprep.subr.mxu0 0.0
    %1485 = vmatpush1.xpose.msra.mxu0 0.0
    %1486 = vmatprep.subr.mxu0 0.0
    %1487 = vmatpush1.xpose.msra.mxu0 0.0
    %1488 = vmatprep.subr.mxu0 0.0
    %1489 = vmatpush1.xpose.msra.mxu0 0.0
    %1490 = vmatprep.subr.mxu0 0.0
    %1491 = vmatpush1.xpose.msra.mxu0 0.0
    %1492 = vmatprep.subr.mxu0 0.0
    %1493 = vmatpush1.xpose.msra.mxu0 0.0
    %1494 = vmatprep.subr.mxu0 0.0
    %1495 = vmatpush1.xpose.msra.mxu0 0.0
    %1496 = vmatprep.subr.mxu0 0.0
    %1497 = vmatpush1.xpose.msra.mxu0 0.0
    %1498 = vmatprep.subr.mxu0 0.0
    %1499 = vmatpush1.xpose.msra.mxu0 0.0
    %1500 = vmatprep.subr.mxu0 0.0
    %1501 = vmatpush1.xpose.msra.mxu0 0.0
    %1502 = vmatprep.subr.mxu0 0.0
    %1503 = vmatpush1.xpose.msra.mxu0 0.0
    %1504 = vmatprep.subr.mxu0 0.0
    %1505 = vmatpush1.xpose.msra.mxu0 0.0
    %1506 = vmatprep.subr.mxu0 0.0
    %1507 = vmatpush1.xpose.msra.mxu0 0.0
    %1508 = vmatprep.subr.mxu0 0.0
    %1509 = vmatpush1.xpose.msra.mxu0 0.0
    %1510 = vmatprep.subr.mxu0 0.0
    %1511 = vmatpush1.xpose.msra.mxu0 0.0
    %1512 = vmatprep.subr.mxu0 0.0
    %1513 = vmatpush1.xpose.msra.mxu0 0.0
    %1514 = vmatprep.subr.mxu0 0.0
    %1515 = vmatpush1.xpose.msra.mxu0 0.0
    %1516 = vmatprep.subr.mxu0 0.0
    %1517 = vmatpush1.xpose.msra.mxu0 0.0
    %1518 = vmatprep.subr.mxu0 0.0
    %1519 = vmatpush1.xpose.msra.mxu0 0.0
    %1520 = vmatprep.subr.mxu0 0.0
    %1521 = vmatpush1.xpose.msra.mxu0 0.0
    %1522 = vmatprep.subr.mxu0 0.0
    %1523 = vmatpush1.xpose.msra.mxu0 0.0
    %1524 = vmatprep.subr.mxu0 0.0
    %1525 = vmatpush1.xpose.msra.mxu0 0.0
    %1526 = vmatprep.subr.mxu0 0.0
    %1527 = vmatpush1.xpose.msra.mxu0 0.0
    %1528 = vmatprep.subr.mxu0 0.0
    %1529 = vmatpush1.xpose.msra.mxu0 0.0
    %1530 = vmatprep.subr.mxu0 0.0
    %1531 = vmatpush1.xpose.msra.mxu0 0.0
    %1532 = vmatprep.subr.mxu0 0.0
    %1533 = vmatpush1.xpose.msra.mxu0 0.0
    %1534 = vmatprep.subr.mxu0 0.0
    %1535 = vmatpush1.xpose.msra.mxu0 0.0
    %1536 = vmatprep.subr.mxu0 0.0
    %1537 = vmatpush1.xpose.msra.mxu0 0.0
    %1538 = vmatprep.subr.mxu0 0.0
    %1539 = vmatpush1.xpose.msra.mxu0 0.0
    %1540 = vmatprep.subr.mxu0 0.0
    %1541 = vmatpush1.xpose.msra.mxu0 0.0
    %1542 = vmatprep.mubr.f32.mxu0 0.0
    %1543 = vmatmul.mubr.f32.gmra.mrb[0].mxu0 %v1474
    %v1544 = vpop.f32.mrb[0].mxu0
    %v1545 = vadd.f32 0.0, %v1544
    %v1546 = vpop.f32.mrb[0].mxu0
    %1547 = vdwg.mxu0
    %1548 = vrot.lane.b32.xlu0 %v230, 104
    %v1549 = vpop.permute.xlu0 %1548
    %1550 = vrot.lane.b32.xlu0 %v230, 72
    %v1551 = vpop.permute.xlu0 %1550
    %v1552 = vsel %vm236, %v1549, 0
    %v1554 = vsel %vm236, %v1551, 0
    %1556 = vmatprep.subr.mxu0 0.0
    %1557 = vmatpush1.xpose.msra.mxu0 %v1554
    %1558 = vmatprep.subr.mxu0 0.0
    %1559 = vmatpush1.xpose.msra.mxu0 0.0
    %1560 = vmatprep.subr.mxu0 0.0
    %1561 = vmatpush1.xpose.msra.mxu0 0.0
    %1562 = vmatprep.subr.mxu0 0.0
    %1563 = vmatpush1.xpose.msra.mxu0 0.0
    %1564 = vmatprep.subr.mxu0 0.0
    %1565 = vmatpush1.xpose.msra.mxu0 0.0
    %1566 = vmatprep.subr.mxu0 0.0
    %1567 = vmatpush1.xpose.msra.mxu0 0.0
    %1568 = vmatprep.subr.mxu0 0.0
    %1569 = vmatpush1.xpose.msra.mxu0 0.0
    %1570 = vmatprep.subr.mxu0 0.0
    %1571 = vmatpush1.xpose.msra.mxu0 0.0
    %1572 = vmatprep.subr.mxu0 0.0
    %1573 = vmatpush1.xpose.msra.mxu0 0.0
    %1574 = vmatprep.subr.mxu0 0.0
    %1575 = vmatpush1.xpose.msra.mxu0 0.0
    %1576 = vmatprep.subr.mxu0 0.0
    %1577 = vmatpush1.xpose.msra.mxu0 0.0
    %1578 = vmatprep.subr.mxu0 0.0
    %1579 = vmatpush1.xpose.msra.mxu0 0.0
    %1580 = vmatprep.subr.mxu0 0.0
    %1581 = vmatpush1.xpose.msra.mxu0 0.0
    %1582 = vmatprep.subr.mxu0 0.0
    %1583 = vmatpush1.xpose.msra.mxu0 0.0
    %1584 = vmatprep.subr.mxu0 0.0
    %1585 = vmatpush1.xpose.msra.mxu0 0.0
    %1586 = vmatprep.subr.mxu0 0.0
    %1587 = vmatpush1.xpose.msra.mxu0 0.0
    %1588 = vmatprep.subr.mxu0 0.0
    %1589 = vmatpush1.xpose.msra.mxu0 0.0
    %1590 = vmatprep.subr.mxu0 0.0
    %1591 = vmatpush1.xpose.msra.mxu0 0.0
    %1592 = vmatprep.subr.mxu0 0.0
    %1593 = vmatpush1.xpose.msra.mxu0 0.0
    %1594 = vmatprep.subr.mxu0 0.0
    %1595 = vmatpush1.xpose.msra.mxu0 0.0
    %1596 = vmatprep.subr.mxu0 0.0
    %1597 = vmatpush1.xpose.msra.mxu0 0.0
    %1598 = vmatprep.subr.mxu0 0.0
    %1599 = vmatpush1.xpose.msra.mxu0 0.0
    %1600 = vmatprep.subr.mxu0 0.0
    %1601 = vmatpush1.xpose.msra.mxu0 0.0
    %1602 = vmatprep.subr.mxu0 0.0
    %1603 = vmatpush1.xpose.msra.mxu0 0.0
    %1604 = vmatprep.subr.mxu0 0.0
    %1605 = vmatpush1.xpose.msra.mxu0 0.0
    %1606 = vmatprep.subr.mxu0 0.0
    %1607 = vmatpush1.xpose.msra.mxu0 0.0
    %1608 = vmatprep.subr.mxu0 0.0
    %1609 = vmatpush1.xpose.msra.mxu0 0.0
    %1610 = vmatprep.subr.mxu0 0.0
    %1611 = vmatpush1.xpose.msra.mxu0 0.0
    %1612 = vmatprep.subr.mxu0 0.0
    %1613 = vmatpush1.xpose.msra.mxu0 0.0
    %1614 = vmatprep.subr.mxu0 0.0
    %1615 = vmatpush1.xpose.msra.mxu0 0.0
    %1616 = vmatprep.subr.mxu0 0.0
    %1617 = vmatpush1.xpose.msra.mxu0 0.0
    %1618 = vmatprep.subr.mxu0 0.0
    %1619 = vmatpush1.xpose.msra.mxu0 0.0
    %1620 = vmatprep.mubr.f32.mxu0 0.0
    %1621 = vmatmul.mubr.f32.gmra.mrb[0].mxu0 %v1552
    %v1622 = vpop.f32.mrb[0].mxu0
    %v1623 = vadd.f32 0.0, %v1622
    %v1624 = vpop.f32.mrb[0].mxu0
    %1625 = vdwg.mxu0
    %v1626 = vsel %vm236, %v1545, -inf
    %1627 = vmax.xlane.f32.xlu0 %v1626
    %v1628 = vpop.xlane.xlu0 %1627
    %v1629 = vsel %vm236, %v1623, -inf
    %1630 = vmax.xlane.f32.xlu0 %v1629
    %v1631 = vpop.xlane.xlu0 %1630
    %v1632 = vsub.f32 %v1545, %v1628
    %v1633 = vsub.f32 %v1623, %v1631
    %v1634 = vmul.f32 %v1632, 1.442695
    %v1635 = vpow.pop %v1634
    %v1636 = vmul.f32 %v1633, 1.442695
    %v1637 = vpow.pop %v1636
    %v1638 = vsel %vm236, %v1635, 0.0
    %1639 = vadd.xlane.f32.xlu0 %v1638
    %v1640 = vpop.xlane.xlu0 %1639
    %v1641 = vsel %vm236, %v1637, 0.0
    %1642 = vadd.xlane.f32.xlu0 %v1641
    %v1643 = vpop.xlane.xlu0 %1642
    %v1644 = vrcp.pop %v1640
    %v1645 = vmul.f32 %v1635, %v1644
    %v1646 = vrcp.pop %v1643
    %v1647 = vmul.f32 %v1637, %v1646
    %1648 = vrot.lane.b32.xlu0 %v225, 40
    %v1649 = vpop.permute.xlu0 %1648
    %v1652 = vsel %vm236, %v1645, 0
    %1654 = vmatprep.subr.mxu0 0.0
    %1655 = vmatpush1.msra.mxu0 %v1649
    %1656 = vmatprep.subr.mxu0 0.0
    %1657 = vmatpush1.msra.mxu0 0.0
    %1658 = vmatprep.subr.mxu0 0.0
    %1659 = vmatpush1.msra.mxu0 0.0
    %1660 = vmatprep.subr.mxu0 0.0
    %1661 = vmatpush1.msra.mxu0 0.0
    %1662 = vmatprep.subr.mxu0 0.0
    %1663 = vmatpush1.msra.mxu0 0.0
    %1664 = vmatprep.subr.mxu0 0.0
    %1665 = vmatpush1.msra.mxu0 0.0
    %1666 = vmatprep.subr.mxu0 0.0
    %1667 = vmatpush1.msra.mxu0 0.0
    %1668 = vmatprep.subr.mxu0 0.0
    %1669 = vmatpush1.msra.mxu0 0.0
    %1670 = vmatprep.subr.mxu0 0.0
    %1671 = vmatpush1.msra.mxu0 0.0
    %1672 = vmatprep.subr.mxu0 0.0
    %1673 = vmatpush1.msra.mxu0 0.0
    %1674 = vmatprep.subr.mxu0 0.0
    %1675 = vmatpush1.msra.mxu0 0.0
    %1676 = vmatprep.subr.mxu0 0.0
    %1677 = vmatpush1.msra.mxu0 0.0
    %1678 = vmatprep.subr.mxu0 0.0
    %1679 = vmatpush1.msra.mxu0 0.0
    %1680 = vmatprep.subr.mxu0 0.0
    %1681 = vmatpush1.msra.mxu0 0.0
    %1682 = vmatprep.subr.mxu0 0.0
    %1683 = vmatpush1.msra.mxu0 0.0
    %1684 = vmatprep.subr.mxu0 0.0
    %1685 = vmatpush1.msra.mxu0 0.0
    %1686 = vmatprep.subr.mxu0 0.0
    %1687 = vmatpush1.msra.mxu0 0.0
    %1688 = vmatprep.subr.mxu0 0.0
    %1689 = vmatpush1.msra.mxu0 0.0
    %1690 = vmatprep.subr.mxu0 0.0
    %1691 = vmatpush1.msra.mxu0 0.0
    %1692 = vmatprep.subr.mxu0 0.0
    %1693 = vmatpush1.msra.mxu0 0.0
    %1694 = vmatprep.subr.mxu0 0.0
    %1695 = vmatpush1.msra.mxu0 0.0
    %1696 = vmatprep.subr.mxu0 0.0
    %1697 = vmatpush1.msra.mxu0 0.0
    %1698 = vmatprep.subr.mxu0 0.0
    %1699 = vmatpush1.msra.mxu0 0.0
    %1700 = vmatprep.subr.mxu0 0.0
    %1701 = vmatpush1.msra.mxu0 0.0
    %1702 = vmatprep.subr.mxu0 0.0
    %1703 = vmatpush1.msra.mxu0 0.0
    %1704 = vmatprep.subr.mxu0 0.0
    %1705 = vmatpush1.msra.mxu0 0.0
    %1706 = vmatprep.subr.mxu0 0.0
    %1707 = vmatpush1.msra.mxu0 0.0
    %1708 = vmatprep.subr.mxu0 0.0
    %1709 = vmatpush1.msra.mxu0 0.0
    %1710 = vmatprep.subr.mxu0 0.0
    %1711 = vmatpush1.msra.mxu0 0.0
    %1712 = vmatprep.subr.mxu0 0.0
    %1713 = vmatpush1.msra.mxu0 0.0
    %1714 = vmatprep.subr.mxu0 0.0
    %1715 = vmatpush1.msra.mxu0 0.0
    %1716 = vmatprep.subr.mxu0 0.0
    %1717 = vmatpush1.msra.mxu0 0.0
    %1718 = vmatprep.mubr.f32.mxu0 0.0
    %1719 = vmatmul.mubr.f32.gmra.mrb[0].mxu0 %v1652
    %v1720 = vpop.f32.mrb[0].mxu0
    %v1721 = vadd.f32 0.0, %v1720
    %v1722 = vpop.f32.mrb[0].mxu0
    %1723 = vdwg.mxu0
    %1724 = vrot.lane.b32.xlu0 %v230, 40
    %v1725 = vpop.permute.xlu0 %1724
    %v1728 = vsel %vm236, %v1647, 0
    %1730 = vmatprep.subr.mxu0 0.0
    %1731 = vmatpush1.msra.mxu0 %v1725
    %1732 = vmatprep.subr.mxu0 0.0
    %1733 = vmatpush1.msra.mxu0 0.0
    %1734 = vmatprep.subr.mxu0 0.0
    %1735 = vmatpush1.msra.mxu0 0.0
    %1736 = vmatprep.subr.mxu0 0.0
    %1737 = vmatpush1.msra.mxu0 0.0
    %1738 = vmatprep.subr.mxu0 0.0
    %1739 = vmatpush1.msra.mxu0 0.0
    %1740 = vmatprep.subr.mxu0 0.0
    %1741 = vmatpush1.msra.mxu0 0.0
    %1742 = vmatprep.subr.mxu0 0.0
    %1743 = vmatpush1.msra.mxu0 0.0
    %1744 = vmatprep.subr.mxu0 0.0
    %1745 = vmatpush1.msra.mxu0 0.0
    %1746 = vmatprep.subr.mxu0 0.0
    %1747 = vmatpush1.msra.mxu0 0.0
    %1748 = vmatprep.subr.mxu0 0.0
    %1749 = vmatpush1.msra.mxu0 0.0
    %1750 = vmatprep.subr.mxu0 0.0
    %1751 = vmatpush1.msra.mxu0 0.0
    %1752 = vmatprep.subr.mxu0 0.0
    %1753 = vmatpush1.msra.mxu0 0.0
    %1754 = vmatprep.subr.mxu0 0.0
    %1755 = vmatpush1.msra.mxu0 0.0
    %1756 = vmatprep.subr.mxu0 0.0
    %1757 = vmatpush1.msra.mxu0 0.0
    %1758 = vmatprep.subr.mxu0 0.0
    %1759 = vmatpush1.msra.mxu0 0.0
    %1760 = vmatprep.subr.mxu0 0.0
    %1761 = vmatpush1.msra.mxu0 0.0
    %1762 = vmatprep.subr.mxu0 0.0
    %1763 = vmatpush1.msra.mxu0 0.0
    %1764 = vmatprep.subr.mxu0 0.0
    %1765 = vmatpush1.msra.mxu0 0.0
    %1766 = vmatprep.subr.mxu0 0.0
    %1767 = vmatpush1.msra.mxu0 0.0
    %1768 = vmatprep.subr.mxu0 0.0
    %1769 = vmatpush1.msra.mxu0 0.0
    %1770 = vmatprep.subr.mxu0 0.0
    %1771 = vmatpush1.msra.mxu0 0.0
    %1772 = vmatprep.subr.mxu0 0.0
    %1773 = vmatpush1.msra.mxu0 0.0
    %1774 = vmatprep.subr.mxu0 0.0
    %1775 = vmatpush1.msra.mxu0 0.0
    %1776 = vmatprep.subr.mxu0 0.0
    %1777 = vmatpush1.msra.mxu0 0.0
    %1778 = vmatprep.subr.mxu0 0.0
    %1779 = vmatpush1.msra.mxu0 0.0
    %1780 = vmatprep.subr.mxu0 0.0
    %1781 = vmatpush1.msra.mxu0 0.0
    %1782 = vmatprep.subr.mxu0 0.0
    %1783 = vmatpush1.msra.mxu0 0.0
    %1784 = vmatprep.subr.mxu0 0.0
    %1785 = vmatpush1.msra.mxu0 0.0
    %1786 = vmatprep.subr.mxu0 0.0
    %1787 = vmatpush1.msra.mxu0 0.0
    %1788 = vmatprep.subr.mxu0 0.0
    %1789 = vmatpush1.msra.mxu0 0.0
    %1790 = vmatprep.subr.mxu0 0.0
    %1791 = vmatpush1.msra.mxu0 0.0
    %1792 = vmatprep.subr.mxu0 0.0
    %1793 = vmatpush1.msra.mxu0 0.0
    %1794 = vmatprep.mubr.f32.mxu0 0.0
    %1795 = vmatmul.mubr.f32.gmra.mrb[0].mxu0 %v1728
    %v1796 = vpop.f32.mrb[0].mxu0
    %v1797 = vadd.f32 0.0, %v1796
    %v1798 = vpop.f32.mrb[0].mxu0
    %1799 = vdwg.mxu0
    %v1800 = vld [vmem:[#allocation2 + $0x78] sm:$0xff]
    %v1802 = vsel %vm236, %v1721, 0
    %v1805 = vsel %vm236, %v1797, 0
    %1807 = vmatprep.subr.mxu0 0.0
    %1808 = vmatpush1.msra.mxu0 %v1800
    %1809 = vmatprep.subr.mxu0 0.0
    %1810 = vmatpush1.msra.mxu0 0.0
    %1811 = vmatprep.subr.mxu0 0.0
    %1812 = vmatpush1.msra.mxu0 0.0
    %1813 = vmatprep.subr.mxu0 0.0
    %1814 = vmatpush1.msra.mxu0 0.0
    %1815 = vmatprep.subr.mxu0 0.0
    %1816 = vmatpush1.msra.mxu0 0.0
    %1817 = vmatprep.subr.mxu0 0.0
    %1818 = vmatpush1.msra.mxu0 0.0
    %1819 = vmatprep.subr.mxu0 0.0
    %1820 = vmatpush1.msra.mxu0 0.0
    %1821 = vmatprep.subr.mxu0 0.0
    %1822 = vmatpush1.msra.mxu0 0.0
    %1823 = vmatprep.subr.mxu0 0.0
    %1824 = vmatpush1.msra.mxu0 0.0
    %1825 = vmatprep.subr.mxu0 0.0
    %1826 = vmatpush1.msra.mxu0 0.0
    %1827 = vmatprep.subr.mxu0 0.0
    %1828 = vmatpush1.msra.mxu0 0.0
    %1829 = vmatprep.subr.mxu0 0.0
    %1830 = vmatpush1.msra.mxu0 0.0
    %1831 = vmatprep.subr.mxu0 0.0
    %1832 = vmatpush1.msra.mxu0 0.0
    %1833 = vmatprep.subr.mxu0 0.0
    %1834 = vmatpush1.msra.mxu0 0.0
    %1835 = vmatprep.subr.mxu0 0.0
    %1836 = vmatpush1.msra.mxu0 0.0
    %1837 = vmatprep.subr.mxu0 0.0
    %1838 = vmatpush1.msra.mxu0 0.0
    %1839 = vmatprep.subr.mxu0 0.0
    %1840 = vmatpush1.msra.mxu0 0.0
    %1841 = vmatprep.subr.mxu0 0.0
    %1842 = vmatpush1.msra.mxu0 0.0
    %1843 = vmatprep.subr.mxu0 0.0
    %1844 = vmatpush1.msra.mxu0 0.0
    %1845 = vmatprep.subr.mxu0 0.0
    %1846 = vmatpush1.msra.mxu0 0.0
    %1847 = vmatprep.subr.mxu0 0.0
    %1848 = vmatpush1.msra.mxu0 0.0
    %1849 = vmatprep.subr.mxu0 0.0
    %1850 = vmatpush1.msra.mxu0 0.0
    %1851 = vmatprep.subr.mxu0 0.0
    %1852 = vmatpush1.msra.mxu0 0.0
    %1853 = vmatprep.subr.mxu0 0.0
    %1854 = vmatpush1.msra.mxu0 0.0
    %1855 = vmatprep.subr.mxu0 0.0
    %1856 = vmatpush1.msra.mxu0 0.0
    %1857 = vmatprep.subr.mxu0 0.0
    %1858 = vmatpush1.msra.mxu0 0.0
    %1859 = vmatprep.subr.mxu0 0.0
    %1860 = vmatpush1.msra.mxu0 0.0
    %1861 = vmatprep.subr.mxu0 0.0
    %1862 = vmatpush1.msra.mxu0 0.0
    %1863 = vmatprep.subr.mxu0 0.0
    %1864 = vmatpush1.msra.mxu0 0.0
    %1865 = vmatprep.subr.mxu0 0.0
    %1866 = vmatpush1.msra.mxu0 0.0
    %1867 = vmatprep.subr.mxu0 0.0
    %1868 = vmatpush1.msra.mxu0 0.0
    %1869 = vmatprep.subr.mxu0 0.0
    %1870 = vmatpush1.msra.mxu0 0.0
    %1871 = vmatprep.mubr.f32.mxu0 0.0
    %1872 = vmatmul.mubr.f32.gmra.mrb[0].mxu0 %v1802
    %v1873 = vpop.f32.mrb[0].mxu0
    %v1874 = vadd.f32 0.0, %v1873
    %v1875 = vpop.f32.mrb[0].mxu0
    %1876 = vmatprep.mubr.f32.mxu0 0.0
    %1877 = vmatmul.mubr.f32.gmra.mrb[0].mxu0 %v1805
    %v1878 = vpop.f32.mrb[0].mxu0
    %v1879 = vadd.f32 0.0, %v1878
    %v1880 = vpop.f32.mrb[0].mxu0
    %1881 = vdwg.mxu0
    %v1882 = vadd.f32 %v1468, %v1874
    %v1883 = vadd.f32 %v1469, %v1879
    %v1884 = vadd.f32 %v122, %v1882
    %v1885 = vadd.f32 %v127, %v1883
    %v1886 = vlaneseq
    %v1887 = vshrl.u32 %v1886, 7
    %v1888 = vsub.s32 1, %v1887
    %v1889 = vrot.slane %v146, %v1888
    %v1890 = vadd.f32 %v1884, %v1889
    %v1891 = vadd.f32 %v1885, %v1889
    %v1892 = vsel %vm151, %v1890, 0.0
    %1893 = vadd.xlane.f32.xlu0 %v1892
    %v1894 = vpop.xlane.xlu0 %1893
    %v1895 = vsel %vm151, %v1891, 0.0
    %1896 = vadd.xlane.f32.xlu0 %v1895
    %v1897 = vpop.xlane.xlu0 %1896
    %v1898 = vrcp.pop 32.0
    %v1899 = vmul.f32 %v1894, %v1898
    %v1900 = vmul.f32 %v1897, %v1898
    %v1901 = vsub.f32 %v1890, %v1899
    %v1902 = vsub.f32 %v1891, %v1900
    %v1903 = vmul.f32 %v1901, %v1901
    %v1904 = vmul.f32 %v1902, %v1902
    %v1905 = vsel %vm151, %v1903, 0.0
    %1906 = vadd.xlane.f32.xlu0 %v1905
    %v1907 = vpop.xlane.xlu0 %1906
    %v1908 = vsel %vm151, %v1904, 0.0
    %1909 = vadd.xlane.f32.xlu0 %v1908
    %v1910 = vpop.xlane.xlu0 %1909
    %v1911 = vmul.f32 %v1907, %v1898
    %v1912 = vmul.f32 %v1910, %v1898
    %v1913 = vadd.f32 %v1911, 1e-05
    %v1914 = vadd.f32 %v1912, 1e-05
    %v1915 = vrsqrt.pop %v1913
    %v1916 = vrsqrt.pop %v1914
    %v1917 = vmul.f32 %v1901, %v1915
    %v1918 = vmul.f32 %v1902, %v1916
    %v1919 = vlaneseq
    %v1920 = vshrl.u32 %v1919, 7
    %v1921 = vsub.s32 4, %v1920
    %v1922 = vrot.slane %v146, %v1921
    %v1923 = vmul.f32 %v1917, %v1922
    %v1924 = vmul.f32 %v1918, %v1922
    %v1925 = vlaneseq
    %v1926 = vshrl.u32 %v1925, 7
    %v1927 = vsub.s32 5, %v1926
    %v1928 = vrot.slane %v146, %v1927
    %v1929 = vadd.f32 %v1923, %v1928
    %v1930 = vadd.f32 %v1924, %v1928
    %v1931 = vlaneseq
    %v1932 = vshrl.u32 %v1931, 7
    %v1933 = vsub.s32 2, %v1932
    %v1934 = vrot.slane %v146, %v1933
    %v1936 = vsel %vm151, %v1929, 0
    %v1939 = vsel %vm151, %v1930, 0
    %1941 = vmatprep.subr.mxu0 0.0
    %1942 = vmatpush1.msra.mxu0 %v134
    %1943 = vmatprep.subr.mxu0 0.0
    %1944 = vmatpush1.msra.mxu0 %v135
    %1945 = vmatprep.subr.mxu0 0.0
    %1946 = vmatpush1.msra.mxu0 %v136
    %1947 = vmatprep.subr.mxu0 0.0
    %1948 = vmatpush1.msra.mxu0 %v137
    %1949 = vmatprep.subr.mxu0 0.0
    %1950 = vmatpush1.msra.mxu0 0.0
    %1951 = vmatprep.subr.mxu0 0.0
    %1952 = vmatpush1.msra.mxu0 0.0
    %1953 = vmatprep.subr.mxu0 0.0
    %1954 = vmatpush1.msra.mxu0 0.0
    %1955 = vmatprep.subr.mxu0 0.0
    %1956 = vmatpush1.msra.mxu0 0.0
    %1957 = vmatprep.subr.mxu0 0.0
    %1958 = vmatpush1.msra.mxu0 0.0
    %1959 = vmatprep.subr.mxu0 0.0
    %1960 = vmatpush1.msra.mxu0 0.0
    %1961 = vmatprep.subr.mxu0 0.0
    %1962 = vmatpush1.msra.mxu0 0.0
    %1963 = vmatprep.subr.mxu0 0.0
    %1964 = vmatpush1.msra.mxu0 0.0
    %1965 = vmatprep.subr.mxu0 0.0
    %1966 = vmatpush1.msra.mxu0 0.0
    %1967 = vmatprep.subr.mxu0 0.0
    %1968 = vmatpush1.msra.mxu0 0.0
    %1969 = vmatprep.subr.mxu0 0.0
    %1970 = vmatpush1.msra.mxu0 0.0
    %1971 = vmatprep.subr.mxu0 0.0
    %1972 = vmatpush1.msra.mxu0 0.0
    %1973 = vmatprep.subr.mxu0 0.0
    %1974 = vmatpush1.msra.mxu0 0.0
    %1975 = vmatprep.subr.mxu0 0.0
    %1976 = vmatpush1.msra.mxu0 0.0
    %1977 = vmatprep.subr.mxu0 0.0
    %1978 = vmatpush1.msra.mxu0 0.0
    %1979 = vmatprep.subr.mxu0 0.0
    %1980 = vmatpush1.msra.mxu0 0.0
    %1981 = vmatprep.subr.mxu0 0.0
    %1982 = vmatpush1.msra.mxu0 0.0
    %1983 = vmatprep.subr.mxu0 0.0
    %1984 = vmatpush1.msra.mxu0 0.0
    %1985 = vmatprep.subr.mxu0 0.0
    %1986 = vmatpush1.msra.mxu0 0.0
    %1987 = vmatprep.subr.mxu0 0.0
    %1988 = vmatpush1.msra.mxu0 0.0
    %1989 = vmatprep.subr.mxu0 0.0
    %1990 = vmatpush1.msra.mxu0 0.0
    %1991 = vmatprep.subr.mxu0 0.0
    %1992 = vmatpush1.msra.mxu0 0.0
    %1993 = vmatprep.subr.mxu0 0.0
    %1994 = vmatpush1.msra.mxu0 0.0
    %1995 = vmatprep.subr.mxu0 0.0
    %1996 = vmatpush1.msra.mxu0 0.0
    %1997 = vmatprep.subr.mxu0 0.0
    %1998 = vmatpush1.msra.mxu0 0.0
    %1999 = vmatprep.subr.mxu0 0.0
    %2000 = vmatpush1.msra.mxu0 0.0
    %2001 = vmatprep.subr.mxu0 0.0
    %2002 = vmatpush1.msra.mxu0 0.0
    %2003 = vmatprep.subr.mxu0 0.0
    %2004 = vmatpush1.msra.mxu0 0.0
    %2005 = vmatprep.mubr.f32.mxu0 0.0
    %2006 = vmatmul.mubr.f32.gmra.mrb[0].mxu0 %v1936
    %v2007 = vpop.f32.mrb[0].mxu0
    %v2008 = vadd.f32 %v1934, %v2007
    %v2009 = vpop.f32.mrb[0].mxu0
    %2010 = vmatprep.mubr.f32.mxu0 0.0
    %2011 = vmatmul.mubr.f32.gmra.mrb[0].mxu0 %v1939
    %v2012 = vpop.f32.mrb[0].mxu0
    %v2013 = vadd.f32 %v1934, %v2012
    %v2014 = vpop.f32.mrb[0].mxu0
    %2015 = vdwg.mxu0
    %v2016 = vmax.f32 %v2008, 0.0
    %v2017 = vmax.f32 %v2013, 0.0
    %v2018 = vlaneseq
    %v2019 = vshrl.u32 %v2018, 7
    %v2020 = vsub.s32 3, %v2019
    %v2021 = vrot.slane %v146, %v2020
    %v2023 = vsel %vm48, %v2016, 0
    %v2026 = vsel %vm48, %v2017, 0
    %2028 = vmatprep.subr.mxu0 0.0
    %2029 = vmatpush1.msra.mxu0 %v138
    %2030 = vmatprep.subr.mxu0 0.0
    %2031 = vmatpush1.msra.mxu0 %v139
    %2032 = vmatprep.subr.mxu0 0.0
    %2033 = vmatpush1.msra.mxu0 %v140
    %2034 = vmatprep.subr.mxu0 0.0
    %2035 = vmatpush1.msra.mxu0 %v141
    %2036 = vmatprep.subr.mxu0 0.0
    %2037 = vmatpush1.msra.mxu0 %v142
    %2038 = vmatprep.subr.mxu0 0.0
    %2039 = vmatpush1.msra.mxu0 %v143
    %2040 = vmatprep.subr.mxu0 0.0
    %2041 = vmatpush1.msra.mxu0 %v144
    %2042 = vmatprep.subr.mxu0 0.0
    %2043 = vmatpush1.msra.mxu0 %v145
    %2044 = vmatprep.subr.mxu0 0.0
    %2045 = vmatpush1.msra.mxu0 0.0
    %2046 = vmatprep.subr.mxu0 0.0
    %2047 = vmatpush1.msra.mxu0 0.0
    %2048 = vmatprep.subr.mxu0 0.0
    %2049 = vmatpush1.msra.mxu0 0.0
    %2050 = vmatprep.subr.mxu0 0.0
    %2051 = vmatpush1.msra.mxu0 0.0
    %2052 = vmatprep.subr.mxu0 0.0
    %2053 = vmatpush1.msra.mxu0 0.0
    %2054 = vmatprep.subr.mxu0 0.0
    %2055 = vmatpush1.msra.mxu0 0.0
    %2056 = vmatprep.subr.mxu0 0.0
    %2057 = vmatpush1.msra.mxu0 0.0
    %2058 = vmatprep.subr.mxu0 0.0
    %2059 = vmatpush1.msra.mxu0 0.0
    %2060 = vmatprep.subr.mxu0 0.0
    %2061 = vmatpush1.msra.mxu0 0.0
    %2062 = vmatprep.subr.mxu0 0.0
    %2063 = vmatpush1.msra.mxu0 0.0
    %2064 = vmatprep.subr.mxu0 0.0
    %2065 = vmatpush1.msra.mxu0 0.0
    %2066 = vmatprep.subr.mxu0 0.0
    %2067 = vmatpush1.msra.mxu0 0.0
    %2068 = vmatprep.subr.mxu0 0.0
    %2069 = vmatpush1.msra.mxu0 0.0
    %2070 = vmatprep.subr.mxu0 0.0
    %2071 = vmatpush1.msra.mxu0 0.0
    %2072 = vmatprep.subr.mxu0 0.0
    %2073 = vmatpush1.msra.mxu0 0.0
    %2074 = vmatprep.subr.mxu0 0.0
    %2075 = vmatpush1.msra.mxu0 0.0
    %2076 = vmatprep.subr.mxu0 0.0
    %2077 = vmatpush1.msra.mxu0 0.0
    %2078 = vmatprep.subr.mxu0 0.0
    %2079 = vmatpush1.msra.mxu0 0.0
    %2080 = vmatprep.subr.mxu0 0.0
    %2081 = vmatpush1.msra.mxu0 0.0
    %2082 = vmatprep.subr.mxu0 0.0
    %2083 = vmatpush1.msra.mxu0 0.0
    %2084 = vmatprep.subr.mxu0 0.0
    %2085 = vmatpush1.msra.mxu0 0.0
    %2086 = vmatprep.subr.mxu0 0.0
    %2087 = vmatpush1.msra.mxu0 0.0
    %2088 = vmatprep.subr.mxu0 0.0
    %2089 = vmatpush1.msra.mxu0 0.0
    %2090 = vmatprep.subr.mxu0 0.0
    %2091 = vmatpush1.msra.mxu0 0.0
    %2092 = vmatprep.mubr.f32.mxu0 0.0
    %2093 = vmatmul.mubr.f32.gmra.mrb[0].mxu0 %v2023
    %v2094 = vpop.f32.mrb[0].mxu0
    %v2095 = vadd.f32 %v2021, %v2094
    %v2096 = vpop.f32.mrb[0].mxu0
    %2097 = vmatprep.mubr.f32.mxu0 0.0
    %2098 = vmatmul.mubr.f32.gmra.mrb[0].mxu0 %v2026
    %v2099 = vpop.f32.mrb[0].mxu0
    %v2100 = vadd.f32 %v2021, %v2099
    %v2101 = vpop.f32.mrb[0].mxu0
    %2102 = vdwg.mxu0
    %v2103 = vadd.f32 %v1929, %v2095
    %v2104 = vadd.f32 %v1930, %v2100
    %v2105 = vsel %vm151, %v2103, 0.0
    %2106 = vadd.xlane.f32.xlu0 %v2105
    %v2107 = vpop.xlane.xlu0 %2106
    %v2108 = vsel %vm151, %v2104, 0.0
    %2109 = vadd.xlane.f32.xlu0 %v2108
    %v2110 = vpop.xlane.xlu0 %2109
    %v2111 = vmul.f32 %v2107, %v1898
    %v2112 = vmul.f32 %v2110, %v1898
    %v2113 = vsub.f32 %v2103, %v2111
    %v2114 = vsub.f32 %v2104, %v2112
    %v2115 = vmul.f32 %v2113, %v2113
    %v2116 = vmul.f32 %v2114, %v2114
    %v2117 = vsel %vm151, %v2115, 0.0
    %2118 = vadd.xlane.f32.xlu0 %v2117
    %v2119 = vpop.xlane.xlu0 %2118
    %v2120 = vsel %vm151, %v2116, 0.0
    %2121 = vadd.xlane.f32.xlu0 %v2120
    %v2122 = vpop.xlane.xlu0 %2121
    %v2123 = vmul.f32 %v2119, %v1898
    %v2124 = vmul.f32 %v2122, %v1898
    %v2125 = vadd.f32 %v2123, 1e-05
    %v2126 = vadd.f32 %v2124, 1e-05
    %v2127 = vrsqrt.pop %v2125
    %v2128 = vrsqrt.pop %v2126
    %v2129 = vmul.f32 %v2113, %v2127
    %v2130 = vmul.f32 %v2114, %v2128
    %v2131 = vlaneseq
    %v2132 = vshrl.u32 %v2131, 7
    %v2133 = vsub.s32 6, %v2132
    %v2134 = vrot.slane %v146, %v2133
    %v2135 = vmul.f32 %v2129, %v2134
    %v2136 = vmul.f32 %v2130, %v2134
    %v2137 = vlaneseq
    %v2138 = vshrl.u32 %v2137, 7
    %v2139 = vsub.s32 7, %v2138
    %v2140 = vrot.slane %v146, %v2139
    %v2141 = vadd.f32 %v2135, %v2140
    %v2142 = vadd.f32 %v2136, %v2140
    %v2143 = vld [vmem:[#allocation2 + $0xe8] sm:$0xff]
    %v2144 = vld [vmem:[#allocation2 + $0xf0] sm:$0xff]
    %v2145 = vld [vmem:[#allocation2 + $0xf8] sm:$0xff]
    %v2146 = vld [vmem:[#allocation2 + $0x100] sm:$0xff]
    %v2147 = vld [vmem:[#allocation2 + $0x128] sm:$0xff]
    %v2148 = vld [vmem:[#allocation2 + $0x130] sm:$0xff]
    %v2149 = vld [vmem:[#allocation2 + $0x138] sm:$0xff]
    %v2150 = vld [vmem:[#allocation2 + $0x140] sm:$0xff]
    %v2151 = vld [vmem:[#allocation2 + $0x148] sm:$0xff]
    %v2152 = vld [vmem:[#allocation2 + $0x150] sm:$0xff]
    %v2153 = vld [vmem:[#allocation2 + $0x158] sm:$0xff]
    %v2154 = vld [vmem:[#allocation2 + $0x160] sm:$0xff]
    %v2155 = vld [vmem:[#allocation2 + $0x168] sm:$0xff]
    %v2156 = vld [vmem:[#allocation2 + $0x170] sm:$0xff]
    %v2157 = vld [vmem:[#allocation2 + $0x178] sm:$0xff]
    %v2158 = vld [vmem:[#allocation2 + $0x180] sm:$0xff]
    %v2159 = vld [vmem:[#allocation2 + $0x188] sm:$0xff]
    %v2160 = vlaneseq
    %v2161 = vshrl.u32 %v2160, 7
    %v2162 = vsub.s32 0, %v2161
    %v2163 = vrot.slane %v2159, %v2162
    %v2165 = vsel %vm151, %v2141, 0
    %v2168 = vsel %vm151, %v2142, 0
    %2170 = vmatprep.subr.mxu0 0.0
    %2171 = vmatpush1.msra.mxu0 %v2143
    %2172 = vmatprep.subr.mxu0 0.0
    %2173 = vmatpush1.msra.mxu0 %v2144
    %2174 = vmatprep.subr.mxu0 0.0
    %2175 = vmatpush1.msra.mxu0 %v2145
    %2176 = vmatprep.subr.mxu0 0.0
    %2177 = vmatpush1.msra.mxu0 %v2146
    %2178 = vmatprep.subr.mxu0 0.0
    %2179 = vmatpush1.msra.mxu0 0.0
    %2180 = vmatprep.subr.mxu0 0.0
    %2181 = vmatpush1.msra.mxu0 0.0
    %2182 = vmatprep.subr.mxu0 0.0
    %2183 = vmatpush1.msra.mxu0 0.0
    %2184 = vmatprep.subr.mxu0 0.0
    %2185 = vmatpush1.msra.mxu0 0.0
    %2186 = vmatprep.subr.mxu0 0.0
    %2187 = vmatpush1.msra.mxu0 0.0
    %2188 = vmatprep.subr.mxu0 0.0
    %2189 = vmatpush1.msra.mxu0 0.0
    %2190 = vmatprep.subr.mxu0 0.0
    %2191 = vmatpush1.msra.mxu0 0.0
    %2192 = vmatprep.subr.mxu0 0.0
    %2193 = vmatpush1.msra.mxu0 0.0
    %2194 = vmatprep.subr.mxu0 0.0
    %2195 = vmatpush1.msra.mxu0 0.0
    %2196 = vmatprep.subr.mxu0 0.0
    %2197 = vmatpush1.msra.mxu0 0.0
    %2198 = vmatprep.subr.mxu0 0.0
    %2199 = vmatpush1.msra.mxu0 0.0
    %2200 = vmatprep.subr.mxu0 0.0
    %2201 = vmatpush1.msra.mxu0 0.0
    %2202 = vmatprep.subr.mxu0 0.0
    %2203 = vmatpush1.msra.mxu0 0.0
    %2204 = vmatprep.subr.mxu0 0.0
    %2205 = vmatpush1.msra.mxu0 0.0
    %2206 = vmatprep.subr.mxu0 0.0
    %2207 = vmatpush1.msra.mxu0 0.0
    %2208 = vmatprep.subr.mxu0 0.0
    %2209 = vmatpush1.msra.mxu0 0.0
    %2210 = vmatprep.subr.mxu0 0.0
    %2211 = vmatpush1.msra.mxu0 0.0
    %2212 = vmatprep.subr.mxu0 0.0
    %2213 = vmatpush1.msra.mxu0 0.0
    %2214 = vmatprep.subr.mxu0 0.0
    %2215 = vmatpush1.msra.mxu0 0.0
    %2216 = vmatprep.subr.mxu0 0.0
    %2217 = vmatpush1.msra.mxu0 0.0
    %2218 = vmatprep.subr.mxu0 0.0
    %2219 = vmatpush1.msra.mxu0 0.0
    %2220 = vmatprep.subr.mxu0 0.0
    %2221 = vmatpush1.msra.mxu0 0.0
    %2222 = vmatprep.subr.mxu0 0.0
    %2223 = vmatpush1.msra.mxu0 0.0
    %2224 = vmatprep.subr.mxu0 0.0
    %2225 = vmatpush1.msra.mxu0 0.0
    %2226 = vmatprep.subr.mxu0 0.0
    %2227 = vmatpush1.msra.mxu0 0.0
    %2228 = vmatprep.subr.mxu0 0.0
    %2229 = vmatpush1.msra.mxu0 0.0
    %2230 = vmatprep.subr.mxu0 0.0
    %2231 = vmatpush1.msra.mxu0 0.0
    %2232 = vmatprep.subr.mxu0 0.0
    %2233 = vmatpush1.msra.mxu0 0.0
    %2234 = vmatprep.mubr.f32.mxu0 0.0
    %2235 = vmatmul.mubr.f32.gmra.mrb[0].mxu0 %v2165
    %v2236 = vpop.f32.mrb[0].mxu0
    %v2237 = vadd.f32 %v2163, %v2236
    %v2238 = vpop.f32.mrb[0].mxu0
    %2239 = vmatprep.mubr.f32.mxu0 0.0
    %2240 = vmatmul.mubr.f32.gmra.mrb[0].mxu0 %v2168
    %v2241 = vpop.f32.mrb[0].mxu0
    %v2242 = vadd.f32 %v2163, %v2241
    %v2243 = vpop.f32.mrb[0].mxu0
    %2244 = vdwg.mxu0
    %2246 = vrot.lane.b32.xlu0 %v2237, 96
    %v2247 = vpop.permute.xlu0 %2246
    %v2248 = vsel %vm236, %v2237, 0
    %v2250 = vsel %vm236, %v2247, 0
    %2252 = vmatprep.subr.mxu0 0.0
    %2253 = vmatpush1.xpose.msra.mxu0 %v2250
    %2254 = vmatprep.subr.mxu0 0.0
    %2255 = vmatpush1.xpose.msra.mxu0 0.0
    %2256 = vmatprep.subr.mxu0 0.0
    %2257 = vmatpush1.xpose.msra.mxu0 0.0
    %2258 = vmatprep.subr.mxu0 0.0
    %2259 = vmatpush1.xpose.msra.mxu0 0.0
    %2260 = vmatprep.subr.mxu0 0.0
    %2261 = vmatpush1.xpose.msra.mxu0 0.0
    %2262 = vmatprep.subr.mxu0 0.0
    %2263 = vmatpush1.xpose.msra.mxu0 0.0
    %2264 = vmatprep.subr.mxu0 0.0
    %2265 = vmatpush1.xpose.msra.mxu0 0.0
    %2266 = vmatprep.subr.mxu0 0.0
    %2267 = vmatpush1.xpose.msra.mxu0 0.0
    %2268 = vmatprep.subr.mxu0 0.0
    %2269 = vmatpush1.xpose.msra.mxu0 0.0
    %2270 = vmatprep.subr.mxu0 0.0
    %2271 = vmatpush1.xpose.msra.mxu0 0.0
    %2272 = vmatprep.subr.mxu0 0.0
    %2273 = vmatpush1.xpose.msra.mxu0 0.0
    %2274 = vmatprep.subr.mxu0 0.0
    %2275 = vmatpush1.xpose.msra.mxu0 0.0
    %2276 = vmatprep.subr.mxu0 0.0
    %2277 = vmatpush1.xpose.msra.mxu0 0.0
    %2278 = vmatprep.subr.mxu0 0.0
    %2279 = vmatpush1.xpose.msra.mxu0 0.0
    %2280 = vmatprep.subr.mxu0 0.0
    %2281 = vmatpush1.xpose.msra.mxu0 0.0
    %2282 = vmatprep.subr.mxu0 0.0
    %2283 = vmatpush1.xpose.msra.mxu0 0.0
    %2284 = vmatprep.subr.mxu0 0.0
    %2285 = vmatpush1.xpose.msra.mxu0 0.0
    %2286 = vmatprep.subr.mxu0 0.0
    %2287 = vmatpush1.xpose.msra.mxu0 0.0
    %2288 = vmatprep.subr.mxu0 0.0
    %2289 = vmatpush1.xpose.msra.mxu0 0.0
    %2290 = vmatprep.subr.mxu0 0.0
    %2291 = vmatpush1.xpose.msra.mxu0 0.0
    %2292 = vmatprep.subr.mxu0 0.0
    %2293 = vmatpush1.xpose.msra.mxu0 0.0
    %2294 = vmatprep.subr.mxu0 0.0
    %2295 = vmatpush1.xpose.msra.mxu0 0.0
    %2296 = vmatprep.subr.mxu0 0.0
    %2297 = vmatpush1.xpose.msra.mxu0 0.0
    %2298 = vmatprep.subr.mxu0 0.0
    %2299 = vmatpush1.xpose.msra.mxu0 0.0
    %2300 = vmatprep.subr.mxu0 0.0
    %2301 = vmatpush1.xpose.msra.mxu0 0.0
    %2302 = vmatprep.subr.mxu0 0.0
    %2303 = vmatpush1.xpose.msra.mxu0 0.0
    %2304 = vmatprep.subr.mxu0 0.0
    %2305 = vmatpush1.xpose.msra.mxu0 0.0
    %2306 = vmatprep.subr.mxu0 0.0
    %2307 = vmatpush1.xpose.msra.mxu0 0.0
    %2308 = vmatprep.subr.mxu0 0.0
    %2309 = vmatpush1.xpose.msra.mxu0 0.0
    %2310 = vmatprep.subr.mxu0 0.0
    %2311 = vmatpush1.xpose.msra.mxu0 0.0
    %2312 = vmatprep.subr.mxu0 0.0
    %2313 = vmatpush1.xpose.msra.mxu0 0.0
    %2314 = vmatprep.subr.mxu0 0.0
    %2315 = vmatpush1.xpose.msra.mxu0 0.0
    %2316 = vmatprep.mubr.f32.mxu0 0.0
    %2317 = vmatmul.mubr.f32.gmra.mrb[0].mxu0 %v2248
    %v2318 = vpop.f32.mrb[0].mxu0
    %v2319 = vadd.f32 0.0, %v2318
    %v2320 = vpop.f32.mrb[0].mxu0
    %2321 = vdwg.mxu0
    %2323 = vrot.lane.b32.xlu0 %v2242, 96
    %v2324 = vpop.permute.xlu0 %2323
    %v2325 = vsel %vm236, %v2242, 0
    %v2327 = vsel %vm236, %v2324, 0
    %2329 = vmatprep.subr.mxu0 0.0
    %2330 = vmatpush1.xpose.msra.mxu0 %v2327
    %2331 = vmatprep.subr.mxu0 0.0
    %2332 = vmatpush1.xpose.msra.mxu0 0.0
    %2333 = vmatprep.subr.mxu0 0.0
    %2334 = vmatpush1.xpose.msra.mxu0 0.0
    %2335 = vmatprep.subr.mxu0 0.0
    %2336 = vmatpush1.xpose.msra.mxu0 0.0
    %2337 = vmatprep.subr.mxu0 0.0
    %2338 = vmatpush1.xpose.msra.mxu0 0.0
    %2339 = vmatprep.subr.mxu0 0.0
    %2340 = vmatpush1.xpose.msra.mxu0 0.0
    %2341 = vmatprep.subr.mxu0 0.0
    %2342 = vmatpush1.xpose.msra.mxu0 0.0
    %2343 = vmatprep.subr.mxu0 0.0
    %2344 = vmatpush1.xpose.msra.mxu0 0.0
    %2345 = vmatprep.subr.mxu0 0.0
    %2346 = vmatpush1.xpose.msra.mxu0 0.0
    %2347 = vmatprep.subr.mxu0 0.0
    %2348 = vmatpush1.xpose.msra.mxu0 0.0
    %2349 = vmatprep.subr.mxu0 0.0
    %2350 = vmatpush1.xpose.msra.mxu0 0.0
    %2351 = vmatprep.subr.mxu0 0.0
    %2352 = vmatpush1.xpose.msra.mxu0 0.0
    %2353 = vmatprep.subr.mxu0 0.0
    %2354 = vmatpush1.xpose.msra.mxu0 0.0
    %2355 = vmatprep.subr.mxu0 0.0
    %2356 = vmatpush1.xpose.msra.mxu0 0.0
    %2357 = vmatprep.subr.mxu0 0.0
    %2358 = vmatpush1.xpose.msra.mxu0 0.0
    %2359 = vmatprep.subr.mxu0 0.0
    %2360 = vmatpush1.xpose.msra.mxu0 0.0
    %2361 = vmatprep.subr.mxu0 0.0
    %2362 = vmatpush1.xpose.msra.mxu0 0.0
    %2363 = vmatprep.subr.mxu0 0.0
    %2364 = vmatpush1.xpose.msra.mxu0 0.0
    %2365 = vmatprep.subr.mxu0 0.0
    %2366 = vmatpush1.xpose.msra.mxu0 0.0
    %2367 = vmatprep.subr.mxu0 0.0
    %2368 = vmatpush1.xpose.msra.mxu0 0.0
    %2369 = vmatprep.subr.mxu0 0.0
    %2370 = vmatpush1.xpose.msra.mxu0 0.0
    %2371 = vmatprep.subr.mxu0 0.0
    %2372 = vmatpush1.xpose.msra.mxu0 0.0
    %2373 = vmatprep.subr.mxu0 0.0
    %2374 = vmatpush1.xpose.msra.mxu0 0.0
    %2375 = vmatprep.subr.mxu0 0.0
    %2376 = vmatpush1.xpose.msra.mxu0 0.0
    %2377 = vmatprep.subr.mxu0 0.0
    %2378 = vmatpush1.xpose.msra.mxu0 0.0
    %2379 = vmatprep.subr.mxu0 0.0
    %2380 = vmatpush1.xpose.msra.mxu0 0.0
    %2381 = vmatprep.subr.mxu0 0.0
    %2382 = vmatpush1.xpose.msra.mxu0 0.0
    %2383 = vmatprep.subr.mxu0 0.0
    %2384 = vmatpush1.xpose.msra.mxu0 0.0
    %2385 = vmatprep.subr.mxu0 0.0
    %2386 = vmatpush1.xpose.msra.mxu0 0.0
    %2387 = vmatprep.subr.mxu0 0.0
    %2388 = vmatpush1.xpose.msra.mxu0 0.0
    %2389 = vmatprep.subr.mxu0 0.0
    %2390 = vmatpush1.xpose.msra.mxu0 0.0
    %2391 = vmatprep.subr.mxu0 0.0
    %2392 = vmatpush1.xpose.msra.mxu0 0.0
    %2393 = vmatprep.mubr.f32.mxu0 0.0
    %2394 = vmatmul.mubr.f32.gmra.mrb[0].mxu0 %v2325
    %v2395 = vpop.f32.mrb[0].mxu0
    %v2396 = vadd.f32 0.0, %v2395
    %v2397 = vpop.f32.mrb[0].mxu0
    %2398 = vdwg.mxu0
    %v2399 = vsel %vm236, %v2319, -inf
    %2400 = vmax.xlane.f32.xlu0 %v2399
    %v2401 = vpop.xlane.xlu0 %2400
    %v2402 = vsel %vm236, %v2396, -inf
    %2403 = vmax.xlane.f32.xlu0 %v2402
    %v2404 = vpop.xlane.xlu0 %2403
    %v2405 = vsub.f32 %v2319, %v2401
    %v2406 = vsub.f32 %v2396, %v2404
    %v2407 = vmul.f32 %v2405, 1.442695
    %v2408 = vpow.pop %v2407
    %v2409 = vmul.f32 %v2406, 1.442695
    %v2410 = vpow.pop %v2409
    %v2411 = vsel %vm236, %v2408, 0.0
    %2412 = vadd.xlane.f32.xlu0 %v2411
    %v2413 = vpop.xlane.xlu0 %2412
    %v2414 = vsel %vm236, %v2410, 0.0
    %2415 = vadd.xlane.f32.xlu0 %v2414
    %v2416 = vpop.xlane.xlu0 %2415
    %v2417 = vrcp.pop %v2413
    %v2418 = vmul.f32 %v2408, %v2417
    %v2419 = vrcp.pop %v2416
    %v2420 = vmul.f32 %v2410, %v2419
    %2421 = vrot.lane.b32.xlu0 %v2237, 64
    %v2422 = vpop.permute.xlu0 %2421
    %v2425 = vsel %vm236, %v2418, 0
    %2427 = vmatprep.subr.mxu0 0.0
    %2428 = vmatpush1.msra.mxu0 %v2422
    %2429 = vmatprep.subr.mxu0 0.0
    %2430 = vmatpush1.msra.mxu0 0.0
    %2431 = vmatprep.subr.mxu0 0.0
    %2432 = vmatpush1.msra.mxu0 0.0
    %2433 = vmatprep.subr.mxu0 0.0
    %2434 = vmatpush1.msra.mxu0 0.0
    %2435 = vmatprep.subr.mxu0 0.0
    %2436 = vmatpush1.msra.mxu0 0.0
    %2437 = vmatprep.subr.mxu0 0.0
    %2438 = vmatpush1.msra.mxu0 0.0
    %2439 = vmatprep.subr.mxu0 0.0
    %2440 = vmatpush1.msra.mxu0 0.0
    %2441 = vmatprep.subr.mxu0 0.0
    %2442 = vmatpush1.msra.mxu0 0.0
    %2443 = vmatprep.subr.mxu0 0.0
    %2444 = vmatpush1.msra.mxu0 0.0
    %2445 = vmatprep.subr.mxu0 0.0
    %2446 = vmatpush1.msra.mxu0 0.0
    %2447 = vmatprep.subr.mxu0 0.0
    %2448 = vmatpush1.msra.mxu0 0.0
    %2449 = vmatprep.subr.mxu0 0.0
    %2450 = vmatpush1.msra.mxu0 0.0
    %2451 = vmatprep.subr.mxu0 0.0
    %2452 = vmatpush1.msra.mxu0 0.0
    %2453 = vmatprep.subr.mxu0 0.0
    %2454 = vmatpush1.msra.mxu0 0.0
    %2455 = vmatprep.subr.mxu0 0.0
    %2456 = vmatpush1.msra.mxu0 0.0
    %2457 = vmatprep.subr.mxu0 0.0
    %2458 = vmatpush1.msra.mxu0 0.0
    %2459 = vmatprep.subr.mxu0 0.0
    %2460 = vmatpush1.msra.mxu0 0.0
    %2461 = vmatprep.subr.mxu0 0.0
    %2462 = vmatpush1.msra.mxu0 0.0
    %2463 = vmatprep.subr.mxu0 0.0
    %2464 = vmatpush1.msra.mxu0 0.0
    %2465 = vmatprep.subr.mxu0 0.0
    %2466 = vmatpush1.msra.mxu0 0.0
    %2467 = vmatprep.subr.mxu0 0.0
    %2468 = vmatpush1.msra.mxu0 0.0
    %2469 = vmatprep.subr.mxu0 0.0
    %2470 = vmatpush1.msra.mxu0 0.0
    %2471 = vmatprep.subr.mxu0 0.0
    %2472 = vmatpush1.msra.mxu0 0.0
    %2473 = vmatprep.subr.mxu0 0.0
    %2474 = vmatpush1.msra.mxu0 0.0
    %2475 = vmatprep.subr.mxu0 0.0
    %2476 = vmatpush1.msra.mxu0 0.0
    %2477 = vmatprep.subr.mxu0 0.0
    %2478 = vmatpush1.msra.mxu0 0.0
    %2479 = vmatprep.subr.mxu0 0.0
    %2480 = vmatpush1.msra.mxu0 0.0
    %2481 = vmatprep.subr.mxu0 0.0
    %2482 = vmatpush1.msra.mxu0 0.0
    %2483 = vmatprep.subr.mxu0 0.0
    %2484 = vmatpush1.msra.mxu0 0.0
    %2485 = vmatprep.subr.mxu0 0.0
    %2486 = vmatpush1.msra.mxu0 0.0
    %2487 = vmatprep.subr.mxu0 0.0
    %2488 = vmatpush1.msra.mxu0 0.0
    %2489 = vmatprep.subr.mxu0 0.0
    %2490 = vmatpush1.msra.mxu0 0.0
    %2491 = vmatprep.mubr.f32.mxu0 0.0
    %2492 = vmatmul.mubr.f32.gmra.mrb[0].mxu0 %v2425
    %v2493 = vpop.f32.mrb[0].mxu0
    %v2494 = vadd.f32 0.0, %v2493
    %v2495 = vpop.f32.mrb[0].mxu0
    %2496 = vdwg.mxu0
    %2497 = vrot.lane.b32.xlu0 %v2242, 64
    %v2498 = vpop.permute.xlu0 %2497
    %v2501 = vsel %vm236, %v2420, 0
    %2503 = vmatprep.subr.mxu0 0.0
    %2504 = vmatpush1.msra.mxu0 %v2498
    %2505 = vmatprep.subr.mxu0 0.0
    %2506 = vmatpush1.msra.mxu0 0.0
    %2507 = vmatprep.subr.mxu0 0.0
    %2508 = vmatpush1.msra.mxu0 0.0
    %2509 = vmatprep.subr.mxu0 0.0
    %2510 = vmatpush1.msra.mxu0 0.0
    %2511 = vmatprep.subr.mxu0 0.0
    %2512 = vmatpush1.msra.mxu0 0.0
    %2513 = vmatprep.subr.mxu0 0.0
    %2514 = vmatpush1.msra.mxu0 0.0
    %2515 = vmatprep.subr.mxu0 0.0
    %2516 = vmatpush1.msra.mxu0 0.0
    %2517 = vmatprep.subr.mxu0 0.0
    %2518 = vmatpush1.msra.mxu0 0.0
    %2519 = vmatprep.subr.mxu0 0.0
    %2520 = vmatpush1.msra.mxu0 0.0
    %2521 = vmatprep.subr.mxu0 0.0
    %2522 = vmatpush1.msra.mxu0 0.0
    %2523 = vmatprep.subr.mxu0 0.0
    %2524 = vmatpush1.msra.mxu0 0.0
    %2525 = vmatprep.subr.mxu0 0.0
    %2526 = vmatpush1.msra.mxu0 0.0
    %2527 = vmatprep.subr.mxu0 0.0
    %2528 = vmatpush1.msra.mxu0 0.0
    %2529 = vmatprep.subr.mxu0 0.0
    %2530 = vmatpush1.msra.mxu0 0.0
    %2531 = vmatprep.subr.mxu0 0.0
    %2532 = vmatpush1.msra.mxu0 0.0
    %2533 = vmatprep.subr.mxu0 0.0
    %2534 = vmatpush1.msra.mxu0 0.0
    %2535 = vmatprep.subr.mxu0 0.0
    %2536 = vmatpush1.msra.mxu0 0.0
    %2537 = vmatprep.subr.mxu0 0.0
    %2538 = vmatpush1.msra.mxu0 0.0
    %2539 = vmatprep.subr.mxu0 0.0
    %2540 = vmatpush1.msra.mxu0 0.0
    %2541 = vmatprep.subr.mxu0 0.0
    %2542 = vmatpush1.msra.mxu0 0.0
    %2543 = vmatprep.subr.mxu0 0.0
    %2544 = vmatpush1.msra.mxu0 0.0
    %2545 = vmatprep.subr.mxu0 0.0
    %2546 = vmatpush1.msra.mxu0 0.0
    %2547 = vmatprep.subr.mxu0 0.0
    %2548 = vmatpush1.msra.mxu0 0.0
    %2549 = vmatprep.subr.mxu0 0.0
    %2550 = vmatpush1.msra.mxu0 0.0
    %2551 = vmatprep.subr.mxu0 0.0
    %2552 = vmatpush1.msra.mxu0 0.0
    %2553 = vmatprep.subr.mxu0 0.0
    %2554 = vmatpush1.msra.mxu0 0.0
    %2555 = vmatprep.subr.mxu0 0.0
    %2556 = vmatpush1.msra.mxu0 0.0
    %2557 = vmatprep.subr.mxu0 0.0
    %2558 = vmatpush1.msra.mxu0 0.0
    %2559 = vmatprep.subr.mxu0 0.0
    %2560 = vmatpush1.msra.mxu0 0.0
    %2561 = vmatprep.subr.mxu0 0.0
    %2562 = vmatpush1.msra.mxu0 0.0
    %2563 = vmatprep.subr.mxu0 0.0
    %2564 = vmatpush1.msra.mxu0 0.0
    %2565 = vmatprep.subr.mxu0 0.0
    %2566 = vmatpush1.msra.mxu0 0.0
    %2567 = vmatprep.mubr.f32.mxu0 0.0
    %2568 = vmatmul.mubr.f32.gmra.mrb[0].mxu0 %v2501
    %v2569 = vpop.f32.mrb[0].mxu0
    %v2570 = vadd.f32 0.0, %v2569
    %v2571 = vpop.f32.mrb[0].mxu0
    %2572 = vdwg.mxu0
    %v2573 = vld [vmem:[#allocation2 + $0x108] sm:$0xff]
    %2574 = vrot.lane.b32.xlu0 %v2237, 120
    %v2575 = vpop.permute.xlu0 %2574
    %2576 = vrot.lane.b32.xlu0 %v2237, 88
    %v2577 = vpop.permute.xlu0 %2576
    %v2578 = vsel %vm236, %v2575, 0
    %v2580 = vsel %vm236, %v2577, 0
    %2582 = vmatprep.subr.mxu0 0.0
    %2583 = vmatpush1.xpose.msra.mxu0 %v2580
    %2584 = vmatprep.subr.mxu0 0.0
    %2585 = vmatpush1.xpose.msra.mxu0 0.0
    %2586 = vmatprep.subr.mxu0 0.0
    %2587 = vmatpush1.xpose.msra.mxu0 0.0
    %2588 = vmatprep.subr.mxu0 0.0
    %2589 = vmatpush1.xpose.msra.mxu0 0.0
    %2590 = vmatprep.subr.mxu0 0.0
    %2591 = vmatpush1.xpose.msra.mxu0 0.0
    %2592 = vmatprep.subr.mxu0 0.0
    %2593 = vmatpush1.xpose.msra.mxu0 0.0
    %2594 = vmatprep.subr.mxu0 0.0
    %2595 = vmatpush1.xpose.msra.mxu0 0.0
    %2596 = vmatprep.subr.mxu0 0.0
    %2597 = vmatpush1.xpose.msra.mxu0 0.0
    %2598 = vmatprep.subr.mxu0 0.0
    %2599 = vmatpush1.xpose.msra.mxu0 0.0
    %2600 = vmatprep.subr.mxu0 0.0
    %2601 = vmatpush1.xpose.msra.mxu0 0.0
    %2602 = vmatprep.subr.mxu0 0.0
    %2603 = vmatpush1.xpose.msra.mxu0 0.0
    %2604 = vmatprep.subr.mxu0 0.0
    %2605 = vmatpush1.xpose.msra.mxu0 0.0
    %2606 = vmatprep.subr.mxu0 0.0
    %2607 = vmatpush1.xpose.msra.mxu0 0.0
    %2608 = vmatprep.subr.mxu0 0.0
    %2609 = vmatpush1.xpose.msra.mxu0 0.0
    %2610 = vmatprep.subr.mxu0 0.0
    %2611 = vmatpush1.xpose.msra.mxu0 0.0
    %2612 = vmatprep.subr.mxu0 0.0
    %2613 = vmatpush1.xpose.msra.mxu0 0.0
    %2614 = vmatprep.subr.mxu0 0.0
    %2615 = vmatpush1.xpose.msra.mxu0 0.0
    %2616 = vmatprep.subr.mxu0 0.0
    %2617 = vmatpush1.xpose.msra.mxu0 0.0
    %2618 = vmatprep.subr.mxu0 0.0
    %2619 = vmatpush1.xpose.msra.mxu0 0.0
    %2620 = vmatprep.subr.mxu0 0.0
    %2621 = vmatpush1.xpose.msra.mxu0 0.0
    %2622 = vmatprep.subr.mxu0 0.0
    %2623 = vmatpush1.xpose.msra.mxu0 0.0
    %2624 = vmatprep.subr.mxu0 0.0
    %2625 = vmatpush1.xpose.msra.mxu0 0.0
    %2626 = vmatprep.subr.mxu0 0.0
    %2627 = vmatpush1.xpose.msra.mxu0 0.0
    %2628 = vmatprep.subr.mxu0 0.0
    %2629 = vmatpush1.xpose.msra.mxu0 0.0
    %2630 = vmatprep.subr.mxu0 0.0
    %2631 = vmatpush1.xpose.msra.mxu0 0.0
    %2632 = vmatprep.subr.mxu0 0.0
    %2633 = vmatpush1.xpose.msra.mxu0 0.0
    %2634 = vmatprep.subr.mxu0 0.0
    %2635 = vmatpush1.xpose.msra.mxu0 0.0
    %2636 = vmatprep.subr.mxu0 0.0
    %2637 = vmatpush1.xpose.msra.mxu0 0.0
    %2638 = vmatprep.subr.mxu0 0.0
    %2639 = vmatpush1.xpose.msra.mxu0 0.0
    %2640 = vmatprep.subr.mxu0 0.0
    %2641 = vmatpush1.xpose.msra.mxu0 0.0
    %2642 = vmatprep.subr.mxu0 0.0
    %2643 = vmatpush1.xpose.msra.mxu0 0.0
    %2644 = vmatprep.subr.mxu0 0.0
    %2645 = vmatpush1.xpose.msra.mxu0 0.0
    %2646 = vmatprep.mubr.f32.mxu0 0.0
    %2647 = vmatmul.mubr.f32.gmra.mrb[0].mxu0 %v2578
    %v2648 = vpop.f32.mrb[0].mxu0
    %v2649 = vadd.f32 0.0, %v2648
    %v2650 = vpop.f32.mrb[0].mxu0
    %2651 = vdwg.mxu0
    %2652 = vrot.lane.b32.xlu0 %v2242, 120
    %v2653 = vpop.permute.xlu0 %2652
    %2654 = vrot.lane.b32.xlu0 %v2242, 88
    %v2655 = vpop.permute.xlu0 %2654
    %v2656 = vsel %vm236, %v2653, 0
    %v2658 = vsel %vm236, %v2655, 0
    %2660 = vmatprep.subr.mxu0 0.0
    %2661 = vmatpush1.xpose.msra.mxu0 %v2658
    %2662 = vmatprep.subr.mxu0 0.0
    %2663 = vmatpush1.xpose.msra.mxu0 0.0
    %2664 = vmatprep.subr.mxu0 0.0
    %2665 = vmatpush1.xpose.msra.mxu0 0.0
    %2666 = vmatprep.subr.mxu0 0.0
    %2667 = vmatpush1.xpose.msra.mxu0 0.0
    %2668 = vmatprep.subr.mxu0 0.0
    %2669 = vmatpush1.xpose.msra.mxu0 0.0
    %2670 = vmatprep.subr.mxu0 0.0
    %2671 = vmatpush1.xpose.msra.mxu0 0.0
    %2672 = vmatprep.subr.mxu0 0.0
    %2673 = vmatpush1.xpose.msra.mxu0 0.0
    %2674 = vmatprep.subr.mxu0 0.0
    %2675 = vmatpush1.xpose.msra.mxu0 0.0
    %2676 = vmatprep.subr.mxu0 0.0
    %2677 = vmatpush1.xpose.msra.mxu0 0.0
    %2678 = vmatprep.subr.mxu0 0.0
    %2679 = vmatpush1.xpose.msra.mxu0 0.0
    %2680 = vmatprep.subr.mxu0 0.0
    %2681 = vmatpush1.xpose.msra.mxu0 0.0
    %2682 = vmatprep.subr.mxu0 0.0
    %2683 = vmatpush1.xpose.msra.mxu0 0.0
    %2684 = vmatprep.subr.mxu0 0.0
    %2685 = vmatpush1.xpose.msra.mxu0 0.0
    %2686 = vmatprep.subr.mxu0 0.0
    %2687 = vmatpush1.xpose.msra.mxu0 0.0
    %2688 = vmatprep.subr.mxu0 0.0
    %2689 = vmatpush1.xpose.msra.mxu0 0.0
    %2690 = vmatprep.subr.mxu0 0.0
    %2691 = vmatpush1.xpose.msra.mxu0 0.0
    %2692 = vmatprep.subr.mxu0 0.0
    %2693 = vmatpush1.xpose.msra.mxu0 0.0
    %2694 = vmatprep.subr.mxu0 0.0
    %2695 = vmatpush1.xpose.msra.mxu0 0.0
    %2696 = vmatprep.subr.mxu0 0.0
    %2697 = vmatpush1.xpose.msra.mxu0 0.0
    %2698 = vmatprep.subr.mxu0 0.0
    %2699 = vmatpush1.xpose.msra.mxu0 0.0
    %2700 = vmatprep.subr.mxu0 0.0
    %2701 = vmatpush1.xpose.msra.mxu0 0.0
    %2702 = vmatprep.subr.mxu0 0.0
    %2703 = vmatpush1.xpose.msra.mxu0 0.0
    %2704 = vmatprep.subr.mxu0 0.0
    %2705 = vmatpush1.xpose.msra.mxu0 0.0
    %2706 = vmatprep.subr.mxu0 0.0
    %2707 = vmatpush1.xpose.msra.mxu0 0.0
    %2708 = vmatprep.subr.mxu0 0.0
    %2709 = vmatpush1.xpose.msra.mxu0 0.0
    %2710 = vmatprep.subr.mxu0 0.0
    %2711 = vmatpush1.xpose.msra.mxu0 0.0
    %2712 = vmatprep.subr.mxu0 0.0
    %2713 = vmatpush1.xpose.msra.mxu0 0.0
    %2714 = vmatprep.subr.mxu0 0.0
    %2715 = vmatpush1.xpose.msra.mxu0 0.0
    %2716 = vmatprep.subr.mxu0 0.0
    %2717 = vmatpush1.xpose.msra.mxu0 0.0
    %2718 = vmatprep.subr.mxu0 0.0
    %2719 = vmatpush1.xpose.msra.mxu0 0.0
    %2720 = vmatprep.subr.mxu0 0.0
    %2721 = vmatpush1.xpose.msra.mxu0 0.0
    %2722 = vmatprep.subr.mxu0 0.0
    %2723 = vmatpush1.xpose.msra.mxu0 0.0
    %2724 = vmatprep.mubr.f32.mxu0 0.0
    %2725 = vmatmul.mubr.f32.gmra.mrb[0].mxu0 %v2656
    %v2726 = vpop.f32.mrb[0].mxu0
    %v2727 = vadd.f32 0.0, %v2726
    %v2728 = vpop.f32.mrb[0].mxu0
    %2729 = vdwg.mxu0
    %v2730 = vsel %vm236, %v2649, -inf
    %2731 = vmax.xlane.f32.xlu0 %v2730
    %v2732 = vpop.xlane.xlu0 %2731
    %v2733 = vsel %vm236, %v2727, -inf
    %2734 = vmax.xlane.f32.xlu0 %v2733
    %v2735 = vpop.xlane.xlu0 %2734
    %v2736 = vsub.f32 %v2649, %v2732
    %v2737 = vsub.f32 %v2727, %v2735
    %v2738 = vmul.f32 %v2736, 1.442695
    %v2739 = vpow.pop %v2738
    %v2740 = vmul.f32 %v2737, 1.442695
    %v2741 = vpow.pop %v2740
    %v2742 = vsel %vm236, %v2739, 0.0
    %2743 = vadd.xlane.f32.xlu0 %v2742
    %v2744 = vpop.xlane.xlu0 %2743
    %v2745 = vsel %vm236, %v2741, 0.0
    %2746 = vadd.xlane.f32.xlu0 %v2745
    %v2747 = vpop.xlane.xlu0 %2746
    %v2748 = vrcp.pop %v2744
    %v2749 = vmul.f32 %v2739, %v2748
    %v2750 = vrcp.pop %v2747
    %v2751 = vmul.f32 %v2741, %v2750
    %2752 = vrot.lane.b32.xlu0 %v2237, 56
    %v2753 = vpop.permute.xlu0 %2752
    %v2756 = vsel %vm236, %v2749, 0
    %2758 = vmatprep.subr.mxu0 0.0
    %2759 = vmatpush1.msra.mxu0 %v2753
    %2760 = vmatprep.subr.mxu0 0.0
    %2761 = vmatpush1.msra.mxu0 0.0
    %2762 = vmatprep.subr.mxu0 0.0
    %2763 = vmatpush1.msra.mxu0 0.0
    %2764 = vmatprep.subr.mxu0 0.0
    %2765 = vmatpush1.msra.mxu0 0.0
    %2766 = vmatprep.subr.mxu0 0.0
    %2767 = vmatpush1.msra.mxu0 0.0
    %2768 = vmatprep.subr.mxu0 0.0
    %2769 = vmatpush1.msra.mxu0 0.0
    %2770 = vmatprep.subr.mxu0 0.0
    %2771 = vmatpush1.msra.mxu0 0.0
    %2772 = vmatprep.subr.mxu0 0.0
    %2773 = vmatpush1.msra.mxu0 0.0
    %2774 = vmatprep.subr.mxu0 0.0
    %2775 = vmatpush1.msra.mxu0 0.0
    %2776 = vmatprep.subr.mxu0 0.0
    %2777 = vmatpush1.msra.mxu0 0.0
    %2778 = vmatprep.subr.mxu0 0.0
    %2779 = vmatpush1.msra.mxu0 0.0
    %2780 = vmatprep.subr.mxu0 0.0
    %2781 = vmatpush1.msra.mxu0 0.0
    %2782 = vmatprep.subr.mxu0 0.0
    %2783 = vmatpush1.msra.mxu0 0.0
    %2784 = vmatprep.subr.mxu0 0.0
    %2785 = vmatpush1.msra.mxu0 0.0
    %2786 = vmatprep.subr.mxu0 0.0
    %2787 = vmatpush1.msra.mxu0 0.0
    %2788 = vmatprep.subr.mxu0 0.0
    %2789 = vmatpush1.msra.mxu0 0.0
    %2790 = vmatprep.subr.mxu0 0.0
    %2791 = vmatpush1.msra.mxu0 0.0
    %2792 = vmatprep.subr.mxu0 0.0
    %2793 = vmatpush1.msra.mxu0 0.0
    %2794 = vmatprep.subr.mxu0 0.0
    %2795 = vmatpush1.msra.mxu0 0.0
    %2796 = vmatprep.subr.mxu0 0.0
    %2797 = vmatpush1.msra.mxu0 0.0
    %2798 = vmatprep.subr.mxu0 0.0
    %2799 = vmatpush1.msra.mxu0 0.0
    %2800 = vmatprep.subr.mxu0 0.0
    %2801 = vmatpush1.msra.mxu0 0.0
    %2802 = vmatprep.subr.mxu0 0.0
    %2803 = vmatpush1.msra.mxu0 0.0
    %2804 = vmatprep.subr.mxu0 0.0
    %2805 = vmatpush1.msra.mxu0 0.0
    %2806 = vmatprep.subr.mxu0 0.0
    %2807 = vmatpush1.msra.mxu0 0.0
    %2808 = vmatprep.subr.mxu0 0.0
    %2809 = vmatpush1.msra.mxu0 0.0
    %2810 = vmatprep.subr.mxu0 0.0
    %2811 = vmatpush1.msra.mxu0 0.0
    %2812 = vmatprep.subr.mxu0 0.0
    %2813 = vmatpush1.msra.mxu0 0.0
    %2814 = vmatprep.subr.mxu0 0.0
    %2815 = vmatpush1.msra.mxu0 0.0
    %2816 = vmatprep.subr.mxu0 0.0
    %2817 = vmatpush1.msra.mxu0 0.0
    %2818 = vmatprep.subr.mxu0 0.0
    %2819 = vmatpush1.msra.mxu0 0.0
    %2820 = vmatprep.subr.mxu0 0.0
    %2821 = vmatpush1.msra.mxu0 0.0
    %2822 = vmatprep.mubr.f32.mxu0 0.0
    %2823 = vmatmul.mubr.f32.gmra.mrb[0].mxu0 %v2756
    %v2824 = vpop.f32.mrb[0].mxu0
    %v2825 = vadd.f32 0.0, %v2824
    %v2826 = vpop.f32.mrb[0].mxu0
    %2827 = vdwg.mxu0
    %2828 = vrot.lane.b32.xlu0 %v2242, 56
    %v2829 = vpop.permute.xlu0 %2828
    %v2832 = vsel %vm236, %v2751, 0
    %2834 = vmatprep.subr.mxu0 0.0
    %2835 = vmatpush1.msra.mxu0 %v2829
    %2836 = vmatprep.subr.mxu0 0.0
    %2837 = vmatpush1.msra.mxu0 0.0
    %2838 = vmatprep.subr.mxu0 0.0
    %2839 = vmatpush1.msra.mxu0 0.0
    %2840 = vmatprep.subr.mxu0 0.0
    %2841 = vmatpush1.msra.mxu0 0.0
    %2842 = vmatprep.subr.mxu0 0.0
    %2843 = vmatpush1.msra.mxu0 0.0
    %2844 = vmatprep.subr.mxu0 0.0
    %2845 = vmatpush1.msra.mxu0 0.0
    %2846 = vmatprep.subr.mxu0 0.0
    %2847 = vmatpush1.msra.mxu0 0.0
    %2848 = vmatprep.subr.mxu0 0.0
    %2849 = vmatpush1.msra.mxu0 0.0
    %2850 = vmatprep.subr.mxu0 0.0
    %2851 = vmatpush1.msra.mxu0 0.0
    %2852 = vmatprep.subr.mxu0 0.0
    %2853 = vmatpush1.msra.mxu0 0.0
    %2854 = vmatprep.subr.mxu0 0.0
    %2855 = vmatpush1.msra.mxu0 0.0
    %2856 = vmatprep.subr.mxu0 0.0
    %2857 = vmatpush1.msra.mxu0 0.0
    %2858 = vmatprep.subr.mxu0 0.0
    %2859 = vmatpush1.msra.mxu0 0.0
    %2860 = vmatprep.subr.mxu0 0.0
    %2861 = vmatpush1.msra.mxu0 0.0
    %2862 = vmatprep.subr.mxu0 0.0
    %2863 = vmatpush1.msra.mxu0 0.0
    %2864 = vmatprep.subr.mxu0 0.0
    %2865 = vmatpush1.msra.mxu0 0.0
    %2866 = vmatprep.subr.mxu0 0.0
    %2867 = vmatpush1.msra.mxu0 0.0
    %2868 = vmatprep.subr.mxu0 0.0
    %2869 = vmatpush1.msra.mxu0 0.0
    %2870 = vmatprep.subr.mxu0 0.0
    %2871 = vmatpush1.msra.mxu0 0.0
    %2872 = vmatprep.subr.mxu0 0.0
    %2873 = vmatpush1.msra.mxu0 0.0
    %2874 = vmatprep.subr.mxu0 0.0
    %2875 = vmatpush1.msra.mxu0 0.0
    %2876 = vmatprep.subr.mxu0 0.0
    %2877 = vmatpush1.msra.mxu0 0.0
    %2878 = vmatprep.subr.mxu0 0.0
    %2879 = vmatpush1.msra.mxu0 0.0
    %2880 = vmatprep.subr.mxu0 0.0
    %2881 = vmatpush1.msra.mxu0 0.0
    %2882 = vmatprep.subr.mxu0 0.0
    %2883 = vmatpush1.msra.mxu0 0.0
    %2884 = vmatprep.subr.mxu0 0.0
    %2885 = vmatpush1.msra.mxu0 0.0
    %2886 = vmatprep.subr.mxu0 0.0
    %2887 = vmatpush1.msra.mxu0 0.0
    %2888 = vmatprep.subr.mxu0 0.0
    %2889 = vmatpush1.msra.mxu0 0.0
    %2890 = vmatprep.subr.mxu0 0.0
    %2891 = vmatpush1.msra.mxu0 0.0
    %2892 = vmatprep.subr.mxu0 0.0
    %2893 = vmatpush1.msra.mxu0 0.0
    %2894 = vmatprep.subr.mxu0 0.0
    %2895 = vmatpush1.msra.mxu0 0.0
    %2896 = vmatprep.subr.mxu0 0.0
    %2897 = vmatpush1.msra.mxu0 0.0
    %2898 = vmatprep.mubr.f32.mxu0 0.0
    %2899 = vmatmul.mubr.f32.gmra.mrb[0].mxu0 %v2832
    %v2900 = vpop.f32.mrb[0].mxu0
    %v2901 = vadd.f32 0.0, %v2900
    %v2902 = vpop.f32.mrb[0].mxu0
    %2903 = vdwg.mxu0
    %v2904 = vld [vmem:[#allocation2 + $0x110] sm:$0xff]
    %v2906 = vsel %vm236, %v2825, 0
    %v2909 = vsel %vm236, %v2901, 0
    %2911 = vmatprep.subr.mxu0 0.0
    %2912 = vmatpush1.msra.mxu0 %v2904
    %2913 = vmatprep.subr.mxu0 0.0
    %2914 = vmatpush1.msra.mxu0 0.0
    %2915 = vmatprep.subr.mxu0 0.0
    %2916 = vmatpush1.msra.mxu0 0.0
    %2917 = vmatprep.subr.mxu0 0.0
    %2918 = vmatpush1.msra.mxu0 0.0
    %2919 = vmatprep.subr.mxu0 0.0
    %2920 = vmatpush1.msra.mxu0 0.0
    %2921 = vmatprep.subr.mxu0 0.0
    %2922 = vmatpush1.msra.mxu0 0.0
    %2923 = vmatprep.subr.mxu0 0.0
    %2924 = vmatpush1.msra.mxu0 0.0
    %2925 = vmatprep.subr.mxu0 0.0
    %2926 = vmatpush1.msra.mxu0 0.0
    %2927 = vmatprep.subr.mxu0 0.0
    %2928 = vmatpush1.msra.mxu0 0.0
    %2929 = vmatprep.subr.mxu0 0.0
    %2930 = vmatpush1.msra.mxu0 0.0
    %2931 = vmatprep.subr.mxu0 0.0
    %2932 = vmatpush1.msra.mxu0 0.0
    %2933 = vmatprep.subr.mxu0 0.0
    %2934 = vmatpush1.msra.mxu0 0.0
    %2935 = vmatprep.subr.mxu0 0.0
    %2936 = vmatpush1.msra.mxu0 0.0
    %2937 = vmatprep.subr.mxu0 0.0
    %2938 = vmatpush1.msra.mxu0 0.0
    %2939 = vmatprep.subr.mxu0 0.0
    %2940 = vmatpush1.msra.mxu0 0.0
    %2941 = vmatprep.subr.mxu0 0.0
    %2942 = vmatpush1.msra.mxu0 0.0
    %2943 = vmatprep.subr.mxu0 0.0
    %2944 = vmatpush1.msra.mxu0 0.0
    %2945 = vmatprep.subr.mxu0 0.0
    %2946 = vmatpush1.msra.mxu0 0.0
    %2947 = vmatprep.subr.mxu0 0.0
    %2948 = vmatpush1.msra.mxu0 0.0
    %2949 = vmatprep.subr.mxu0 0.0
    %2950 = vmatpush1.msra.mxu0 0.0
    %2951 = vmatprep.subr.mxu0 0.0
    %2952 = vmatpush1.msra.mxu0 0.0
    %2953 = vmatprep.subr.mxu0 0.0
    %2954 = vmatpush1.msra.mxu0 0.0
    %2955 = vmatprep.subr.mxu0 0.0
    %2956 = vmatpush1.msra.mxu0 0.0
    %2957 = vmatprep.subr.mxu0 0.0
    %2958 = vmatpush1.msra.mxu0 0.0
    %2959 = vmatprep.subr.mxu0 0.0
    %2960 = vmatpush1.msra.mxu0 0.0
    %2961 = vmatprep.subr.mxu0 0.0
    %2962 = vmatpush1.msra.mxu0 0.0
    %2963 = vmatprep.subr.mxu0 0.0
    %2964 = vmatpush1.msra.mxu0 0.0
    %2965 = vmatprep.subr.mxu0 0.0
    %2966 = vmatpush1.msra.mxu0 0.0
    %2967 = vmatprep.subr.mxu0 0.0
    %2968 = vmatpush1.msra.mxu0 0.0
    %2969 = vmatprep.subr.mxu0 0.0
    %2970 = vmatpush1.msra.mxu0 0.0
    %2971 = vmatprep.subr.mxu0 0.0
    %2972 = vmatpush1.msra.mxu0 0.0
    %2973 = vmatprep.subr.mxu0 0.0
    %2974 = vmatpush1.msra.mxu0 0.0
    %2975 = vmatprep.mubr.f32.mxu0 0.0
    %2976 = vmatmul.mubr.f32.gmra.mrb[0].mxu0 %v2906
    %v2977 = vpop.f32.mrb[0].mxu0
    %v2978 = vadd.f32 0.0, %v2977
    %v2979 = vpop.f32.mrb[0].mxu0
    %2980 = vmatprep.mubr.f32.mxu0 0.0
    %2981 = vmatmul.mubr.f32.gmra.mrb[0].mxu0 %v2909
    %v2982 = vpop.f32.mrb[0].mxu0
    %v2983 = vadd.f32 0.0, %v2982
    %v2984 = vpop.f32.mrb[0].mxu0
    %2985 = vdwg.mxu0
    %v2987 = vsel %vm236, %v2494, 0
    %v2990 = vsel %vm236, %v2570, 0
    %2992 = vmatprep.subr.mxu0 0.0
    %2993 = vmatpush1.msra.mxu0 %v2573
    %2994 = vmatprep.subr.mxu0 0.0
    %2995 = vmatpush1.msra.mxu0 0.0
    %2996 = vmatprep.subr.mxu0 0.0
    %2997 = vmatpush1.msra.mxu0 0.0
    %2998 = vmatprep.subr.mxu0 0.0
    %2999 = vmatpush1.msra.mxu0 0.0
    %3000 = vmatprep.subr.mxu0 0.0
    %3001 = vmatpush1.msra.mxu0 0.0
    %3002 = vmatprep.subr.mxu0 0.0
    %3003 = vmatpush1.msra.mxu0 0.0
    %3004 = vmatprep.subr.mxu0 0.0
    %3005 = vmatpush1.msra.mxu0 0.0
    %3006 = vmatprep.subr.mxu0 0.0
    %3007 = vmatpush1.msra.mxu0 0.0
    %3008 = vmatprep.subr.mxu0 0.0
    %3009 = vmatpush1.msra.mxu0 0.0
    %3010 = vmatprep.subr.mxu0 0.0
    %3011 = vmatpush1.msra.mxu0 0.0
    %3012 = vmatprep.subr.mxu0 0.0
    %3013 = vmatpush1.msra.mxu0 0.0
    %3014 = vmatprep.subr.mxu0 0.0
    %3015 = vmatpush1.msra.mxu0 0.0
    %3016 = vmatprep.subr.mxu0 0.0
    %3017 = vmatpush1.msra.mxu0 0.0
    %3018 = vmatprep.subr.mxu0 0.0
    %3019 = vmatpush1.msra.mxu0 0.0
    %3020 = vmatprep.subr.mxu0 0.0
    %3021 = vmatpush1.msra.mxu0 0.0
    %3022 = vmatprep.subr.mxu0 0.0
    %3023 = vmatpush1.msra.mxu0 0.0
    %3024 = vmatprep.subr.mxu0 0.0
    %3025 = vmatpush1.msra.mxu0 0.0
    %3026 = vmatprep.subr.mxu0 0.0
    %3027 = vmatpush1.msra.mxu0 0.0
    %3028 = vmatprep.subr.mxu0 0.0
    %3029 = vmatpush1.msra.mxu0 0.0
    %3030 = vmatprep.subr.mxu0 0.0
    %3031 = vmatpush1.msra.mxu0 0.0
    %3032 = vmatprep.subr.mxu0 0.0
    %3033 = vmatpush1.msra.mxu0 0.0
    %3034 = vmatprep.subr.mxu0 0.0
    %3035 = vmatpush1.msra.mxu0 0.0
    %3036 = vmatprep.subr.mxu0 0.0
    %3037 = vmatpush1.msra.mxu0 0.0
    %3038 = vmatprep.subr.mxu0 0.0
    %3039 = vmatpush1.msra.mxu0 0.0
    %3040 = vmatprep.subr.mxu0 0.0
    %3041 = vmatpush1.msra.mxu0 0.0
    %3042 = vmatprep.subr.mxu0 0.0
    %3043 = vmatpush1.msra.mxu0 0.0
    %3044 = vmatprep.subr.mxu0 0.0
    %3045 = vmatpush1.msra.mxu0 0.0
    %3046 = vmatprep.subr.mxu0 0.0
    %3047 = vmatpush1.msra.mxu0 0.0
    %3048 = vmatprep.subr.mxu0 0.0
    %3049 = vmatpush1.msra.mxu0 0.0
    %3050 = vmatprep.subr.mxu0 0.0
    %3051 = vmatpush1.msra.mxu0 0.0
    %3052 = vmatprep.subr.mxu0 0.0
    %3053 = vmatpush1.msra.mxu0 0.0
    %3054 = vmatprep.subr.mxu0 0.0
    %3055 = vmatpush1.msra.mxu0 0.0
    %3056 = vmatprep.mubr.f32.mxu0 0.0
    %3057 = vmatmul.mubr.f32.gmra.mrb[0].mxu0 %v2987
    %v3058 = vpop.f32.mrb[0].mxu0
    %v3059 = vadd.f32 %v2978, %v3058
    %v3060 = vpop.f32.mrb[0].mxu0
    %3061 = vmatprep.mubr.f32.mxu0 0.0
    %3062 = vmatmul.mubr.f32.gmra.mrb[0].mxu0 %v2990
    %v3063 = vpop.f32.mrb[0].mxu0
    %v3064 = vadd.f32 %v2983, %v3063
    %v3065 = vpop.f32.mrb[0].mxu0
    %3066 = vdwg.mxu0
    %3067 = vrot.lane.b32.xlu0 %v2237, 112
    %v3068 = vpop.permute.xlu0 %3067
    %3069 = vrot.lane.b32.xlu0 %v2237, 80
    %v3070 = vpop.permute.xlu0 %3069
    %v3071 = vsel %vm236, %v3068, 0
    %v3073 = vsel %vm236, %v3070, 0
    %3075 = vmatprep.subr.mxu0 0.0
    %3076 = vmatpush1.xpose.msra.mxu0 %v3073
    %3077 = vmatprep.subr.mxu0 0.0
    %3078 = vmatpush1.xpose.msra.mxu0 0.0
    %3079 = vmatprep.subr.mxu0 0.0
    %3080 = vmatpush1.xpose.msra.mxu0 0.0
    %3081 = vmatprep.subr.mxu0 0.0
    %3082 = vmatpush1.xpose.msra.mxu0 0.0
    %3083 = vmatprep.subr.mxu0 0.0
    %3084 = vmatpush1.xpose.msra.mxu0 0.0
    %3085 = vmatprep.subr.mxu0 0.0
    %3086 = vmatpush1.xpose.msra.mxu0 0.0
    %3087 = vmatprep.subr.mxu0 0.0
    %3088 = vmatpush1.xpose.msra.mxu0 0.0
    %3089 = vmatprep.subr.mxu0 0.0
    %3090 = vmatpush1.xpose.msra.mxu0 0.0
    %3091 = vmatprep.subr.mxu0 0.0
    %3092 = vmatpush1.xpose.msra.mxu0 0.0
    %3093 = vmatprep.subr.mxu0 0.0
    %3094 = vmatpush1.xpose.msra.mxu0 0.0
    %3095 = vmatprep.subr.mxu0 0.0
    %3096 = vmatpush1.xpose.msra.mxu0 0.0
    %3097 = vmatprep.subr.mxu0 0.0
    %3098 = vmatpush1.xpose.msra.mxu0 0.0
    %3099 = vmatprep.subr.mxu0 0.0
    %3100 = vmatpush1.xpose.msra.mxu0 0.0
    %3101 = vmatprep.subr.mxu0 0.0
    %3102 = vmatpush1.xpose.msra.mxu0 0.0
    %3103 = vmatprep.subr.mxu0 0.0
    %3104 = vmatpush1.xpose.msra.mxu0 0.0
    %3105 = vmatprep.subr.mxu0 0.0
    %3106 = vmatpush1.xpose.msra.mxu0 0.0
    %3107 = vmatprep.subr.mxu0 0.0
    %3108 = vmatpush1.xpose.msra.mxu0 0.0
    %3109 = vmatprep.subr.mxu0 0.0
    %3110 = vmatpush1.xpose.msra.mxu0 0.0
    %3111 = vmatprep.subr.mxu0 0.0
    %3112 = vmatpush1.xpose.msra.mxu0 0.0
    %3113 = vmatprep.subr.mxu0 0.0
    %3114 = vmatpush1.xpose.msra.mxu0 0.0
    %3115 = vmatprep.subr.mxu0 0.0
    %3116 = vmatpush1.xpose.msra.mxu0 0.0
    %3117 = vmatprep.subr.mxu0 0.0
    %3118 = vmatpush1.xpose.msra.mxu0 0.0
    %3119 = vmatprep.subr.mxu0 0.0
    %3120 = vmatpush1.xpose.msra.mxu0 0.0
    %3121 = vmatprep.subr.mxu0 0.0
    %3122 = vmatpush1.xpose.msra.mxu0 0.0
    %3123 = vmatprep.subr.mxu0 0.0
    %3124 = vmatpush1.xpose.msra.mxu0 0.0
    %3125 = vmatprep.subr.mxu0 0.0
    %3126 = vmatpush1.xpose.msra.mxu0 0.0
    %3127 = vmatprep.subr.mxu0 0.0
    %3128 = vmatpush1.xpose.msra.mxu0 0.0
    %3129 = vmatprep.subr.mxu0 0.0
    %3130 = vmatpush1.xpose.msra.mxu0 0.0
    %3131 = vmatprep.subr.mxu0 0.0
    %3132 = vmatpush1.xpose.msra.mxu0 0.0
    %3133 = vmatprep.subr.mxu0 0.0
    %3134 = vmatpush1.xpose.msra.mxu0 0.0
    %3135 = vmatprep.subr.mxu0 0.0
    %3136 = vmatpush1.xpose.msra.mxu0 0.0
    %3137 = vmatprep.subr.mxu0 0.0
    %3138 = vmatpush1.xpose.msra.mxu0 0.0
    %3139 = vmatprep.mubr.f32.mxu0 0.0
    %3140 = vmatmul.mubr.f32.gmra.mrb[0].mxu0 %v3071
    %v3141 = vpop.f32.mrb[0].mxu0
    %v3142 = vadd.f32 0.0, %v3141
    %v3143 = vpop.f32.mrb[0].mxu0
    %3144 = vdwg.mxu0
    %3145 = vrot.lane.b32.xlu0 %v2242, 112
    %v3146 = vpop.permute.xlu0 %3145
    %3147 = vrot.lane.b32.xlu0 %v2242, 80
    %v3148 = vpop.permute.xlu0 %3147
    %v3149 = vsel %vm236, %v3146, 0
    %v3151 = vsel %vm236, %v3148, 0
    %3153 = vmatprep.subr.mxu0 0.0
    %3154 = vmatpush1.xpose.msra.mxu0 %v3151
    %3155 = vmatprep.subr.mxu0 0.0
    %3156 = vmatpush1.xpose.msra.mxu0 0.0
    %3157 = vmatprep.subr.mxu0 0.0
    %3158 = vmatpush1.xpose.msra.mxu0 0.0
    %3159 = vmatprep.subr.mxu0 0.0
    %3160 = vmatpush1.xpose.msra.mxu0 0.0
    %3161 = vmatprep.subr.mxu0 0.0
    %3162 = vmatpush1.xpose.msra.mxu0 0.0
    %3163 = vmatprep.subr.mxu0 0.0
    %3164 = vmatpush1.xpose.msra.mxu0 0.0
    %3165 = vmatprep.subr.mxu0 0.0
    %3166 = vmatpush1.xpose.msra.mxu0 0.0
    %3167 = vmatprep.subr.mxu0 0.0
    %3168 = vmatpush1.xpose.msra.mxu0 0.0
    %3169 = vmatprep.subr.mxu0 0.0
    %3170 = vmatpush1.xpose.msra.mxu0 0.0
    %3171 = vmatprep.subr.mxu0 0.0
    %3172 = vmatpush1.xpose.msra.mxu0 0.0
    %3173 = vmatprep.subr.mxu0 0.0
    %3174 = vmatpush1.xpose.msra.mxu0 0.0
    %3175 = vmatprep.subr.mxu0 0.0
    %3176 = vmatpush1.xpose.msra.mxu0 0.0
    %3177 = vmatprep.subr.mxu0 0.0
    %3178 = vmatpush1.xpose.msra.mxu0 0.0
    %3179 = vmatprep.subr.mxu0 0.0
    %3180 = vmatpush1.xpose.msra.mxu0 0.0
    %3181 = vmatprep.subr.mxu0 0.0
    %3182 = vmatpush1.xpose.msra.mxu0 0.0
    %3183 = vmatprep.subr.mxu0 0.0
    %3184 = vmatpush1.xpose.msra.mxu0 0.0
    %3185 = vmatprep.subr.mxu0 0.0
    %3186 = vmatpush1.xpose.msra.mxu0 0.0
    %3187 = vmatprep.subr.mxu0 0.0
    %3188 = vmatpush1.xpose.msra.mxu0 0.0
    %3189 = vmatprep.subr.mxu0 0.0
    %3190 = vmatpush1.xpose.msra.mxu0 0.0
    %3191 = vmatprep.subr.mxu0 0.0
    %3192 = vmatpush1.xpose.msra.mxu0 0.0
    %3193 = vmatprep.subr.mxu0 0.0
    %3194 = vmatpush1.xpose.msra.mxu0 0.0
    %3195 = vmatprep.subr.mxu0 0.0
    %3196 = vmatpush1.xpose.msra.mxu0 0.0
    %3197 = vmatprep.subr.mxu0 0.0
    %3198 = vmatpush1.xpose.msra.mxu0 0.0
    %3199 = vmatprep.subr.mxu0 0.0
    %3200 = vmatpush1.xpose.msra.mxu0 0.0
    %3201 = vmatprep.subr.mxu0 0.0
    %3202 = vmatpush1.xpose.msra.mxu0 0.0
    %3203 = vmatprep.subr.mxu0 0.0
    %3204 = vmatpush1.xpose.msra.mxu0 0.0
    %3205 = vmatprep.subr.mxu0 0.0
    %3206 = vmatpush1.xpose.msra.mxu0 0.0
    %3207 = vmatprep.subr.mxu0 0.0
    %3208 = vmatpush1.xpose.msra.mxu0 0.0
    %3209 = vmatprep.subr.mxu0 0.0
    %3210 = vmatpush1.xpose.msra.mxu0 0.0
    %3211 = vmatprep.subr.mxu0 0.0
    %3212 = vmatpush1.xpose.msra.mxu0 0.0
    %3213 = vmatprep.subr.mxu0 0.0
    %3214 = vmatpush1.xpose.msra.mxu0 0.0
    %3215 = vmatprep.subr.mxu0 0.0
    %3216 = vmatpush1.xpose.msra.mxu0 0.0
    %3217 = vmatprep.mubr.f32.mxu0 0.0
    %3218 = vmatmul.mubr.f32.gmra.mrb[0].mxu0 %v3149
    %v3219 = vpop.f32.mrb[0].mxu0
    %v3220 = vadd.f32 0.0, %v3219
    %v3221 = vpop.f32.mrb[0].mxu0
    %3222 = vdwg.mxu0
    %v3223 = vsel %vm236, %v3142, -inf
    %3224 = vmax.xlane.f32.xlu0 %v3223
    %v3225 = vpop.xlane.xlu0 %3224
    %v3226 = vsel %vm236, %v3220, -inf
    %3227 = vmax.xlane.f32.xlu0 %v3226
    %v3228 = vpop.xlane.xlu0 %3227
    %v3229 = vsub.f32 %v3142, %v3225
    %v3230 = vsub.f32 %v3220, %v3228
    %v3231 = vmul.f32 %v3229, 1.442695
    %v3232 = vpow.pop %v3231
    %v3233 = vmul.f32 %v3230, 1.442695
    %v3234 = vpow.pop %v3233
    %v3235 = vsel %vm236, %v3232, 0.0
    %3236 = vadd.xlane.f32.xlu0 %v3235
    %v3237 = vpop.xlane.xlu0 %3236
    %v3238 = vsel %vm236, %v3234, 0.0
    %3239 = vadd.xlane.f32.xlu0 %v3238
    %v3240 = vpop.xlane.xlu0 %3239
    %v3241 = vrcp.pop %v3237
    %v3242 = vmul.f32 %v3232, %v3241
    %v3243 = vrcp.pop %v3240
    %v3244 = vmul.f32 %v3234, %v3243
    %3245 = vrot.lane.b32.xlu0 %v2237, 48
    %v3246 = vpop.permute.xlu0 %3245
    %v3249 = vsel %vm236, %v3242, 0
    %3251 = vmatprep.subr.mxu0 0.0
    %3252 = vmatpush1.msra.mxu0 %v3246
    %3253 = vmatprep.subr.mxu0 0.0
    %3254 = vmatpush1.msra.mxu0 0.0
    %3255 = vmatprep.subr.mxu0 0.0
    %3256 = vmatpush1.msra.mxu0 0.0
    %3257 = vmatprep.subr.mxu0 0.0
    %3258 = vmatpush1.msra.mxu0 0.0
    %3259 = vmatprep.subr.mxu0 0.0
    %3260 = vmatpush1.msra.mxu0 0.0
    %3261 = vmatprep.subr.mxu0 0.0
    %3262 = vmatpush1.msra.mxu0 0.0
    %3263 = vmatprep.subr.mxu0 0.0
    %3264 = vmatpush1.msra.mxu0 0.0
    %3265 = vmatprep.subr.mxu0 0.0
    %3266 = vmatpush1.msra.mxu0 0.0
    %3267 = vmatprep.subr.mxu0 0.0
    %3268 = vmatpush1.msra.mxu0 0.0
    %3269 = vmatprep.subr.mxu0 0.0
    %3270 = vmatpush1.msra.mxu0 0.0
    %3271 = vmatprep.subr.mxu0 0.0
    %3272 = vmatpush1.msra.mxu0 0.0
    %3273 = vmatprep.subr.mxu0 0.0
    %3274 = vmatpush1.msra.mxu0 0.0
    %3275 = vmatprep.subr.mxu0 0.0
    %3276 = vmatpush1.msra.mxu0 0.0
    %3277 = vmatprep.subr.mxu0 0.0
    %3278 = vmatpush1.msra.mxu0 0.0
    %3279 = vmatprep.subr.mxu0 0.0
    %3280 = vmatpush1.msra.mxu0 0.0
    %3281 = vmatprep.subr.mxu0 0.0
    %3282 = vmatpush1.msra.mxu0 0.0
    %3283 = vmatprep.subr.mxu0 0.0
    %3284 = vmatpush1.msra.mxu0 0.0
    %3285 = vmatprep.subr.mxu0 0.0
    %3286 = vmatpush1.msra.mxu0 0.0
    %3287 = vmatprep.subr.mxu0 0.0
    %3288 = vmatpush1.msra.mxu0 0.0
    %3289 = vmatprep.subr.mxu0 0.0
    %3290 = vmatpush1.msra.mxu0 0.0
    %3291 = vmatprep.subr.mxu0 0.0
    %3292 = vmatpush1.msra.mxu0 0.0
    %3293 = vmatprep.subr.mxu0 0.0
    %3294 = vmatpush1.msra.mxu0 0.0
    %3295 = vmatprep.subr.mxu0 0.0
    %3296 = vmatpush1.msra.mxu0 0.0
    %3297 = vmatprep.subr.mxu0 0.0
    %3298 = vmatpush1.msra.mxu0 0.0
    %3299 = vmatprep.subr.mxu0 0.0
    %3300 = vmatpush1.msra.mxu0 0.0
    %3301 = vmatprep.subr.mxu0 0.0
    %3302 = vmatpush1.msra.mxu0 0.0
    %3303 = vmatprep.subr.mxu0 0.0
    %3304 = vmatpush1.msra.mxu0 0.0
    %3305 = vmatprep.subr.mxu0 0.0
    %3306 = vmatpush1.msra.mxu0 0.0
    %3307 = vmatprep.subr.mxu0 0.0
    %3308 = vmatpush1.msra.mxu0 0.0
    %3309 = vmatprep.subr.mxu0 0.0
    %3310 = vmatpush1.msra.mxu0 0.0
    %3311 = vmatprep.subr.mxu0 0.0
    %3312 = vmatpush1.msra.mxu0 0.0
    %3313 = vmatprep.subr.mxu0 0.0
    %3314 = vmatpush1.msra.mxu0 0.0
    %3315 = vmatprep.mubr.f32.mxu0 0.0
    %3316 = vmatmul.mubr.f32.gmra.mrb[0].mxu0 %v3249
    %v3317 = vpop.f32.mrb[0].mxu0
    %v3318 = vadd.f32 0.0, %v3317
    %v3319 = vpop.f32.mrb[0].mxu0
    %3320 = vdwg.mxu0
    %3321 = vrot.lane.b32.xlu0 %v2242, 48
    %v3322 = vpop.permute.xlu0 %3321
    %v3325 = vsel %vm236, %v3244, 0
    %3327 = vmatprep.subr.mxu0 0.0
    %3328 = vmatpush1.msra.mxu0 %v3322
    %3329 = vmatprep.subr.mxu0 0.0
    %3330 = vmatpush1.msra.mxu0 0.0
    %3331 = vmatprep.subr.mxu0 0.0
    %3332 = vmatpush1.msra.mxu0 0.0
    %3333 = vmatprep.subr.mxu0 0.0
    %3334 = vmatpush1.msra.mxu0 0.0
    %3335 = vmatprep.subr.mxu0 0.0
    %3336 = vmatpush1.msra.mxu0 0.0
    %3337 = vmatprep.subr.mxu0 0.0
    %3338 = vmatpush1.msra.mxu0 0.0
    %3339 = vmatprep.subr.mxu0 0.0
    %3340 = vmatpush1.msra.mxu0 0.0
    %3341 = vmatprep.subr.mxu0 0.0
    %3342 = vmatpush1.msra.mxu0 0.0
    %3343 = vmatprep.subr.mxu0 0.0
    %3344 = vmatpush1.msra.mxu0 0.0
    %3345 = vmatprep.subr.mxu0 0.0
    %3346 = vmatpush1.msra.mxu0 0.0
    %3347 = vmatprep.subr.mxu0 0.0
    %3348 = vmatpush1.msra.mxu0 0.0
    %3349 = vmatprep.subr.mxu0 0.0
    %3350 = vmatpush1.msra.mxu0 0.0
    %3351 = vmatprep.subr.mxu0 0.0
    %3352 = vmatpush1.msra.mxu0 0.0
    %3353 = vmatprep.subr.mxu0 0.0
    %3354 = vmatpush1.msra.mxu0 0.0
    %3355 = vmatprep.subr.mxu0 0.0
    %3356 = vmatpush1.msra.mxu0 0.0
    %3357 = vmatprep.subr.mxu0 0.0
    %3358 = vmatpush1.msra.mxu0 0.0
    %3359 = vmatprep.subr.mxu0 0.0
    %3360 = vmatpush1.msra.mxu0 0.0
    %3361 = vmatprep.subr.mxu0 0.0
    %3362 = vmatpush1.msra.mxu0 0.0
    %3363 = vmatprep.subr.mxu0 0.0
    %3364 = vmatpush1.msra.mxu0 0.0
    %3365 = vmatprep.subr.mxu0 0.0
    %3366 = vmatpush1.msra.mxu0 0.0
    %3367 = vmatprep.subr.mxu0 0.0
    %3368 = vmatpush1.msra.mxu0 0.0
    %3369 = vmatprep.subr.mxu0 0.0
    %3370 = vmatpush1.msra.mxu0 0.0
    %3371 = vmatprep.subr.mxu0 0.0
    %3372 = vmatpush1.msra.mxu0 0.0
    %3373 = vmatprep.subr.mxu0 0.0
    %3374 = vmatpush1.msra.mxu0 0.0
    %3375 = vmatprep.subr.mxu0 0.0
    %3376 = vmatpush1.msra.mxu0 0.0
    %3377 = vmatprep.subr.mxu0 0.0
    %3378 = vmatpush1.msra.mxu0 0.0
    %3379 = vmatprep.subr.mxu0 0.0
    %3380 = vmatpush1.msra.mxu0 0.0
    %3381 = vmatprep.subr.mxu0 0.0
    %3382 = vmatpush1.msra.mxu0 0.0
    %3383 = vmatprep.subr.mxu0 0.0
    %3384 = vmatpush1.msra.mxu0 0.0
    %3385 = vmatprep.subr.mxu0 0.0
    %3386 = vmatpush1.msra.mxu0 0.0
    %3387 = vmatprep.subr.mxu0 0.0
    %3388 = vmatpush1.msra.mxu0 0.0
    %3389 = vmatprep.subr.mxu0 0.0
    %3390 = vmatpush1.msra.mxu0 0.0
    %3391 = vmatprep.mubr.f32.mxu0 0.0
    %3392 = vmatmul.mubr.f32.gmra.mrb[0].mxu0 %v3325
    %v3393 = vpop.f32.mrb[0].mxu0
    %v3394 = vadd.f32 0.0, %v3393
    %v3395 = vpop.f32.mrb[0].mxu0
    %3396 = vdwg.mxu0
    %v3397 = vld [vmem:[#allocation2 + $0x118] sm:$0xff]
    %v3399 = vsel %vm236, %v3318, 0
    %v3402 = vsel %vm236, %v3394, 0
    %3404 = vmatprep.subr.mxu0 0.0
    %3405 = vmatpush1.msra.mxu0 %v3397
    %3406 = vmatprep.subr.mxu0 0.0
    %3407 = vmatpush1.msra.mxu0 0.0
    %3408 = vmatprep.subr.mxu0 0.0
    %3409 = vmatpush1.msra.mxu0 0.0
    %3410 = vmatprep.subr.mxu0 0.0
    %3411 = vmatpush1.msra.mxu0 0.0
    %3412 = vmatprep.subr.mxu0 0.0
    %3413 = vmatpush1.msra.mxu0 0.0
    %3414 = vmatprep.subr.mxu0 0.0
    %3415 = vmatpush1.msra.mxu0 0.0
    %3416 = vmatprep.subr.mxu0 0.0
    %3417 = vmatpush1.msra.mxu0 0.0
    %3418 = vmatprep.subr.mxu0 0.0
    %3419 = vmatpush1.msra.mxu0 0.0
    %3420 = vmatprep.subr.mxu0 0.0
    %3421 = vmatpush1.msra.mxu0 0.0
    %3422 = vmatprep.subr.mxu0 0.0
    %3423 = vmatpush1.msra.mxu0 0.0
    %3424 = vmatprep.subr.mxu0 0.0
    %3425 = vmatpush1.msra.mxu0 0.0
    %3426 = vmatprep.subr.mxu0 0.0
    %3427 = vmatpush1.msra.mxu0 0.0
    %3428 = vmatprep.subr.mxu0 0.0
    %3429 = vmatpush1.msra.mxu0 0.0
    %3430 = vmatprep.subr.mxu0 0.0
    %3431 = vmatpush1.msra.mxu0 0.0
    %3432 = vmatprep.subr.mxu0 0.0
    %3433 = vmatpush1.msra.mxu0 0.0
    %3434 = vmatprep.subr.mxu0 0.0
    %3435 = vmatpush1.msra.mxu0 0.0
    %3436 = vmatprep.subr.mxu0 0.0
    %3437 = vmatpush1.msra.mxu0 0.0
    %3438 = vmatprep.subr.mxu0 0.0
    %3439 = vmatpush1.msra.mxu0 0.0
    %3440 = vmatprep.subr.mxu0 0.0
    %3441 = vmatpush1.msra.mxu0 0.0
    %3442 = vmatprep.subr.mxu0 0.0
    %3443 = vmatpush1.msra.mxu0 0.0
    %3444 = vmatprep.subr.mxu0 0.0
    %3445 = vmatpush1.msra.mxu0 0.0
    %3446 = vmatprep.subr.mxu0 0.0
    %3447 = vmatpush1.msra.mxu0 0.0
    %3448 = vmatprep.subr.mxu0 0.0
    %3449 = vmatpush1.msra.mxu0 0.0
    %3450 = vmatprep.subr.mxu0 0.0
    %3451 = vmatpush1.msra.mxu0 0.0
    %3452 = vmatprep.subr.mxu0 0.0
    %3453 = vmatpush1.msra.mxu0 0.0
    %3454 = vmatprep.subr.mxu0 0.0
    %3455 = vmatpush1.msra.mxu0 0.0
    %3456 = vmatprep.subr.mxu0 0.0
    %3457 = vmatpush1.msra.mxu0 0.0
    %3458 = vmatprep.subr.mxu0 0.0
    %3459 = vmatpush1.msra.mxu0 0.0
    %3460 = vmatprep.subr.mxu0 0.0
    %3461 = vmatpush1.msra.mxu0 0.0
    %3462 = vmatprep.subr.mxu0 0.0
    %3463 = vmatpush1.msra.mxu0 0.0
    %3464 = vmatprep.subr.mxu0 0.0
    %3465 = vmatpush1.msra.mxu0 0.0
    %3466 = vmatprep.subr.mxu0 0.0
    %3467 = vmatpush1.msra.mxu0 0.0
    %3468 = vmatprep.mubr.f32.mxu0 0.0
    %3469 = vmatmul.mubr.f32.gmra.mrb[0].mxu0 %v3399
    %v3470 = vpop.f32.mrb[0].mxu0
    %v3471 = vadd.f32 0.0, %v3470
    %v3472 = vpop.f32.mrb[0].mxu0
    %3473 = vmatprep.mubr.f32.mxu0 0.0
    %3474 = vmatmul.mubr.f32.gmra.mrb[0].mxu0 %v3402
    %v3475 = vpop.f32.mrb[0].mxu0
    %v3476 = vadd.f32 0.0, %v3475
    %v3477 = vpop.f32.mrb[0].mxu0
    %3478 = vdwg.mxu0
    %v3479 = vadd.f32 %v3059, %v3471
    %v3480 = vadd.f32 %v3064, %v3476
    %3481 = vrot.lane.b32.xlu0 %v2237, 104
    %v3482 = vpop.permute.xlu0 %3481
    %3483 = vrot.lane.b32.xlu0 %v2237, 72
    %v3484 = vpop.permute.xlu0 %3483
    %v3485 = vsel %vm236, %v3482, 0
    %v3487 = vsel %vm236, %v3484, 0
    %3489 = vmatprep.subr.mxu0 0.0
    %3490 = vmatpush1.xpose.msra.mxu0 %v3487
    %3491 = vmatprep.subr.mxu0 0.0
    %3492 = vmatpush1.xpose.msra.mxu0 0.0
    %3493 = vmatprep.subr.mxu0 0.0
    %3494 = vmatpush1.xpose.msra.mxu0 0.0
    %3495 = vmatprep.subr.mxu0 0.0
    %3496 = vmatpush1.xpose.msra.mxu0 0.0
    %3497 = vmatprep.subr.mxu0 0.0
    %3498 = vmatpush1.xpose.msra.mxu0 0.0
    %3499 = vmatprep.subr.mxu0 0.0
    %3500 = vmatpush1.xpose.msra.mxu0 0.0
    %3501 = vmatprep.subr.mxu0 0.0
    %3502 = vmatpush1.xpose.msra.mxu0 0.0
    %3503 = vmatprep.subr.mxu0 0.0
    %3504 = vmatpush1.xpose.msra.mxu0 0.0
    %3505 = vmatprep.subr.mxu0 0.0
    %3506 = vmatpush1.xpose.msra.mxu0 0.0
    %3507 = vmatprep.subr.mxu0 0.0
    %3508 = vmatpush1.xpose.msra.mxu0 0.0
    %3509 = vmatprep.subr.mxu0 0.0
    %3510 = vmatpush1.xpose.msra.mxu0 0.0
    %3511 = vmatprep.subr.mxu0 0.0
    %3512 = vmatpush1.xpose.msra.mxu0 0.0
    %3513 = vmatprep.subr.mxu0 0.0
    %3514 = vmatpush1.xpose.msra.mxu0 0.0
    %3515 = vmatprep.subr.mxu0 0.0
    %3516 = vmatpush1.xpose.msra.mxu0 0.0
    %3517 = vmatprep.subr.mxu0 0.0
    %3518 = vmatpush1.xpose.msra.mxu0 0.0
    %3519 = vmatprep.subr.mxu0 0.0
    %3520 = vmatpush1.xpose.msra.mxu0 0.0
    %3521 = vmatprep.subr.mxu0 0.0
    %3522 = vmatpush1.xpose.msra.mxu0 0.0
    %3523 = vmatprep.subr.mxu0 0.0
    %3524 = vmatpush1.xpose.msra.mxu0 0.0
    %3525 = vmatprep.subr.mxu0 0.0
    %3526 = vmatpush1.xpose.msra.mxu0 0.0
    %3527 = vmatprep.subr.mxu0 0.0
    %3528 = vmatpush1.xpose.msra.mxu0 0.0
    %3529 = vmatprep.subr.mxu0 0.0
    %3530 = vmatpush1.xpose.msra.mxu0 0.0
    %3531 = vmatprep.subr.mxu0 0.0
    %3532 = vmatpush1.xpose.msra.mxu0 0.0
    %3533 = vmatprep.subr.mxu0 0.0
    %3534 = vmatpush1.xpose.msra.mxu0 0.0
    %3535 = vmatprep.subr.mxu0 0.0
    %3536 = vmatpush1.xpose.msra.mxu0 0.0
    %3537 = vmatprep.subr.mxu0 0.0
    %3538 = vmatpush1.xpose.msra.mxu0 0.0
    %3539 = vmatprep.subr.mxu0 0.0
    %3540 = vmatpush1.xpose.msra.mxu0 0.0
    %3541 = vmatprep.subr.mxu0 0.0
    %3542 = vmatpush1.xpose.msra.mxu0 0.0
    %3543 = vmatprep.subr.mxu0 0.0
    %3544 = vmatpush1.xpose.msra.mxu0 0.0
    %3545 = vmatprep.subr.mxu0 0.0
    %3546 = vmatpush1.xpose.msra.mxu0 0.0
    %3547 = vmatprep.subr.mxu0 0.0
    %3548 = vmatpush1.xpose.msra.mxu0 0.0
    %3549 = vmatprep.subr.mxu0 0.0
    %3550 = vmatpush1.xpose.msra.mxu0 0.0
    %3551 = vmatprep.subr.mxu0 0.0
    %3552 = vmatpush1.xpose.msra.mxu0 0.0
    %3553 = vmatprep.mubr.f32.mxu0 0.0
    %3554 = vmatmul.mubr.f32.gmra.mrb[0].mxu0 %v3485
    %v3555 = vpop.f32.mrb[0].mxu0
    %v3556 = vadd.f32 0.0, %v3555
    %v3557 = vpop.f32.mrb[0].mxu0
    %3558 = vdwg.mxu0
    %3559 = vrot.lane.b32.xlu0 %v2242, 104
    %v3560 = vpop.permute.xlu0 %3559
    %3561 = vrot.lane.b32.xlu0 %v2242, 72
    %v3562 = vpop.permute.xlu0 %3561
    %v3563 = vsel %vm236, %v3560, 0
    %v3565 = vsel %vm236, %v3562, 0
    %3567 = vmatprep.subr.mxu0 0.0
    %3568 = vmatpush1.xpose.msra.mxu0 %v3565
    %3569 = vmatprep.subr.mxu0 0.0
    %3570 = vmatpush1.xpose.msra.mxu0 0.0
    %3571 = vmatprep.subr.mxu0 0.0
    %3572 = vmatpush1.xpose.msra.mxu0 0.0
    %3573 = vmatprep.subr.mxu0 0.0
    %3574 = vmatpush1.xpose.msra.mxu0 0.0
    %3575 = vmatprep.subr.mxu0 0.0
    %3576 = vmatpush1.xpose.msra.mxu0 0.0
    %3577 = vmatprep.subr.mxu0 0.0
    %3578 = vmatpush1.xpose.msra.mxu0 0.0
    %3579 = vmatprep.subr.mxu0 0.0
    %3580 = vmatpush1.xpose.msra.mxu0 0.0
    %3581 = vmatprep.subr.mxu0 0.0
    %3582 = vmatpush1.xpose.msra.mxu0 0.0
    %3583 = vmatprep.subr.mxu0 0.0
    %3584 = vmatpush1.xpose.msra.mxu0 0.0
    %3585 = vmatprep.subr.mxu0 0.0
    %3586 = vmatpush1.xpose.msra.mxu0 0.0
    %3587 = vmatprep.subr.mxu0 0.0
    %3588 = vmatpush1.xpose.msra.mxu0 0.0
    %3589 = vmatprep.subr.mxu0 0.0
    %3590 = vmatpush1.xpose.msra.mxu0 0.0
    %3591 = vmatprep.subr.mxu0 0.0
    %3592 = vmatpush1.xpose.msra.mxu0 0.0
    %3593 = vmatprep.subr.mxu0 0.0
    %3594 = vmatpush1.xpose.msra.mxu0 0.0
    %3595 = vmatprep.subr.mxu0 0.0
    %3596 = vmatpush1.xpose.msra.mxu0 0.0
    %3597 = vmatprep.subr.mxu0 0.0
    %3598 = vmatpush1.xpose.msra.mxu0 0.0
    %3599 = vmatprep.subr.mxu0 0.0
    %3600 = vmatpush1.xpose.msra.mxu0 0.0
    %3601 = vmatprep.subr.mxu0 0.0
    %3602 = vmatpush1.xpose.msra.mxu0 0.0
    %3603 = vmatprep.subr.mxu0 0.0
    %3604 = vmatpush1.xpose.msra.mxu0 0.0
    %3605 = vmatprep.subr.mxu0 0.0
    %3606 = vmatpush1.xpose.msra.mxu0 0.0
    %3607 = vmatprep.subr.mxu0 0.0
    %3608 = vmatpush1.xpose.msra.mxu0 0.0
    %3609 = vmatprep.subr.mxu0 0.0
    %3610 = vmatpush1.xpose.msra.mxu0 0.0
    %3611 = vmatprep.subr.mxu0 0.0
    %3612 = vmatpush1.xpose.msra.mxu0 0.0
    %3613 = vmatprep.subr.mxu0 0.0
    %3614 = vmatpush1.xpose.msra.mxu0 0.0
    %3615 = vmatprep.subr.mxu0 0.0
    %3616 = vmatpush1.xpose.msra.mxu0 0.0
    %3617 = vmatprep.subr.mxu0 0.0
    %3618 = vmatpush1.xpose.msra.mxu0 0.0
    %3619 = vmatprep.subr.mxu0 0.0
    %3620 = vmatpush1.xpose.msra.mxu0 0.0
    %3621 = vmatprep.subr.mxu0 0.0
    %3622 = vmatpush1.xpose.msra.mxu0 0.0
    %3623 = vmatprep.subr.mxu0 0.0
    %3624 = vmatpush1.xpose.msra.mxu0 0.0
    %3625 = vmatprep.subr.mxu0 0.0
    %3626 = vmatpush1.xpose.msra.mxu0 0.0
    %3627 = vmatprep.subr.mxu0 0.0
    %3628 = vmatpush1.xpose.msra.mxu0 0.0
    %3629 = vmatprep.subr.mxu0 0.0
    %3630 = vmatpush1.xpose.msra.mxu0 0.0
    %3631 = vmatprep.mubr.f32.mxu0 0.0
    %3632 = vmatmul.mubr.f32.gmra.mrb[0].mxu0 %v3563
    %v3633 = vpop.f32.mrb[0].mxu0
    %v3634 = vadd.f32 0.0, %v3633
    %v3635 = vpop.f32.mrb[0].mxu0
    %3636 = vdwg.mxu0
    %v3637 = vsel %vm236, %v3556, -inf
    %3638 = vmax.xlane.f32.xlu0 %v3637
    %v3639 = vpop.xlane.xlu0 %3638
    %v3640 = vsel %vm236, %v3634, -inf
    %3641 = vmax.xlane.f32.xlu0 %v3640
    %v3642 = vpop.xlane.xlu0 %3641
    %v3643 = vsub.f32 %v3556, %v3639
    %v3644 = vsub.f32 %v3634, %v3642
    %v3645 = vmul.f32 %v3643, 1.442695
    %v3646 = vpow.pop %v3645
    %v3647 = vmul.f32 %v3644, 1.442695
    %v3648 = vpow.pop %v3647
    %v3649 = vsel %vm236, %v3646, 0.0
    %3650 = vadd.xlane.f32.xlu0 %v3649
    %v3651 = vpop.xlane.xlu0 %3650
    %v3652 = vsel %vm236, %v3648, 0.0
    %3653 = vadd.xlane.f32.xlu0 %v3652
    %v3654 = vpop.xlane.xlu0 %3653
    %v3655 = vrcp.pop %v3651
    %v3656 = vmul.f32 %v3646, %v3655
    %v3657 = vrcp.pop %v3654
    %v3658 = vmul.f32 %v3648, %v3657
    %3659 = vrot.lane.b32.xlu0 %v2237, 40
    %v3660 = vpop.permute.xlu0 %3659
    %v3663 = vsel %vm236, %v3656, 0
    %3665 = vmatprep.subr.mxu0 0.0
    %3666 = vmatpush1.msra.mxu0 %v3660
    %3667 = vmatprep.subr.mxu0 0.0
    %3668 = vmatpush1.msra.mxu0 0.0
    %3669 = vmatprep.subr.mxu0 0.0
    %3670 = vmatpush1.msra.mxu0 0.0
    %3671 = vmatprep.subr.mxu0 0.0
    %3672 = vmatpush1.msra.mxu0 0.0
    %3673 = vmatprep.subr.mxu0 0.0
    %3674 = vmatpush1.msra.mxu0 0.0
    %3675 = vmatprep.subr.mxu0 0.0
    %3676 = vmatpush1.msra.mxu0 0.0
    %3677 = vmatprep.subr.mxu0 0.0
    %3678 = vmatpush1.msra.mxu0 0.0
    %3679 = vmatprep.subr.mxu0 0.0
    %3680 = vmatpush1.msra.mxu0 0.0
    %3681 = vmatprep.subr.mxu0 0.0
    %3682 = vmatpush1.msra.mxu0 0.0
    %3683 = vmatprep.subr.mxu0 0.0
    %3684 = vmatpush1.msra.mxu0 0.0
    %3685 = vmatprep.subr.mxu0 0.0
    %3686 = vmatpush1.msra.mxu0 0.0
    %3687 = vmatprep.subr.mxu0 0.0
    %3688 = vmatpush1.msra.mxu0 0.0
    %3689 = vmatprep.subr.mxu0 0.0
    %3690 = vmatpush1.msra.mxu0 0.0
    %3691 = vmatprep.subr.mxu0 0.0
    %3692 = vmatpush1.msra.mxu0 0.0
    %3693 = vmatprep.subr.mxu0 0.0
    %3694 = vmatpush1.msra.mxu0 0.0
    %3695 = vmatprep.subr.mxu0 0.0
    %3696 = vmatpush1.msra.mxu0 0.0
    %3697 = vmatprep.subr.mxu0 0.0
    %3698 = vmatpush1.msra.mxu0 0.0
    %3699 = vmatprep.subr.mxu0 0.0
    %3700 = vmatpush1.msra.mxu0 0.0
    %3701 = vmatprep.subr.mxu0 0.0
    %3702 = vmatpush1.msra.mxu0 0.0
    %3703 = vmatprep.subr.mxu0 0.0
    %3704 = vmatpush1.msra.mxu0 0.0
    %3705 = vmatprep.subr.mxu0 0.0
    %3706 = vmatpush1.msra.mxu0 0.0
    %3707 = vmatprep.subr.mxu0 0.0
    %3708 = vmatpush1.msra.mxu0 0.0
    %3709 = vmatprep.subr.mxu0 0.0
    %3710 = vmatpush1.msra.mxu0 0.0
    %3711 = vmatprep.subr.mxu0 0.0
    %3712 = vmatpush1.msra.mxu0 0.0
    %3713 = vmatprep.subr.mxu0 0.0
    %3714 = vmatpush1.msra.mxu0 0.0
    %3715 = vmatprep.subr.mxu0 0.0
    %3716 = vmatpush1.msra.mxu0 0.0
    %3717 = vmatprep.subr.mxu0 0.0
    %3718 = vmatpush1.msra.mxu0 0.0
    %3719 = vmatprep.subr.mxu0 0.0
    %3720 = vmatpush1.msra.mxu0 0.0
    %3721 = vmatprep.subr.mxu0 0.0
    %3722 = vmatpush1.msra.mxu0 0.0
    %3723 = vmatprep.subr.mxu0 0.0
    %3724 = vmatpush1.msra.mxu0 0.0
    %3725 = vmatprep.subr.mxu0 0.0
    %3726 = vmatpush1.msra.mxu0 0.0
    %3727 = vmatprep.subr.mxu0 0.0
    %3728 = vmatpush1.msra.mxu0 0.0
    %3729 = vmatprep.mubr.f32.mxu0 0.0
    %3730 = vmatmul.mubr.f32.gmra.mrb[0].mxu0 %v3663
    %v3731 = vpop.f32.mrb[0].mxu0
    %v3732 = vadd.f32 0.0, %v3731
    %v3733 = vpop.f32.mrb[0].mxu0
    %3734 = vdwg.mxu0
    %3735 = vrot.lane.b32.xlu0 %v2242, 40
    %v3736 = vpop.permute.xlu0 %3735
    %v3739 = vsel %vm236, %v3658, 0
    %3741 = vmatprep.subr.mxu0 0.0
    %3742 = vmatpush1.msra.mxu0 %v3736
    %3743 = vmatprep.subr.mxu0 0.0
    %3744 = vmatpush1.msra.mxu0 0.0
    %3745 = vmatprep.subr.mxu0 0.0
    %3746 = vmatpush1.msra.mxu0 0.0
    %3747 = vmatprep.subr.mxu0 0.0
    %3748 = vmatpush1.msra.mxu0 0.0
    %3749 = vmatprep.subr.mxu0 0.0
    %3750 = vmatpush1.msra.mxu0 0.0
    %3751 = vmatprep.subr.mxu0 0.0
    %3752 = vmatpush1.msra.mxu0 0.0
    %3753 = vmatprep.subr.mxu0 0.0
    %3754 = vmatpush1.msra.mxu0 0.0
    %3755 = vmatprep.subr.mxu0 0.0
    %3756 = vmatpush1.msra.mxu0 0.0
    %3757 = vmatprep.subr.mxu0 0.0
    %3758 = vmatpush1.msra.mxu0 0.0
    %3759 = vmatprep.subr.mxu0 0.0
    %3760 = vmatpush1.msra.mxu0 0.0
    %3761 = vmatprep.subr.mxu0 0.0
    %3762 = vmatpush1.msra.mxu0 0.0
    %3763 = vmatprep.subr.mxu0 0.0
    %3764 = vmatpush1.msra.mxu0 0.0
    %3765 = vmatprep.subr.mxu0 0.0
    %3766 = vmatpush1.msra.mxu0 0.0
    %3767 = vmatprep.subr.mxu0 0.0
    %3768 = vmatpush1.msra.mxu0 0.0
    %3769 = vmatprep.subr.mxu0 0.0
    %3770 = vmatpush1.msra.mxu0 0.0
    %3771 = vmatprep.subr.mxu0 0.0
    %3772 = vmatpush1.msra.mxu0 0.0
    %3773 = vmatprep.subr.mxu0 0.0
    %3774 = vmatpush1.msra.mxu0 0.0
    %3775 = vmatprep.subr.mxu0 0.0
    %3776 = vmatpush1.msra.mxu0 0.0
    %3777 = vmatprep.subr.mxu0 0.0
    %3778 = vmatpush1.msra.mxu0 0.0
    %3779 = vmatprep.subr.mxu0 0.0
    %3780 = vmatpush1.msra.mxu0 0.0
    %3781 = vmatprep.subr.mxu0 0.0
    %3782 = vmatpush1.msra.mxu0 0.0
    %3783 = vmatprep.subr.mxu0 0.0
    %3784 = vmatpush1.msra.mxu0 0.0
    %3785 = vmatprep.subr.mxu0 0.0
    %3786 = vmatpush1.msra.mxu0 0.0
    %3787 = vmatprep.subr.mxu0 0.0
    %3788 = vmatpush1.msra.mxu0 0.0
    %3789 = vmatprep.subr.mxu0 0.0
    %3790 = vmatpush1.msra.mxu0 0.0
    %3791 = vmatprep.subr.mxu0 0.0
    %3792 = vmatpush1.msra.mxu0 0.0
    %3793 = vmatprep.subr.mxu0 0.0
    %3794 = vmatpush1.msra.mxu0 0.0
    %3795 = vmatprep.subr.mxu0 0.0
    %3796 = vmatpush1.msra.mxu0 0.0
    %3797 = vmatprep.subr.mxu0 0.0
    %3798 = vmatpush1.msra.mxu0 0.0
    %3799 = vmatprep.subr.mxu0 0.0
    %3800 = vmatpush1.msra.mxu0 0.0
    %3801 = vmatprep.subr.mxu0 0.0
    %3802 = vmatpush1.msra.mxu0 0.0
    %3803 = vmatprep.subr.mxu0 0.0
    %3804 = vmatpush1.msra.mxu0 0.0
    %3805 = vmatprep.mubr.f32.mxu0 0.0
    %3806 = vmatmul.mubr.f32.gmra.mrb[0].mxu0 %v3739
    %v3807 = vpop.f32.mrb[0].mxu0
    %v3808 = vadd.f32 0.0, %v3807
    %v3809 = vpop.f32.mrb[0].mxu0
    %3810 = vdwg.mxu0
    %v3811 = vld [vmem:[#allocation2 + $0x120] sm:$0xff]
    %v3813 = vsel %vm236, %v3732, 0
    %v3816 = vsel %vm236, %v3808, 0
    %3818 = vmatprep.subr.mxu0 0.0
    %3819 = vmatpush1.msra.mxu0 %v3811
    %3820 = vmatprep.subr.mxu0 0.0
    %3821 = vmatpush1.msra.mxu0 0.0
    %3822 = vmatprep.subr.mxu0 0.0
    %3823 = vmatpush1.msra.mxu0 0.0
    %3824 = vmatprep.subr.mxu0 0.0
    %3825 = vmatpush1.msra.mxu0 0.0
    %3826 = vmatprep.subr.mxu0 0.0
    %3827 = vmatpush1.msra.mxu0 0.0
    %3828 = vmatprep.subr.mxu0 0.0
    %3829 = vmatpush1.msra.mxu0 0.0
    %3830 = vmatprep.subr.mxu0 0.0
    %3831 = vmatpush1.msra.mxu0 0.0
    %3832 = vmatprep.subr.mxu0 0.0
    %3833 = vmatpush1.msra.mxu0 0.0
    %3834 = vmatprep.subr.mxu0 0.0
    %3835 = vmatpush1.msra.mxu0 0.0
    %3836 = vmatprep.subr.mxu0 0.0
    %3837 = vmatpush1.msra.mxu0 0.0
    %3838 = vmatprep.subr.mxu0 0.0
    %3839 = vmatpush1.msra.mxu0 0.0
    %3840 = vmatprep.subr.mxu0 0.0
    %3841 = vmatpush1.msra.mxu0 0.0
    %3842 = vmatprep.subr.mxu0 0.0
    %3843 = vmatpush1.msra.mxu0 0.0
    %3844 = vmatprep.subr.mxu0 0.0
    %3845 = vmatpush1.msra.mxu0 0.0
    %3846 = vmatprep.subr.mxu0 0.0
    %3847 = vmatpush1.msra.mxu0 0.0
    %3848 = vmatprep.subr.mxu0 0.0
    %3849 = vmatpush1.msra.mxu0 0.0
    %3850 = vmatprep.subr.mxu0 0.0
    %3851 = vmatpush1.msra.mxu0 0.0
    %3852 = vmatprep.subr.mxu0 0.0
    %3853 = vmatpush1.msra.mxu0 0.0
    %3854 = vmatprep.subr.mxu0 0.0
    %3855 = vmatpush1.msra.mxu0 0.0
    %3856 = vmatprep.subr.mxu0 0.0
    %3857 = vmatpush1.msra.mxu0 0.0
    %3858 = vmatprep.subr.mxu0 0.0
    %3859 = vmatpush1.msra.mxu0 0.0
    %3860 = vmatprep.subr.mxu0 0.0
    %3861 = vmatpush1.msra.mxu0 0.0
    %3862 = vmatprep.subr.mxu0 0.0
    %3863 = vmatpush1.msra.mxu0 0.0
    %3864 = vmatprep.subr.mxu0 0.0
    %3865 = vmatpush1.msra.mxu0 0.0
    %3866 = vmatprep.subr.mxu0 0.0
    %3867 = vmatpush1.msra.mxu0 0.0
    %3868 = vmatprep.subr.mxu0 0.0
    %3869 = vmatpush1.msra.mxu0 0.0
    %3870 = vmatprep.subr.mxu0 0.0
    %3871 = vmatpush1.msra.mxu0 0.0
    %3872 = vmatprep.subr.mxu0 0.0
    %3873 = vmatpush1.msra.mxu0 0.0
    %3874 = vmatprep.subr.mxu0 0.0
    %3875 = vmatpush1.msra.mxu0 0.0
    %3876 = vmatprep.subr.mxu0 0.0
    %3877 = vmatpush1.msra.mxu0 0.0
    %3878 = vmatprep.subr.mxu0 0.0
    %3879 = vmatpush1.msra.mxu0 0.0
    %3880 = vmatprep.subr.mxu0 0.0
    %3881 = vmatpush1.msra.mxu0 0.0
    %3882 = vmatprep.mubr.f32.mxu0 0.0
    %3883 = vmatmul.mubr.f32.gmra.mrb[0].mxu0 %v3813
    %v3884 = vpop.f32.mrb[0].mxu0
    %v3885 = vadd.f32 0.0, %v3884
    %v3886 = vpop.f32.mrb[0].mxu0
    %3887 = vmatprep.mubr.f32.mxu0 0.0
    %3888 = vmatmul.mubr.f32.gmra.mrb[0].mxu0 %v3816
    %v3889 = vpop.f32.mrb[0].mxu0
    %v3890 = vadd.f32 0.0, %v3889
    %v3891 = vpop.f32.mrb[0].mxu0
    %3892 = vdwg.mxu0
    %v3893 = vadd.f32 %v3479, %v3885
    %v3894 = vadd.f32 %v3480, %v3890
    %v3895 = vadd.f32 %v2141, %v3893
    %v3896 = vadd.f32 %v2142, %v3894
    %v3897 = vlaneseq
    %v3898 = vshrl.u32 %v3897, 7
    %v3899 = vsub.s32 1, %v3898
    %v3900 = vrot.slane %v2159, %v3899
    %v3901 = vadd.f32 %v3895, %v3900
    %v3902 = vadd.f32 %v3896, %v3900
    %v3903 = vsel %vm151, %v3901, 0.0
    %3904 = vadd.xlane.f32.xlu0 %v3903
    %v3905 = vpop.xlane.xlu0 %3904
    %v3906 = vsel %vm151, %v3902, 0.0
    %3907 = vadd.xlane.f32.xlu0 %v3906
    %v3908 = vpop.xlane.xlu0 %3907
    %v3909 = vmul.f32 %v3905, %v1898
    %v3910 = vmul.f32 %v3908, %v1898
    %v3911 = vsub.f32 %v3901, %v3909
    %v3912 = vsub.f32 %v3902, %v3910
    %v3913 = vmul.f32 %v3911, %v3911
    %v3914 = vmul.f32 %v3912, %v3912
    %v3915 = vsel %vm151, %v3913, 0.0
    %3916 = vadd.xlane.f32.xlu0 %v3915
    %v3917 = vpop.xlane.xlu0 %3916
    %v3918 = vsel %vm151, %v3914, 0.0
    %3919 = vadd.xlane.f32.xlu0 %v3918
    %v3920 = vpop.xlane.xlu0 %3919
    %v3921 = vmul.f32 %v3917, %v1898
    %v3922 = vmul.f32 %v3920, %v1898
    %v3923 = vadd.f32 %v3921, 1e-05
    %v3924 = vadd.f32 %v3922, 1e-05
    %v3925 = vrsqrt.pop %v3923
    %v3926 = vrsqrt.pop %v3924
    %v3927 = vmul.f32 %v3911, %v3925
    %v3928 = vmul.f32 %v3912, %v3926
    %v3929 = vlaneseq
    %v3930 = vshrl.u32 %v3929, 7
    %v3931 = vsub.s32 4, %v3930
    %v3932 = vrot.slane %v2159, %v3931
    %v3933 = vmul.f32 %v3927, %v3932
    %v3934 = vmul.f32 %v3928, %v3932
    %v3935 = vlaneseq
    %v3936 = vshrl.u32 %v3935, 7
    %v3937 = vsub.s32 5, %v3936
    %v3938 = vrot.slane %v2159, %v3937
    %v3939 = vadd.f32 %v3933, %v3938
    %v3940 = vadd.f32 %v3934, %v3938
    %v3941 = vlaneseq
    %v3942 = vshrl.u32 %v3941, 7
    %v3943 = vsub.s32 2, %v3942
    %v3944 = vrot.slane %v2159, %v3943
    %v3946 = vsel %vm151, %v3939, 0
    %v3949 = vsel %vm151, %v3940, 0
    %3951 = vmatprep.subr.mxu0 0.0
    %3952 = vmatpush1.msra.mxu0 %v2147
    %3953 = vmatprep.subr.mxu0 0.0
    %3954 = vmatpush1.msra.mxu0 %v2148
    %3955 = vmatprep.subr.mxu0 0.0
    %3956 = vmatpush1.msra.mxu0 %v2149
    %3957 = vmatprep.subr.mxu0 0.0
    %3958 = vmatpush1.msra.mxu0 %v2150
    %3959 = vmatprep.subr.mxu0 0.0
    %3960 = vmatpush1.msra.mxu0 0.0
    %3961 = vmatprep.subr.mxu0 0.0
    %3962 = vmatpush1.msra.mxu0 0.0
    %3963 = vmatprep.subr.mxu0 0.0
    %3964 = vmatpush1.msra.mxu0 0.0
    %3965 = vmatprep.subr.mxu0 0.0
    %3966 = vmatpush1.msra.mxu0 0.0
    %3967 = vmatprep.subr.mxu0 0.0
    %3968 = vmatpush1.msra.mxu0 0.0
    %3969 = vmatprep.subr.mxu0 0.0
    %3970 = vmatpush1.msra.mxu0 0.0
    %3971 = vmatprep.subr.mxu0 0.0
    %3972 = vmatpush1.msra.mxu0 0.0
    %3973 = vmatprep.subr.mxu0 0.0
    %3974 = vmatpush1.msra.mxu0 0.0
    %3975 = vmatprep.subr.mxu0 0.0
    %3976 = vmatpush1.msra.mxu0 0.0
    %3977 = vmatprep.subr.mxu0 0.0
    %3978 = vmatpush1.msra.mxu0 0.0
    %3979 = vmatprep.subr.mxu0 0.0
    %3980 = vmatpush1.msra.mxu0 0.0
    %3981 = vmatprep.subr.mxu0 0.0
    %3982 = vmatpush1.msra.mxu0 0.0
    %3983 = vmatprep.subr.mxu0 0.0
    %3984 = vmatpush1.msra.mxu0 0.0
    %3985 = vmatprep.subr.mxu0 0.0
    %3986 = vmatpush1.msra.mxu0 0.0
    %3987 = vmatprep.subr.mxu0 0.0
    %3988 = vmatpush1.msra.mxu0 0.0
    %3989 = vmatprep.subr.mxu0 0.0
    %3990 = vmatpush1.msra.mxu0 0.0
    %3991 = vmatprep.subr.mxu0 0.0
    %3992 = vmatpush1.msra.mxu0 0.0
    %3993 = vmatprep.subr.mxu0 0.0
    %3994 = vmatpush1.msra.mxu0 0.0
    %3995 = vmatprep.subr.mxu0 0.0
    %3996 = vmatpush1.msra.mxu0 0.0
    %3997 = vmatprep.subr.mxu0 0.0
    %3998 = vmatpush1.msra.mxu0 0.0
    %3999 = vmatprep.subr.mxu0 0.0
    %4000 = vmatpush1.msra.mxu0 0.0
    %4001 = vmatprep.subr.mxu0 0.0
    %4002 = vmatpush1.msra.mxu0 0.0
    %4003 = vmatprep.subr.mxu0 0.0
    %4004 = vmatpush1.msra.mxu0 0.0
    %4005 = vmatprep.subr.mxu0 0.0
    %4006 = vmatpush1.msra.mxu0 0.0
    %4007 = vmatprep.subr.mxu0 0.0
    %4008 = vmatpush1.msra.mxu0 0.0
    %4009 = vmatprep.subr.mxu0 0.0
    %4010 = vmatpush1.msra.mxu0 0.0
    %4011 = vmatprep.subr.mxu0 0.0
    %4012 = vmatpush1.msra.mxu0 0.0
    %4013 = vmatprep.subr.mxu0 0.0
    %4014 = vmatpush1.msra.mxu0 0.0
    %4015 = vmatprep.mubr.f32.mxu0 0.0
    %4016 = vmatmul.mubr.f32.gmra.mrb[0].mxu0 %v3946
    %v4017 = vpop.f32.mrb[0].mxu0
    %v4018 = vadd.f32 %v3944, %v4017
    %v4019 = vpop.f32.mrb[0].mxu0
    %4020 = vmatprep.mubr.f32.mxu0 0.0
    %4021 = vmatmul.mubr.f32.gmra.mrb[0].mxu0 %v3949
    %v4022 = vpop.f32.mrb[0].mxu0
    %v4023 = vadd.f32 %v3944, %v4022
    %v4024 = vpop.f32.mrb[0].mxu0
    %4025 = vdwg.mxu0
    %v4026 = vmax.f32 %v4018, 0.0
    %v4027 = vmax.f32 %v4023, 0.0
    %v4028 = vlaneseq
    %v4029 = vshrl.u32 %v4028, 7
    %v4030 = vsub.s32 3, %v4029
    %v4031 = vrot.slane %v2159, %v4030
    %v4033 = vsel %vm48, %v4026, 0
    %v4036 = vsel %vm48, %v4027, 0
    %4038 = vmatprep.subr.mxu0 0.0
    %4039 = vmatpush1.msra.mxu0 %v2151
    %4040 = vmatprep.subr.mxu0 0.0
    %4041 = vmatpush1.msra.mxu0 %v2152
    %4042 = vmatprep.subr.mxu0 0.0
    %4043 = vmatpush1.msra.mxu0 %v2153
    %4044 = vmatprep.subr.mxu0 0.0
    %4045 = vmatpush1.msra.mxu0 %v2154
    %4046 = vmatprep.subr.mxu0 0.0
    %4047 = vmatpush1.msra.mxu0 %v2155
    %4048 = vmatprep.subr.mxu0 0.0
    %4049 = vmatpush1.msra.mxu0 %v2156
    %4050 = vmatprep.subr.mxu0 0.0
    %4051 = vmatpush1.msra.mxu0 %v2157
    %4052 = vmatprep.subr.mxu0 0.0
    %4053 = vmatpush1.msra.mxu0 %v2158
    %4054 = vmatprep.subr.mxu0 0.0
    %4055 = vmatpush1.msra.mxu0 0.0
    %4056 = vmatprep.subr.mxu0 0.0
    %4057 = vmatpush1.msra.mxu0 0.0
    %4058 = vmatprep.subr.mxu0 0.0
    %4059 = vmatpush1.msra.mxu0 0.0
    %4060 = vmatprep.subr.mxu0 0.0
    %4061 = vmatpush1.msra.mxu0 0.0
    %4062 = vmatprep.subr.mxu0 0.0
    %4063 = vmatpush1.msra.mxu0 0.0
    %4064 = vmatprep.subr.mxu0 0.0
    %4065 = vmatpush1.msra.mxu0 0.0
    %4066 = vmatprep.subr.mxu0 0.0
    %4067 = vmatpush1.msra.mxu0 0.0
    %4068 = vmatprep.subr.mxu0 0.0
    %4069 = vmatpush1.msra.mxu0 0.0
    %4070 = vmatprep.subr.mxu0 0.0
    %4071 = vmatpush1.msra.mxu0 0.0
    %4072 = vmatprep.subr.mxu0 0.0
    %4073 = vmatpush1.msra.mxu0 0.0
    %4074 = vmatprep.subr.mxu0 0.0
    %4075 = vmatpush1.msra.mxu0 0.0
    %4076 = vmatprep.subr.mxu0 0.0
    %4077 = vmatpush1.msra.mxu0 0.0
    %4078 = vmatprep.subr.mxu0 0.0
    %4079 = vmatpush1.msra.mxu0 0.0
    %4080 = vmatprep.subr.mxu0 0.0
    %4081 = vmatpush1.msra.mxu0 0.0
    %4082 = vmatprep.subr.mxu0 0.0
    %4083 = vmatpush1.msra.mxu0 0.0
    %4084 = vmatprep.subr.mxu0 0.0
    %4085 = vmatpush1.msra.mxu0 0.0
    %4086 = vmatprep.subr.mxu0 0.0
    %4087 = vmatpush1.msra.mxu0 0.0
    %4088 = vmatprep.subr.mxu0 0.0
    %4089 = vmatpush1.msra.mxu0 0.0
    %4090 = vmatprep.subr.mxu0 0.0
    %4091 = vmatpush1.msra.mxu0 0.0
    %4092 = vmatprep.subr.mxu0 0.0
    %4093 = vmatpush1.msra.mxu0 0.0
    %4094 = vmatprep.subr.mxu0 0.0
    %4095 = vmatpush1.msra.mxu0 0.0
    %4096 = vmatprep.subr.mxu0 0.0
    %4097 = vmatpush1.msra.mxu0 0.0
    %4098 = vmatprep.subr.mxu0 0.0
    %4099 = vmatpush1.msra.mxu0 0.0
    %4100 = vmatprep.subr.mxu0 0.0
    %4101 = vmatpush1.msra.mxu0 0.0
    %4102 = vmatprep.mubr.f32.mxu0 0.0
    %4103 = vmatmul.mubr.f32.gmra.mrb[0].mxu0 %v4033
    %v4104 = vpop.f32.mrb[0].mxu0
    %v4105 = vadd.f32 %v4031, %v4104
    %v4106 = vpop.f32.mrb[0].mxu0
    %4107 = vmatprep.mubr.f32.mxu0 0.0
    %4108 = vmatmul.mubr.f32.gmra.mrb[0].mxu0 %v4036
    %v4109 = vpop.f32.mrb[0].mxu0
    %v4110 = vadd.f32 %v4031, %v4109
    %v4111 = vpop.f32.mrb[0].mxu0
    %4112 = vdwg.mxu0
    %v4113 = vadd.f32 %v3939, %v4105
    %v4114 = vadd.f32 %v3940, %v4110
    %v4115 = vsel %vm151, %v4113, 0.0
    %4116 = vadd.xlane.f32.xlu0 %v4115
    %v4117 = vpop.xlane.xlu0 %4116
    %v4118 = vsel %vm151, %v4114, 0.0
    %4119 = vadd.xlane.f32.xlu0 %v4118
    %v4120 = vpop.xlane.xlu0 %4119
    %v4121 = vmul.f32 %v4117, %v1898
    %v4122 = vmul.f32 %v4120, %v1898
    %v4123 = vsub.f32 %v4113, %v4121
    %v4124 = vsub.f32 %v4114, %v4122
    %v4125 = vmul.f32 %v4123, %v4123
    %v4126 = vmul.f32 %v4124, %v4124
    %v4127 = vsel %vm151, %v4125, 0.0
    %4128 = vadd.xlane.f32.xlu0 %v4127
    %v4129 = vpop.xlane.xlu0 %4128
    %v4130 = vsel %vm151, %v4126, 0.0
    %4131 = vadd.xlane.f32.xlu0 %v4130
    %v4132 = vpop.xlane.xlu0 %4131
    %v4133 = vmul.f32 %v4129, %v1898
    %v4134 = vmul.f32 %v4132, %v1898
    %v4135 = vadd.f32 %v4133, 1e-05
    %v4136 = vadd.f32 %v4134, 1e-05
    %v4137 = vrsqrt.pop %v4135
    %v4138 = vrsqrt.pop %v4136
    %v4139 = vmul.f32 %v4123, %v4137
    %v4140 = vmul.f32 %v4124, %v4138
    %v4141 = vlaneseq
    %v4142 = vshrl.u32 %v4141, 7
    %v4143 = vsub.s32 6, %v4142
    %v4144 = vrot.slane %v2159, %v4143
    %v4145 = vmul.f32 %v4139, %v4144
    %v4146 = vmul.f32 %v4140, %v4144
    %v4147 = vlaneseq
    %v4148 = vshrl.u32 %v4147, 7
    %v4149 = vsub.s32 7, %v4148
    %v4150 = vrot.slane %v2159, %v4149
    %v4151 = vadd.f32 %v4145, %v4150
    %v4152 = vadd.f32 %v4146, %v4150
    %4154 = vrot.lane.b32.xlu0 %v4152, 32
    %v4155 = vpop.permute.xlu0 %4154
    %v4157 = vsel %vm151, %v4151, %v4155
    %4158 = vst.msk [vmem:[%s2] sm:$0xff] %vm48, %v4157
    // Predicated region
    $region14: #{encoder_forward.1} parent=1 // pred_check
      _
    $region15: #{encoder_forward.1} parent=1 // pred_check_branch
      %4160 = sbr.rel (0) target = $region17
    $region16: #{encoder_forward.1} parent=1 // pred_region
      _
    $region17: #{encoder_forward.1} parent=1 // pred_fallthru
      _
    // Predicated region
    $region18: #{encoder_forward.1} parent=1 // pred_check
      _
    $region19: #{encoder_forward.1} parent=1 // pred_check_branch
      %4162 = sbr.rel (0) target = $region21
    $region20: #{encoder_forward.1} parent=1 // pred_region
      _
    $region21: #{encoder_forward.1} parent=1 // pred_fallthru
      _
    %4163 = vsyncpa [#allocation3], 1

</llo_original>
